<compile_context>
chip_gen: v7x
topology: tpu7x:2x2x1
jax: 0.10.0
libtpu: 0.0.40
codegen_flags: <defaults>
</compile_context>

<pallas_src>
import math
import functools

import jax
import jax.numpy as jnp
from jax import lax
from jax.experimental import pallas as pl
from jax.experimental.pallas import tpu as pltpu


def _row_reduce(a, pair_op, final_reduce):
    """Row-wise reduce of a (T, n) strip.

    Bulk of the work is a lane-aligned VPU tree over 128-wide chunks (pure
    elementwise, no cross-lane traffic); only the final (T, 128) -> (T, 1)
    reduce goes through the XLU, keeping the vector-extended slots free for
    the MXU pushes it competes with."""
    n = a.shape[-1]
    if n > 128 and n % 128 == 0:
        acc = a[:, :128]
        for g in range(1, n // 128):
            acc = pair_op(acc, a[:, g * 128:(g + 1) * 128])
        a = acc
    return final_reduce(a, axis=-1, keepdims=True)


def _sa_kernel(tile, x_ref, wq_ref, wkv_ref, bv_ref, s1_ref, t1_ref,
               w1_ref, w2_ref, s2_ref, t2_ref, o_ref, k_s, v_s):
    """One (batch b, query-tile t) grid step.

    x_ref   : (1, N, C) f32   full sequence for this batch element (resident)
    wq_ref  : (C, C)    bf16  Wq^T with the 1/sqrt(N) scale folded in
    wkv_ref : (C, 2C)   bf16  [Wk^T | Wv^T]
    o_ref   : (1, N, C) f32   output block, resident across the tile axis
                              (doubles as the attention accumulator)
    k_s/v_s : (N, C)    bf16  VMEM scratch, filled at tile 0
    """
    t = pl.program_id(1)
    n, c = k_s.shape
    n_chunks = n // tile

    xb = x_ref.at[0]                                   # (N, C) f32 view
    ob = o_ref.at[0]                                   # (N, C) f32 view

    # ---- tile 0: project K/V for the whole sequence (strip-mined over
    #      TILE-row chunks) and seed the accumulator with the residual x ----
    @pl.when(t == 0)
    def _():
        def kv_chunk(i, carry):
            r0 = pl.multiple_of(i * tile, tile)
            xc = xb[pl.ds(r0, tile), :]                               # (T, C) f32
            ob[pl.ds(r0, tile), :] = xc                               # residual seed
            kv = jnp.dot(xc.astype(jnp.bfloat16), wkv_ref[...],
                         preferred_element_type=jnp.float32)          # (T, 2C)
            k_s[pl.ds(r0, tile), :] = kv[:, :c].astype(jnp.bfloat16)
            v_s[pl.ds(r0, tile), :] = (kv[:, c:] + bv_ref[...]).astype(jnp.bfloat16)
            return carry
        lax.fori_loop(0, n_chunks, kv_chunk, 0)

    # ---- this query tile's contribution to the attention output ----
    q0 = pl.multiple_of(t * tile, tile)
    q_t = jnp.dot(xb[pl.ds(q0, tile), :].astype(jnp.bfloat16), wq_ref[...],
                  preferred_element_type=jnp.float32).astype(jnp.bfloat16)  # (T, C)

    # energy[i, j] = q_i . k_j    (A @ B^T without materializing a transpose)
    energy = lax.dot_general(q_t, k_s[...], (((1,), (1,)), ((), ())),
                             preferred_element_type=jnp.float32)      # (T, N)
    m = _row_reduce(energy, jnp.maximum, jnp.max)                     # (T, 1)
    p = jnp.exp(energy - m)                                           # (T, N)
    r = pl.reciprocal(_row_reduce(p, jnp.add, jnp.sum), approx=True)  # (T, 1)

    # torch: out[c, j] = sum_i v[c, i] * attn[i, j].  The softmax normalizer
    # depends only on the contracted query index i, so fold it into the
    # (T, C) v rows instead of the (T, N) attention strip.
    v_t = v_s[pl.ds(q0, tile), :]                                     # (T, C) bf16
    v_scaled = (v_t * r).astype(jnp.bfloat16)                         # (T, C)
    # partial[j, c] = sum_{i in tile} p[i, j] * v_scaled[i, c]   (A^T @ B)
    partial = lax.dot_general(p.astype(jnp.bfloat16), v_scaled,
                              (((0,), (0,)), ((), ())),
                              preferred_element_type=jnp.float32)     # (N, C)
    ob[...] = ob[...] + partial

    # ---- last tile: BN1 + feed-forward + residual + BN2, strip-mined ----
    @pl.when(t == pl.num_programs(1) - 1)
    def _():
        def ff_chunk(i, carry):
            r0 = pl.multiple_of(i * tile, tile)
            h = ob[pl.ds(r0, tile), :] * s1_ref[...] + t1_ref[...]    # BN1 affine
            f = jnp.dot(h.astype(jnp.bfloat16), w1_ref[...],
                        preferred_element_type=jnp.float32)           # (T, 512)
            f = jnp.where(f > 0, f, jnp.float32(0.2) * f)             # LeakyReLU(0.2)
            f = jnp.dot(f.astype(jnp.bfloat16), w2_ref[...],
                        preferred_element_type=jnp.float32)           # (T, 128)
            y = f + h
            ob[pl.ds(r0, tile), :] = y * s2_ref[...] + t2_ref[...]    # BN2 affine
            return carry
        lax.fori_loop(0, n_chunks, ff_chunk, 0)


def _prepare(params, n, eps=1e-5):
    """Fold BN stats and the 1/sqrt(N) scale; transpose + bf16-cast weights."""
    (wq, wk, wv, bv,
     g1, b1, m1, var1,
     w1, w2,
     g2, b2, m2, var2) = params
    c = wq.shape[0]
    s1 = (g1 / jnp.sqrt(var1 + eps)).astype(jnp.float32)
    t1 = (b1 - m1 * s1).astype(jnp.float32)
    s2 = (g2 / jnp.sqrt(var2 + eps)).astype(jnp.float32)
    t2 = (b2 - m2 * s2).astype(jnp.float32)
    scale = 1.0 / math.sqrt(float(n))                       # sqrt(q.shape[-2]) = sqrt(N)
    wq_s = (wq.T * scale).astype(jnp.bfloat16)               # (C, C), scale folded
    wkv = jnp.concatenate([wk.T, wv.T], axis=1).astype(jnp.bfloat16)  # (C, 2C)
    w1t = w1.T.astype(jnp.bfloat16)                          # (128, 512)
    w2t = w2.T.astype(jnp.bfloat16)                          # (512, 128)
    return (wq_s, wkv,
            bv.reshape(1, c).astype(jnp.float32),
            s1.reshape(1, c), t1.reshape(1, c),
            w1t, w2t,
            s2.reshape(1, -1), t2.reshape(1, -1))


def sa_layer_single_head_bnc(x_bnc, params, *, tile=256):
    """x_bnc: (B, N, C=128) float32.  Returns (B, N, 128) float32."""
    B, N, C = x_bnc.shape
    assert C == 128, "SALayerSingleHead's feed-forward requires 128 channels"
    wq_s, wkv, bv, s1, t1, w1t, w2t, s2, t2 = _prepare(params, N)
    H = w1t.shape[1]        # 512
    C_out = w2t.shape[1]    # 128

    ti = min(tile, N)
    assert N % ti == 0 and ti % 8 == 0, "sequence length must tile cleanly"
    nt = N // ti

    full = lambda shape: pl.BlockSpec(shape, lambda b, t: (0,) * len(shape))

    cost = pl.CostEstimate(
        flops=2 * B * (N * C * 3 * C + 2 * N * N * C + N * C * H + N * H * C_out),
        transcendentals=B * N * N,
        bytes_accessed=4 * B * N * (C + C_out) + 2 * (3 * C * C + C * H + H * C_out),
    )

    # VMEM budget as a function of N: resident x/o blocks (double-buffered),
    # K/V scratch, (tile, N) softmax strips, chunked FF temp, bf16 weights.
    # Capped at 48 MiB to stay inside v7x's 64 MiB physical VMEM.
    vmem_need = (4 * N * C * 4
                 + 2 * N * C * 2
                 + 3 * ti * N * 4
                 + ti * H * 4
                 + 4 * (3 * C * C + C * H + H * C_out)
                 + (4 << 20))
    vmem_limit = int(min(max(32 << 20, vmem_need), 48 << 20))

    # NOTE: on v7x (2 TensorCores) only the "parallel" batch axis feeds the
    # second core; B == 1 leaves half the chip idle (core_map split not done here).
    out = pl.pallas_call(
        functools.partial(_sa_kernel, ti),
        out_shape=jax.ShapeDtypeStruct((B, N, C_out), jnp.float32),
        grid_spec=pltpu.PrefetchScalarGridSpec(
            num_scalar_prefetch=0,
            grid=(B, nt),
            in_specs=[
                pl.BlockSpec((1, N, C), lambda b, t: (b, 0, 0)),   # x (resident per batch)
                full((C, C)),          # Wq^T / sqrt(N), bf16
                full((C, 2 * C)),      # [Wk^T | Wv^T], bf16
                full((1, C)),          # v bias
                full((1, C)),          # BN1 scale
                full((1, C)),          # BN1 shift
                full((C, H)),          # W1^T bf16
                full((H, C_out)),      # W2^T bf16
                full((1, C_out)),      # BN2 scale
                full((1, C_out)),      # BN2 shift
            ],
            out_specs=pl.BlockSpec((1, N, C_out), lambda b, t: (b, 0, 0)),
            scratch_shapes=[
                pltpu.VMEM((N, C), jnp.bfloat16),   # K
                pltpu.VMEM((N, C), jnp.bfloat16),   # V (bias added)
            ],
        ),
        compiler_params=pltpu.CompilerParams(
            dimension_semantics=("parallel", "arbitrary"),
            vmem_limit_bytes=vmem_limit,
        ),
        cost_estimate=cost,
    )(x_bnc.astype(jnp.float32), wq_s, wkv, bv, s1, t1, w1t, w2t, s2, t2)
    return out


def sa_layer_single_head(x_ncw, params, *, tile=256):
    """Torch-layout wrapper: x_ncw (B, C, N) -> (B, 128, N).

    The two transposes are pure layout plumbing; feed (B, N, C) data to
    sa_layer_single_head_bnc directly to avoid them."""
    x_bnc = jnp.transpose(x_ncw, (0, 2, 1))
    out = sa_layer_single_head_bnc(x_bnc, params, tile=tile)
    return jnp.transpose(out, (0, 2, 1))


def reference(x_ncw, params):
    """Pure-JAX mirror of the torch forward (inference-mode BN), using the same
    bf16-operand / f32-accumulate numerics as the kernel."""
    B, C, N = x_ncw.shape
    wq_s, wkv, bv, s1, t1, w1t, w2t, s2, t2 = _prepare(params, N)
    f32, bf16 = jnp.float32, jnp.bfloat16

    x = jnp.transpose(x_ncw, (0, 2, 1)).astype(f32)                  # (B, N, C)
    q = jnp.einsum('bnc,cd->bnd', x.astype(bf16), wq_s, preferred_element_type=f32)
    kv = jnp.einsum('bnc,cd->bnd', x.astype(bf16), wkv, preferred_element_type=f32)
    k = kv[..., :C]
    v = kv[..., C:] + bv

    energy = jnp.einsum('bic,bjc->bij', q.astype(bf16), k.astype(bf16),
                        preferred_element_type=f32)                  # (B, N, N)
    attn = jax.nn.softmax(energy, axis=-1)
    attn_out = jnp.einsum('bij,bic->bjc', attn.astype(bf16), v.astype(bf16),
                          preferred_element_type=f32)                # (B, N, C)

    h = attn_out + x
    h = h * s1 + t1
    ff = jnp.einsum('bnc,ch->bnh', h.astype(bf16), w1t, preferred_element_type=f32)
    ff = jnp.where(ff > 0, ff, 0.2 * ff)
    ff = jnp.einsum('bnh,hc->bnc', ff.astype(bf16), w2t, preferred_element_type=f32)
    y = ff + h
    y = y * s2 + t2
    return jnp.transpose(y, (0, 2, 1))                               # back to (B, C, N)


def make_params(key, channels=128, hidden=512, out_channels=128):
    ks = jax.random.split(key, 12)
    f32 = jnp.float32
    wq = 0.05 * jax.random.normal(ks[0], (channels, channels), f32)
    wk = 0.05 * jax.random.normal(ks[1], (channels, channels), f32)
    wv = 0.05 * jax.random.normal(ks[2], (channels, channels), f32)
    bv = 0.05 * jax.random.normal(ks[3], (channels,), f32)
    g1 = jax.random.uniform(ks[4], (channels,), f32, 0.5, 1.5)
    b1 = 0.05 * jax.random.normal(ks[5], (channels,), f32)
    m1 = 0.05 * jax.random.normal(ks[6], (channels,), f32)
    v1 = jax.random.uniform(ks[7], (channels,), f32, 0.5, 1.5)
    w1 = 0.05 * jax.random.normal(ks[8], (hidden, 128), f32)
    w2 = 0.05 * jax.random.normal(ks[9], (out_channels, hidden), f32)
    g2 = jax.random.uniform(ks[10], (out_channels,), f32, 0.5, 1.5)
    b2 = 0.05 * jax.random.normal(ks[11], (out_channels,), f32)
    m2 = jnp.zeros((out_channels,), f32)
    v2 = jnp.ones((out_channels,), f32)
    return (wq, wk, wv, bv, g1, b1, m1, v1, w1, w2, g2, b2, m2, v2)


if __name__ == "__main__":
    # channels must be 128 (feed_forward is Conv1d(128, 512, 1)); N must tile.
    # Small shapes for correctness only; perf validation belongs at N >= 2-4K
    # with xprof minimum-of-N timing (this regime is per-step-overhead bound).
    B, C, N = 2, 128, 256
    key = jax.random.PRNGKey(0)
    kx, kp = jax.random.split(key)
    x = jax.random.normal(kx, (B, C, N), jnp.float32)   # torch NCW layout
    params = make_params(kp, channels=C)

    # tile=128 here so the multi-tile accumulation + strip-mined prologue /
    # epilogue paths are exercised even at this toy N (production default: 256).
    y_kernel = jax.block_until_ready(sa_layer_single_head(x, params, tile=128))
    y_ref = jax.block_until_ready(reference(x, params))

    assert y_kernel.shape == (B, 128, N), y_kernel.shape
    err = float(jnp.max(jnp.abs(y_kernel - y_ref)))
    ref_scale = max(1.0, float(jnp.max(jnp.abs(y_ref))))
    if err > 2e-2 * ref_scale:
        raise AssertionError(f"mismatch vs reference: max abs err {err} (scale {ref_scale})")
    print("KERNEL_OK")
</pallas_src>

<mosaic_0001>
module attributes {stable_mosaic.version = 11 : i64} {
  func.func @_sa_kernel(%arg0: i32, %arg1: i32, %arg2: memref<1x256x128xf32, #tpu.memory_space<vmem>>, %arg3: memref<128x128xbf16, #tpu.memory_space<vmem>>, %arg4: memref<128x256xbf16, #tpu.memory_space<vmem>>, %arg5: memref<1x128xf32, #tpu.memory_space<vmem>>, %arg6: memref<1x128xf32, #tpu.memory_space<vmem>>, %arg7: memref<1x128xf32, #tpu.memory_space<vmem>>, %arg8: memref<128x512xbf16, #tpu.memory_space<vmem>>, %arg9: memref<512x128xbf16, #tpu.memory_space<vmem>>, %arg10: memref<1x128xf32, #tpu.memory_space<vmem>>, %arg11: memref<1x128xf32, #tpu.memory_space<vmem>>, %arg12: memref<1x256x128xf32, #tpu.memory_space<vmem>>, %arg13: memref<256x128xbf16, #tpu.memory_space<vmem>>, %arg14: memref<256x128xbf16, #tpu.memory_space<vmem>>) attributes {dimension_semantics = [#tpu.dimension_semantics<parallel>, #tpu.dimension_semantics<arbitrary>], iteration_bounds = array<i64: 2, 2>, scalar_prefetch = 0 : i64, scratch_operands = 2 : i64, tpu.core_type = #tpu.core_type<tc>, window_params = [{transform_indices = @transform_0, window_bounds = array<i64: 1, 256, 128>}, {pipeline_mode = #tpu.pipeline_mode<synchronous>, transform_indices = @transform_1, window_bounds = array<i64: 128, 128>}, {pipeline_mode = #tpu.pipeline_mode<synchronous>, transform_indices = @transform_2, window_bounds = array<i64: 128, 256>}, {pipeline_mode = #tpu.pipeline_mode<synchronous>, transform_indices = @transform_3, window_bounds = array<i64: 1, 128>}, {pipeline_mode = #tpu.pipeline_mode<synchronous>, transform_indices = @transform_4, window_bounds = array<i64: 1, 128>}, {pipeline_mode = #tpu.pipeline_mode<synchronous>, transform_indices = @transform_5, window_bounds = array<i64: 1, 128>}, {pipeline_mode = #tpu.pipeline_mode<synchronous>, transform_indices = @transform_6, window_bounds = array<i64: 128, 512>}, {pipeline_mode = #tpu.pipeline_mode<synchronous>, transform_indices = @transform_7, window_bounds = array<i64: 512, 128>}, {pipeline_mode = #tpu.pipeline_mode<synchronous>, transform_indices = @transform_8, window_bounds = array<i64: 1, 128>}, {pipeline_mode = #tpu.pipeline_mode<synchronous>, transform_indices = @transform_9, window_bounds = array<i64: 1, 128>}, {transform_indices = @transform_10, window_bounds = array<i64: 1, 256, 128>}]} {
    %c0_i32 = arith.constant 0 : i32
    %0 = arith.cmpi eq, %arg1, %c0_i32 : i32
    %1 = arith.extui %0 : i1 to i32
    %c0_i32_0 = arith.constant 0 : i32
    %c0_i32_1 = arith.constant 0 : i32
    %c0_i32_2 = arith.constant 0 : i32
    %2 = arith.cmpi ne, %1, %c0_i32_2 : i32
    scf.if %2 {
      %c0_i32_23 = arith.constant 0 : i32
      %c2_i32 = arith.constant 2 : i32
      %46 = arith.addi %c0_i32_23, %c2_i32 : i32
      %c1_i32_24 = arith.constant 1 : i32
      scf.for %arg15 = %c0_i32_23 to %46 step %c1_i32_24  : i32 {
        %c128_i32_26 = arith.constant 128 : i32
        %47 = arith.muli %arg15, %c128_i32_26 : i32
        %48 = tpu.assume_multiple %47, 128 : i32
        %c0_i32_27 = arith.constant 0 : i32
        %c0_i32_28 = arith.constant 0 : i32
        %49 = tpu.memref_slice %arg2[%c0_i32_0, %c0_i32_27, %c0_i32_28] : memref<1x256x128xf32, #tpu.memory_space<vmem>> -> memref<1x256x128xf32, #tpu.memory_space<vmem>>
        %50 = tpu.memref_squeeze %49 : memref<1x256x128xf32, #tpu.memory_space<vmem>> -> memref<256x128xf32, #tpu.memory_space<vmem>>
        %51 = arith.index_cast %48 : i32 to index
        %c0_29 = arith.constant 0 : index
        %52 = vector.load %50[%51, %c0_29] : memref<256x128xf32, #tpu.memory_space<vmem>>, vector<128x128xf32>
        %c0_i32_30 = arith.constant 0 : i32
        %c0_i32_31 = arith.constant 0 : i32
        %53 = tpu.memref_slice %arg12[%c0_i32_1, %c0_i32_30, %c0_i32_31] : memref<1x256x128xf32, #tpu.memory_space<vmem>> -> memref<1x256x128xf32, #tpu.memory_space<vmem>>
        %54 = tpu.memref_squeeze %53 : memref<1x256x128xf32, #tpu.memory_space<vmem>> -> memref<256x128xf32, #tpu.memory_space<vmem>>
        %55 = arith.index_cast %48 : i32 to index
        %c0_32 = arith.constant 0 : index
        %56 = vector.load %54[%55, %c0_32] : memref<256x128xf32, #tpu.memory_space<vmem>>, vector<128x128xf32>
        tpu.vector_store %54[%55, %c0_32], %52 {strides = array<i32>} : memref<256x128xf32, #tpu.memory_space<vmem>>, vector<128x128xf32>,
        %57 = arith.truncf %52 : vector<128x128xf32> to vector<128x128xbf16>
        %c0_33 = arith.constant 0 : index
        %c0_34 = arith.constant 0 : index
        %58 = vector.load %arg4[%c0_33, %c0_34] : memref<128x256xbf16, #tpu.memory_space<vmem>>, vector<128x256xbf16>
        %cst_35 = arith.constant dense<0.000000e+00> : vector<128x256xf32>
        %59 = tpu.matmul %57, %58, %cst_35 {dimension_numbers = #tpu.dot_dimension_numbers<[1], [0], [0], [1], [0, 0, 1, 1], [], []>} : vector<128x128xbf16>, vector<128x256xbf16>, vector<128x256xf32> -> vector<128x256xf32>
        %60 = vector.extract_strided_slice %59 {offsets = [0, 0], sizes = [128, 128], strides = [1, 1]} : vector<128x256xf32> to vector<128x128xf32>
        %61 = arith.truncf %60 : vector<128x128xf32> to vector<128x128xbf16>
        %62 = arith.index_cast %48 : i32 to index
        %c0_36 = arith.constant 0 : index
        %63 = vector.load %arg13[%62, %c0_36] : memref<256x128xbf16, #tpu.memory_space<vmem>>, vector<128x128xbf16>
        tpu.vector_store %arg13[%62, %c0_36], %61 {strides = array<i32>} : memref<256x128xbf16, #tpu.memory_space<vmem>>, vector<128x128xbf16>,
        %64 = vector.extract_strided_slice %59 {offsets = [0, 128], sizes = [128, 128], strides = [1, 1]} : vector<128x256xf32> to vector<128x128xf32>
        %c0_37 = arith.constant 0 : index
        %c0_38 = arith.constant 0 : index
        %65 = vector.load %arg5[%c0_37, %c0_38] : memref<1x128xf32, #tpu.memory_space<vmem>>, vector<1x128xf32>
        %66 = vector.broadcast %65 : vector<1x128xf32> to vector<128x128xf32>
        %67 = arith.addf %64, %66 : vector<128x128xf32>
        %68 = arith.truncf %67 : vector<128x128xf32> to vector<128x128xbf16>
        %69 = arith.index_cast %48 : i32 to index
        %c0_39 = arith.constant 0 : index
        %70 = vector.load %arg14[%69, %c0_39] : memref<256x128xbf16, #tpu.memory_space<vmem>>, vector<128x128xbf16>
        tpu.vector_store %arg14[%69, %c0_39], %68 {strides = array<i32>} : memref<256x128xbf16, #tpu.memory_space<vmem>>, vector<128x128xbf16>,
      }
      %c2_i32_25 = arith.constant 2 : i32
    } else {
    }
    %c128_i32 = arith.constant 128 : i32
    %3 = arith.muli %arg1, %c128_i32 : i32
    %4 = tpu.assume_multiple %3, 128 : i32
    %c0_i32_3 = arith.constant 0 : i32
    %c0_i32_4 = arith.constant 0 : i32
    %c0_i32_5 = arith.constant 0 : i32
    %5 = tpu.memref_slice %arg2[%c0_i32_3, %c0_i32_4, %c0_i32_5] : memref<1x256x128xf32, #tpu.memory_space<vmem>> -> memref<1x256x128xf32, #tpu.memory_space<vmem>>
    %6 = tpu.memref_squeeze %5 : memref<1x256x128xf32, #tpu.memory_space<vmem>> -> memref<256x128xf32, #tpu.memory_space<vmem>>
    %7 = arith.index_cast %4 : i32 to index
    %c0 = arith.constant 0 : index
    %8 = vector.load %6[%7, %c0] : memref<256x128xf32, #tpu.memory_space<vmem>>, vector<128x128xf32>
    %9 = arith.truncf %8 : vector<128x128xf32> to vector<128x128xbf16>
    %c0_6 = arith.constant 0 : index
    %c0_7 = arith.constant 0 : index
    %10 = vector.load %arg3[%c0_6, %c0_7] : memref<128x128xbf16, #tpu.memory_space<vmem>>, vector<128x128xbf16>
    %cst = arith.constant dense<0.000000e+00> : vector<128x128xf32>
    %11 = tpu.matmul %9, %10, %cst {dimension_numbers = #tpu.dot_dimension_numbers<[1], [0], [0], [1], [0, 0, 1, 1], [], []>} : vector<128x128xbf16>, vector<128x128xbf16>, vector<128x128xf32> -> vector<128x128xf32>
    %12 = arith.truncf %11 : vector<128x128xf32> to vector<128x128xbf16>
    %c0_8 = arith.constant 0 : index
    %c0_9 = arith.constant 0 : index
    %13 = vector.load %arg13[%c0_8, %c0_9] : memref<256x128xbf16, #tpu.memory_space<vmem>>, vector<256x128xbf16>
    %cst_10 = arith.constant dense<0.000000e+00> : vector<128x256xf32>
    %14 = tpu.matmul %12, %13, %cst_10 {dimension_numbers = #tpu.dot_dimension_numbers<[1], [1], [0], [0], [0, 0, 1, 0], [], []>} : vector<128x128xbf16>, vector<256x128xbf16>, vector<128x256xf32> -> vector<128x256xf32>
    %15 = vector.extract_strided_slice %14 {offsets = [0, 0], sizes = [128, 128], strides = [1, 1]} : vector<128x256xf32> to vector<128x128xf32>
    %16 = vector.extract_strided_slice %14 {offsets = [0, 128], sizes = [128, 128], strides = [1, 1]} : vector<128x256xf32> to vector<128x128xf32>
    %17 = arith.maximumf %15, %16 : vector<128x128xf32>
    %cst_11 = arith.constant dense<0xFF800000> : vector<128xf32>
    %18 = vector.multi_reduction <maximumf>, %17, %cst_11 [1] : vector<128x128xf32> to vector<128xf32>
    %19 = vector.shape_cast %18 : vector<128xf32> to vector<128x1xf32>
    %20 = vector.broadcast %19 : vector<128x1xf32> to vector<128x256xf32>
    %21 = arith.subf %14, %20 : vector<128x256xf32>
    %22 = math.exp %21 : vector<128x256xf32>
    %23 = vector.extract_strided_slice %22 {offsets = [0, 0], sizes = [128, 128], strides = [1, 1]} : vector<128x256xf32> to vector<128x128xf32>
    %24 = vector.extract_strided_slice %22 {offsets = [0, 128], sizes = [128, 128], strides = [1, 1]} : vector<128x256xf32> to vector<128x128xf32>
    %25 = arith.addf %23, %24 : vector<128x128xf32>
    %cst_12 = arith.constant dense<0.000000e+00> : vector<128xf32>
    %26 = vector.multi_reduction <add>, %25, %cst_12 [1] : vector<128x128xf32> to vector<128xf32>
    %27 = vector.shape_cast %26 : vector<128xf32> to vector<128x1xf32>
    %28 = tpu.reciprocal %27 {approx = true} : vector<128x1xf32> -> vector<128x1xf32>
    %29 = arith.index_cast %4 : i32 to index
    %c0_13 = arith.constant 0 : index
    %30 = vector.load %arg14[%29, %c0_13] : memref<256x128xbf16, #tpu.memory_space<vmem>>, vector<128x128xbf16>
    %31 = arith.extf %30 : vector<128x128xbf16> to vector<128x128xf32>
    %32 = vector.broadcast %28 : vector<128x1xf32> to vector<128x128xf32>
    %33 = arith.mulf %31, %32 : vector<128x128xf32>
    %34 = arith.truncf %33 : vector<128x128xf32> to vector<128x128xbf16>
    %35 = arith.truncf %22 : vector<128x256xf32> to vector<128x256xbf16>
    %cst_14 = arith.constant dense<0.000000e+00> : vector<256x128xf32>
    %36 = tpu.matmul %35, %34, %cst_14 {dimension_numbers = #tpu.dot_dimension_numbers<[0], [0], [1], [1], [0, 1, 1, 1], [], []>} : vector<128x256xbf16>, vector<128x128xbf16>, vector<256x128xf32> -> vector<256x128xf32>
    %c0_15 = arith.constant 0 : index
    %c0_16 = arith.constant 0 : index
    %c0_17 = arith.constant 0 : index
    %37 = vector.load %arg12[%c0_15, %c0_16, %c0_17] : memref<1x256x128xf32, #tpu.memory_space<vmem>>, vector<1x256x128xf32>
    %38 = vector.shape_cast %37 : vector<1x256x128xf32> to vector<256x128xf32>
    %39 = arith.addf %38, %36 : vector<256x128xf32>
    %c0_18 = arith.constant 0 : index
    %c0_19 = arith.constant 0 : index
    %c0_20 = arith.constant 0 : index
    %40 = vector.load %arg12[%c0_18, %c0_19, %c0_20] : memref<1x256x128xf32, #tpu.memory_space<vmem>>, vector<1x256x128xf32>
    %41 = vector.shape_cast %40 : vector<1x256x128xf32> to vector<256x128xf32>
    %42 = vector.shape_cast %39 : vector<256x128xf32> to vector<1x256x128xf32>
    tpu.vector_store %arg12[%c0_18, %c0_19, %c0_20], %42 {strides = array<i32>} : memref<1x256x128xf32, #tpu.memory_space<vmem>>, vector<1x256x128xf32>,
    %c1_i32 = arith.constant 1 : i32
    %43 = arith.cmpi eq, %arg1, %c1_i32 : i32
    %44 = arith.extui %43 : i1 to i32
    %c0_i32_21 = arith.constant 0 : i32
    %c0_i32_22 = arith.constant 0 : i32
    %45 = arith.cmpi ne, %44, %c0_i32_22 : i32
    scf.if %45 {
      %c0_i32_23 = arith.constant 0 : i32
      %c2_i32 = arith.constant 2 : i32
      %46 = arith.addi %c0_i32_23, %c2_i32 : i32
      %c1_i32_24 = arith.constant 1 : i32
      scf.for %arg15 = %c0_i32_23 to %46 step %c1_i32_24  : i32 {
        %c128_i32_26 = arith.constant 128 : i32
        %47 = arith.muli %arg15, %c128_i32_26 : i32
        %48 = tpu.assume_multiple %47, 128 : i32
        %c0_i32_27 = arith.constant 0 : i32
        %c0_i32_28 = arith.constant 0 : i32
        %49 = tpu.memref_slice %arg12[%c0_i32_21, %c0_i32_27, %c0_i32_28] : memref<1x256x128xf32, #tpu.memory_space<vmem>> -> memref<1x256x128xf32, #tpu.memory_space<vmem>>
        %50 = tpu.memref_squeeze %49 : memref<1x256x128xf32, #tpu.memory_space<vmem>> -> memref<256x128xf32, #tpu.memory_space<vmem>>
        %51 = arith.index_cast %48 : i32 to index
        %c0_29 = arith.constant 0 : index
        %52 = vector.load %50[%51, %c0_29] : memref<256x128xf32, #tpu.memory_space<vmem>>, vector<128x128xf32>
        %c0_30 = arith.constant 0 : index
        %c0_31 = arith.constant 0 : index
        %53 = vector.load %arg6[%c0_30, %c0_31] : memref<1x128xf32, #tpu.memory_space<vmem>>, vector<1x128xf32>
        %54 = vector.broadcast %53 : vector<1x128xf32> to vector<128x128xf32>
        %55 = arith.mulf %52, %54 : vector<128x128xf32>
        %c0_32 = arith.constant 0 : index
        %c0_33 = arith.constant 0 : index
        %56 = vector.load %arg7[%c0_32, %c0_33] : memref<1x128xf32, #tpu.memory_space<vmem>>, vector<1x128xf32>
        %57 = vector.broadcast %56 : vector<1x128xf32> to vector<128x128xf32>
        %58 = arith.addf %55, %57 : vector<128x128xf32>
        %59 = arith.truncf %58 : vector<128x128xf32> to vector<128x128xbf16>
        %c0_34 = arith.constant 0 : index
        %c0_35 = arith.constant 0 : index
        %60 = vector.load %arg8[%c0_34, %c0_35] : memref<128x512xbf16, #tpu.memory_space<vmem>>, vector<128x512xbf16>
        %cst_36 = arith.constant dense<0.000000e+00> : vector<128x512xf32>
        %61 = tpu.matmul %59, %60, %cst_36 {dimension_numbers = #tpu.dot_dimension_numbers<[1], [0], [0], [1], [0, 0, 1, 1], [], []>} : vector<128x128xbf16>, vector<128x512xbf16>, vector<128x512xf32> -> vector<128x512xf32>
        %cst_37 = arith.constant 0.000000e+00 : f32
        %62 = vector.broadcast %cst_37 : f32 to vector<128x512xf32>
        %63 = arith.cmpf ogt, %61, %62 : vector<128x512xf32>
        %cst_38 = arith.constant 2.000000e-01 : f32
        %64 = vector.broadcast %cst_38 : f32 to vector<128x512xf32>
        %65 = arith.mulf %64, %61 : vector<128x512xf32>
        %66 = arith.select %63, %61, %65 : vector<128x512xi1>, vector<128x512xf32>
        %67 = arith.truncf %66 : vector<128x512xf32> to vector<128x512xbf16>
        %c0_39 = arith.constant 0 : index
        %c0_40 = arith.constant 0 : index
        %68 = vector.load %arg9[%c0_39, %c0_40] : memref<512x128xbf16, #tpu.memory_space<vmem>>, vector<512x128xbf16>
        %cst_41 = arith.constant dense<0.000000e+00> : vector<128x128xf32>
        %69 = tpu.matmul %67, %68, %cst_41 {dimension_numbers = #tpu.dot_dimension_numbers<[1], [0], [0], [1], [0, 0, 1, 1], [], []>} : vector<128x512xbf16>, vector<512x128xbf16>, vector<128x128xf32> -> vector<128x128xf32>
        %70 = arith.addf %69, %58 : vector<128x128xf32>
        %c0_42 = arith.constant 0 : index
        %c0_43 = arith.constant 0 : index
        %71 = vector.load %arg10[%c0_42, %c0_43] : memref<1x128xf32, #tpu.memory_space<vmem>>, vector<1x128xf32>
        %72 = vector.broadcast %71 : vector<1x128xf32> to vector<128x128xf32>
        %73 = arith.mulf %70, %72 : vector<128x128xf32>
        %c0_44 = arith.constant 0 : index
        %c0_45 = arith.constant 0 : index
        %74 = vector.load %arg11[%c0_44, %c0_45] : memref<1x128xf32, #tpu.memory_space<vmem>>, vector<1x128xf32>
        %75 = vector.broadcast %74 : vector<1x128xf32> to vector<128x128xf32>
        %76 = arith.addf %73, %75 : vector<128x128xf32>
        %c0_i32_46 = arith.constant 0 : i32
        %c0_i32_47 = arith.constant 0 : i32
        %77 = tpu.memref_slice %arg12[%c0_i32_21, %c0_i32_46, %c0_i32_47] : memref<1x256x128xf32, #tpu.memory_space<vmem>> -> memref<1x256x128xf32, #tpu.memory_space<vmem>>
        %78 = tpu.memref_squeeze %77 : memref<1x256x128xf32, #tpu.memory_space<vmem>> -> memref<256x128xf32, #tpu.memory_space<vmem>>
        %79 = arith.index_cast %48 : i32 to index
        %c0_48 = arith.constant 0 : index
        %80 = vector.load %78[%79, %c0_48] : memref<256x128xf32, #tpu.memory_space<vmem>>, vector<128x128xf32>
        tpu.vector_store %78[%79, %c0_48], %76 {strides = array<i32>} : memref<256x128xf32, #tpu.memory_space<vmem>>, vector<128x128xf32>,
      }
      %c2_i32_25 = arith.constant 2 : i32
    } else {
    }
    return
  }
  func.func @transform_0(%arg0: i32, %arg1: i32) -> (i32, i32, i32) {
    %c0_i32 = arith.constant 0 : i32
    %c0_i32_0 = arith.constant 0 : i32
    %c0_i32_1 = arith.constant 0 : i32
    return %arg0, %c0_i32, %c0_i32_0 : i32, i32, i32
  }
  func.func @transform_1(%arg0: i32, %arg1: i32) -> (i32, i32) {
    %c0_i32 = arith.constant 0 : i32
    %c0_i32_0 = arith.constant 0 : i32
    %c0_i32_1 = arith.constant 0 : i32
    return %c0_i32, %c0_i32_0 : i32, i32
  }
  func.func @transform_2(%arg0: i32, %arg1: i32) -> (i32, i32) {
    %c0_i32 = arith.constant 0 : i32
    %c0_i32_0 = arith.constant 0 : i32
    %c0_i32_1 = arith.constant 0 : i32
    return %c0_i32, %c0_i32_0 : i32, i32
  }
  func.func @transform_3(%arg0: i32, %arg1: i32) -> (i32, i32) {
    %c0_i32 = arith.constant 0 : i32
    %c0_i32_0 = arith.constant 0 : i32
    %c0_i32_1 = arith.constant 0 : i32
    return %c0_i32, %c0_i32_0 : i32, i32
  }
  func.func @transform_4(%arg0: i32, %arg1: i32) -> (i32, i32) {
    %c0_i32 = arith.constant 0 : i32
    %c0_i32_0 = arith.constant 0 : i32
    %c0_i32_1 = arith.constant 0 : i32
    return %c0_i32, %c0_i32_0 : i32, i32
  }
  func.func @transform_5(%arg0: i32, %arg1: i32) -> (i32, i32) {
    %c0_i32 = arith.constant 0 : i32
    %c0_i32_0 = arith.constant 0 : i32
    %c0_i32_1 = arith.constant 0 : i32
    return %c0_i32, %c0_i32_0 : i32, i32
  }
  func.func @transform_6(%arg0: i32, %arg1: i32) -> (i32, i32) {
    %c0_i32 = arith.constant 0 : i32
    %c0_i32_0 = arith.constant 0 : i32
    %c0_i32_1 = arith.constant 0 : i32
    return %c0_i32, %c0_i32_0 : i32, i32
  }
  func.func @transform_7(%arg0: i32, %arg1: i32) -> (i32, i32) {
    %c0_i32 = arith.constant 0 : i32
    %c0_i32_0 = arith.constant 0 : i32
    %c0_i32_1 = arith.constant 0 : i32
    return %c0_i32, %c0_i32_0 : i32, i32
  }
  func.func @transform_8(%arg0: i32, %arg1: i32) -> (i32, i32) {
    %c0_i32 = arith.constant 0 : i32
    %c0_i32_0 = arith.constant 0 : i32
    %c0_i32_1 = arith.constant 0 : i32
    return %c0_i32, %c0_i32_0 : i32, i32
  }
  func.func @transform_9(%arg0: i32, %arg1: i32) -> (i32, i32) {
    %c0_i32 = arith.constant 0 : i32
    %c0_i32_0 = arith.constant 0 : i32
    %c0_i32_1 = arith.constant 0 : i32
    return %c0_i32, %c0_i32_0 : i32, i32
  }
  func.func @transform_10(%arg0: i32, %arg1: i32) -> (i32, i32, i32) {
    %c0_i32 = arith.constant 0 : i32
    %c0_i32_0 = arith.constant 0 : i32
    %c0_i32_1 = arith.constant 0 : i32
    return %arg0, %c0_i32, %c0_i32_0 : i32, i32, i32
  }
}

</mosaic_0001>

<llo_original>
// kernel: tpu_custom_call.1
$region0: #{tpu_custom_call.1}
  #allocation0 [shape = 'u32[]', space=smem, size = 0x4, offset = 0x4, fixed_abs, tag = 'smem constant byte address 0x4 - core index']
  #allocation1 [shape = 'u32[144,128]{1,0:T(1,128)}', space=vmem, size = 0x12000, scoped, tag = 'internal scratch']
  #allocation2 [shape = 'bf16[256,128]{1,0:T(16,128)(2,1)}', space=vmem, size = 0x10000, scoped, tag = 'scratch operand']
  #allocation3 [shape = 'bf16[256,128]{1,0:T(16,128)(2,1)}', space=vmem, size = 0x10000, scoped, tag = 'scratch operand']
  %s0 = inlined_call_operand.hbm [shape: f32[2,256,128], index: 0, kind: input, shape index: {}]
  %s1 = inlined_call_operand.hbm [shape: bf16[128,128], index: 1, kind: input, shape index: {}]
  %s2 = inlined_call_operand.hbm [shape: bf16[128,256], index: 2, kind: input, shape index: {}]
  %s3 = inlined_call_operand.vmem [shape: f32[1,128], index: 3, kind: input, shape index: {}]
  %s4 = inlined_call_operand.vmem [shape: f32[1,128], index: 4, kind: input, shape index: {}]
  %s5 = inlined_call_operand.vmem [shape: f32[1,128], index: 5, kind: input, shape index: {}]
  %s6 = inlined_call_operand.hbm [shape: bf16[128,512], index: 6, kind: input, shape index: {}]
  %s7 = inlined_call_operand.hbm [shape: bf16[512,128], index: 7, kind: input, shape index: {}]
  %s8 = inlined_call_operand.vmem [shape: f32[1,128], index: 8, kind: input, shape index: {}]
  %s9 = inlined_call_operand.vmem [shape: f32[1,128], index: 9, kind: input, shape index: {}]
  %s10 = inlined_call_operand.hbm [shape: f32[2,256,128], index: 10, kind: output, shape index: {}]
  %s11 = sld [smem:[#allocation0]]
  $region115: #{tpu_custom_call.1} parent=0
    _
  %s13 = ssub.s32 1, %s11
  %s14 = scalar_select 0, %s13, %s11
  $region1: #{tpu_custom_call.1} parent=0
    #allocation4 [shape = 'u8[262144]{0}', space=vmem, size = 0x40000, scoped, tag = 'input window, operand 0']
    #allocation5 [shape = 's32[2]{0}', space=sflag, size = 0x8, scoped, tag = 'scoped memory for tpu_custom_call.1']
    #allocation6 [shape = 's32[2]{0}', space=sflag, size = 0x8, scoped, tag = 'scoped memory for tpu_custom_call.1']
    #allocation7 [shape = 'u8[32768]{0}', space=vmem, size = 0x8000, scoped, tag = 'input window, operand 1, single buffered']
    #allocation8 [shape = 's32[1]{0}', space=sflag, size = 0x4, scoped, tag = 'scoped memory for tpu_custom_call.1']
    #allocation9 [shape = 'u8[65536]{0}', space=vmem, size = 0x10000, scoped, tag = 'input window, operand 2, single buffered']
    #allocation10 [shape = 'u8[131072]{0}', space=vmem, size = 0x20000, scoped, tag = 'input window, operand 6, single buffered']
    #allocation11 [shape = 's32[1]{0}', space=sflag, size = 0x4, scoped, tag = 'scoped memory for tpu_custom_call.1']
    #allocation12 [shape = 'u8[131072]{0}', space=vmem, size = 0x20000, scoped, tag = 'input window, operand 7, single buffered']
    #allocation13 [shape = 'u8[262144]{0}', space=vmem, size = 0x40000, scoped, tag = 'output window, operand 0']
    %15 = vsyncpa [#allocation5], 0
    %s16 = scalar_lea.sflag [#allocation5], 1
    %17 = vsyncpa %s16, 0
    %18 = vsyncpa [#allocation8], 0
    %19 = vsyncpa [#allocation11], 0
    %20 = vsyncpa [#allocation6], 0
    %s21 = scalar_lea.sflag [#allocation6], 1
    %22 = vsyncpa %s21, 0
    loop: start=0, step=1, limit=6
    $region2: #{tpu_custom_call.1} parent=1 // loop_pre_header
      _
    $region3: #{tpu_custom_call.1} parent=1 // loop_header
      %s24 = sphi 0, %s28
      %p25 = scmp.ge.s32.totalorder %s24, 6
      %s31 = sphi 0, %s43
      %s32 = sphi 0, %s39
      %s33 = sphi 0, %s31
      %s34 = sphi 0, %s32
      %s35 = sphi 0, %s33
      %s36 = sphi 0, %s34
      %s46 = sphi 0, %s48
      %s49 = sphi 0, %s46
      %s50 = sphi 0, %s49
      %s66 = sphi 0, %s50
      %s70 = sphi 0, %s70
      %s72 = sphi 0, %s70
      %s73 = sphi 0, %s72
      %s87 = sphi 0, %s73
      %s91 = sphi 0, %s91
      %s93 = sphi 0, %s91
      %s94 = sphi 0, %s93
      %s108 = sphi 0, %s94
      %s112 = sphi 0, %s112
      %s114 = sphi 0, %s112
      %s115 = sphi 0, %s114
      %s129 = sphi 0, %s115
      %s133 = sphi 0, %s133
      %s135 = sphi 0, %s133
      %s136 = sphi 0, %s135
      %s150 = sphi 0, %s136
      %s154 = sphi 0, %s154
      %s156 = sphi 0, %s154
      %s157 = sphi 0, %s156
      %s171 = sphi 0, %s157
      %s175 = sphi 0, %s175
      %s177 = sphi 0, %s175
      %s178 = sphi 0, %s177
      %s192 = sphi 0, %s178
      %s196 = sphi 0, %s196
      %s198 = sphi 0, %s196
      %s199 = sphi 0, %s198
      %s213 = sphi 0, %s199
      %s217 = sphi 0, %s217
      %s219 = sphi 0, %s217
      %s220 = sphi 0, %s219
      %s234 = sphi 0, %s220
      %s238 = sphi 0, %s238
      %s240 = sphi 0, %s238
      %s241 = sphi 0, %s240
      %s255 = sphi 0, %s241
      %s261 = sphi 0, %s263
      %s264 = sphi 0, %s261
      %s265 = sphi 0, %s264
      %s281 = sphi 0, %s265
    $region4: #{tpu_custom_call.1} parent=1 // loop_header_branch
      %27 = sbr.rel (%p25) target = $region8
    $region5: #{tpu_custom_call.1} parent=1 // loop_body
      %s29 = ssub.s32 %s24, 1
      %s30 = ssub.s32 %s24, 2
      %s37 = sadd.s32 1, %s32
      %p38 = scmp.ge.s32.totalorder %s37, 2
      %s39 = scalar_select %p38, 0, %s37
      %s40 = sadd.s32 1, %s31
      %s41 = scalar_select %p38, %s40, %s31
      %p42 = scmp.ge.s32.totalorder %s41, 2
      %s43 = scalar_select %p42, 0, %s41
      %s44 = ssub.s32 %s31, %s43
      %p45 = scmp.eq.s32.totalorder %s44, 0
      %s47 = sadd.s32 %s46, 1
      %s48 = scalar_select %p45, %s46, %s47
      %p51 = pneg %p45
      %p52 = scmp.eq.s32.totalorder %s24, 3
      %p53 = por %p51, %p52
      %p54 = scmp.ne.s32.totalorder %s46, %s49
      %p55 = scmp.eq.s32.totalorder %s24, 0
      %p56 = por %p54, %p55
      %p57 = scmp.ne.s32.totalorder %s46, %s49
      %p58 = scmp.eq.s32.totalorder %s29, 3
      %p59 = por %p57, %p58
      %p60 = scmp.ne.s32.totalorder %s49, %s50
      %p61 = scmp.eq.s32.totalorder %s29, 0
      %p62 = por %p60, %p61
      %p63 = scmp.ne.s32.totalorder %s49, %s50
      %p64 = scmp.eq.s32.totalorder %s30, 3
      %p65 = por %p63, %p64
      %p67 = scmp.ne.s32.totalorder %s50, %s66
      %p68 = scmp.eq.s32.totalorder %s30, 0
      %p69 = por %p67, %p68
      %s71 = sadd.s32 %s70, 1
      %p74 = scmp.eq.s32.totalorder %s24, 3
      %p75 = scmp.ne.s32.totalorder %s70, %s72
      %p76 = scmp.eq.s32.totalorder %s24, 0
      %p77 = por %p75, %p76
      %p78 = scmp.ne.s32.totalorder %s70, %s72
      %p79 = scmp.eq.s32.totalorder %s29, 3
      %p80 = por %p78, %p79
      %p81 = scmp.ne.s32.totalorder %s72, %s73
      %p82 = scmp.eq.s32.totalorder %s29, 0
      %p83 = por %p81, %p82
      %p84 = scmp.ne.s32.totalorder %s72, %s73
      %p85 = scmp.eq.s32.totalorder %s30, 3
      %p86 = por %p84, %p85
      %p88 = scmp.ne.s32.totalorder %s73, %s87
      %p89 = scmp.eq.s32.totalorder %s30, 0
      %p90 = por %p88, %p89
      %s92 = sadd.s32 %s91, 1
      %p95 = scmp.eq.s32.totalorder %s24, 3
      %p96 = scmp.ne.s32.totalorder %s91, %s93
      %p97 = scmp.eq.s32.totalorder %s24, 0
      %p98 = por %p96, %p97
      %p99 = scmp.ne.s32.totalorder %s91, %s93
      %p100 = scmp.eq.s32.totalorder %s29, 3
      %p101 = por %p99, %p100
      %p102 = scmp.ne.s32.totalorder %s93, %s94
      %p103 = scmp.eq.s32.totalorder %s29, 0
      %p104 = por %p102, %p103
      %p105 = scmp.ne.s32.totalorder %s93, %s94
      %p106 = scmp.eq.s32.totalorder %s30, 3
      %p107 = por %p105, %p106
      %p109 = scmp.ne.s32.totalorder %s94, %s108
      %p110 = scmp.eq.s32.totalorder %s30, 0
      %p111 = por %p109, %p110
      %s113 = sadd.s32 %s112, 1
      %p116 = scmp.eq.s32.totalorder %s24, 3
      %p117 = scmp.ne.s32.totalorder %s112, %s114
      %p118 = scmp.eq.s32.totalorder %s24, 0
      %p119 = por %p117, %p118
      %p120 = scmp.ne.s32.totalorder %s112, %s114
      %p121 = scmp.eq.s32.totalorder %s29, 3
      %p122 = por %p120, %p121
      %p123 = scmp.ne.s32.totalorder %s114, %s115
      %p124 = scmp.eq.s32.totalorder %s29, 0
      %p125 = por %p123, %p124
      %p126 = scmp.ne.s32.totalorder %s114, %s115
      %p127 = scmp.eq.s32.totalorder %s30, 3
      %p128 = por %p126, %p127
      %p130 = scmp.ne.s32.totalorder %s115, %s129
      %p131 = scmp.eq.s32.totalorder %s30, 0
      %p132 = por %p130, %p131
      %s134 = sadd.s32 %s133, 1
      %p137 = scmp.eq.s32.totalorder %s24, 3
      %p138 = scmp.ne.s32.totalorder %s133, %s135
      %p139 = scmp.eq.s32.totalorder %s24, 0
      %p140 = por %p138, %p139
      %p141 = scmp.ne.s32.totalorder %s133, %s135
      %p142 = scmp.eq.s32.totalorder %s29, 3
      %p143 = por %p141, %p142
      %p144 = scmp.ne.s32.totalorder %s135, %s136
      %p145 = scmp.eq.s32.totalorder %s29, 0
      %p146 = por %p144, %p145
      %p147 = scmp.ne.s32.totalorder %s135, %s136
      %p148 = scmp.eq.s32.totalorder %s30, 3
      %p149 = por %p147, %p148
      %p151 = scmp.ne.s32.totalorder %s136, %s150
      %p152 = scmp.eq.s32.totalorder %s30, 0
      %p153 = por %p151, %p152
      %s155 = sadd.s32 %s154, 1
      %p158 = scmp.eq.s32.totalorder %s24, 3
      %p159 = scmp.ne.s32.totalorder %s154, %s156
      %p160 = scmp.eq.s32.totalorder %s24, 0
      %p161 = por %p159, %p160
      %p162 = scmp.ne.s32.totalorder %s154, %s156
      %p163 = scmp.eq.s32.totalorder %s29, 3
      %p164 = por %p162, %p163
      %p165 = scmp.ne.s32.totalorder %s156, %s157
      %p166 = scmp.eq.s32.totalorder %s29, 0
      %p167 = por %p165, %p166
      %p168 = scmp.ne.s32.totalorder %s156, %s157
      %p169 = scmp.eq.s32.totalorder %s30, 3
      %p170 = por %p168, %p169
      %p172 = scmp.ne.s32.totalorder %s157, %s171
      %p173 = scmp.eq.s32.totalorder %s30, 0
      %p174 = por %p172, %p173
      %s176 = sadd.s32 %s175, 1
      %p179 = scmp.eq.s32.totalorder %s24, 3
      %p180 = scmp.ne.s32.totalorder %s175, %s177
      %p181 = scmp.eq.s32.totalorder %s24, 0
      %p182 = por %p180, %p181
      %p183 = scmp.ne.s32.totalorder %s175, %s177
      %p184 = scmp.eq.s32.totalorder %s29, 3
      %p185 = por %p183, %p184
      %p186 = scmp.ne.s32.totalorder %s177, %s178
      %p187 = scmp.eq.s32.totalorder %s29, 0
      %p188 = por %p186, %p187
      %p189 = scmp.ne.s32.totalorder %s177, %s178
      %p190 = scmp.eq.s32.totalorder %s30, 3
      %p191 = por %p189, %p190
      %p193 = scmp.ne.s32.totalorder %s178, %s192
      %p194 = scmp.eq.s32.totalorder %s30, 0
      %p195 = por %p193, %p194
      %s197 = sadd.s32 %s196, 1
      %p200 = scmp.eq.s32.totalorder %s24, 3
      %p201 = scmp.ne.s32.totalorder %s196, %s198
      %p202 = scmp.eq.s32.totalorder %s24, 0
      %p203 = por %p201, %p202
      %p204 = scmp.ne.s32.totalorder %s196, %s198
      %p205 = scmp.eq.s32.totalorder %s29, 3
      %p206 = por %p204, %p205
      %p207 = scmp.ne.s32.totalorder %s198, %s199
      %p208 = scmp.eq.s32.totalorder %s29, 0
      %p209 = por %p207, %p208
      %p210 = scmp.ne.s32.totalorder %s198, %s199
      %p211 = scmp.eq.s32.totalorder %s30, 3
      %p212 = por %p210, %p211
      %p214 = scmp.ne.s32.totalorder %s199, %s213
      %p215 = scmp.eq.s32.totalorder %s30, 0
      %p216 = por %p214, %p215
      %s218 = sadd.s32 %s217, 1
      %p221 = scmp.eq.s32.totalorder %s24, 3
      %p222 = scmp.ne.s32.totalorder %s217, %s219
      %p223 = scmp.eq.s32.totalorder %s24, 0
      %p224 = por %p222, %p223
      %p225 = scmp.ne.s32.totalorder %s217, %s219
      %p226 = scmp.eq.s32.totalorder %s29, 3
      %p227 = por %p225, %p226
      %p228 = scmp.ne.s32.totalorder %s219, %s220
      %p229 = scmp.eq.s32.totalorder %s29, 0
      %p230 = por %p228, %p229
      %p231 = scmp.ne.s32.totalorder %s219, %s220
      %p232 = scmp.eq.s32.totalorder %s30, 3
      %p233 = por %p231, %p232
      %p235 = scmp.ne.s32.totalorder %s220, %s234
      %p236 = scmp.eq.s32.totalorder %s30, 0
      %p237 = por %p235, %p236
      %s239 = sadd.s32 %s238, 1
      %p242 = scmp.eq.s32.totalorder %s24, 3
      %p243 = scmp.ne.s32.totalorder %s238, %s240
      %p244 = scmp.eq.s32.totalorder %s24, 0
      %p245 = por %p243, %p244
      %p246 = scmp.ne.s32.totalorder %s238, %s240
      %p247 = scmp.eq.s32.totalorder %s29, 3
      %p248 = por %p246, %p247
      %p249 = scmp.ne.s32.totalorder %s240, %s241
      %p250 = scmp.eq.s32.totalorder %s29, 0
      %p251 = por %p249, %p250
      %p252 = scmp.ne.s32.totalorder %s240, %s241
      %p253 = scmp.eq.s32.totalorder %s30, 3
      %p254 = por %p252, %p253
      %p256 = scmp.ne.s32.totalorder %s241, %s255
      %p257 = scmp.eq.s32.totalorder %s30, 0
      %p258 = por %p256, %p257
      %s259 = ssub.s32 %s31, %s43
      %p260 = scmp.eq.s32.totalorder %s259, 0
      %s262 = sadd.s32 %s261, 1
      %s263 = scalar_select %p260, %s261, %s262
      %p266 = pneg %p260
      %p267 = scmp.eq.s32.totalorder %s24, 3
      %p268 = por %p266, %p267
      %p269 = scmp.ne.s32.totalorder %s261, %s264
      %p270 = scmp.eq.s32.totalorder %s24, 0
      %p271 = por %p269, %p270
      %p272 = scmp.ne.s32.totalorder %s261, %s264
      %p273 = scmp.eq.s32.totalorder %s29, 3
      %p274 = por %p272, %p273
      %p275 = scmp.ne.s32.totalorder %s264, %s265
      %p276 = scmp.eq.s32.totalorder %s29, 0
      %p277 = por %p275, %p276
      %p278 = scmp.ne.s32.totalorder %s264, %s265
      %p279 = scmp.eq.s32.totalorder %s30, 3
      %p280 = por %p278, %p279
      %p282 = scmp.ne.s32.totalorder %s265, %s281
      %p283 = scmp.eq.s32.totalorder %s30, 0
      %p284 = por %p282, %p283
      %p285 = scmp.le.s32.totalorder 1, %s24
      %p286 = scmp.lt.s32.totalorder %s24, 5
      %p287 = pnand %p285, %p286
      %p288 = pneg %p287
      // Predicated region
      $region9: #{tpu_custom_call.1} parent=5 // pred_check
        _
      $region10: #{tpu_custom_call.1} parent=5 // pred_check_branch
        %290 = sbr.rel (%p287) target = $region12
      $region11: #{tpu_custom_call.1} parent=5 // pred_region
        %s291 = ssub.s32 %s24, 1
        // Predicated region
        $region13: #{tpu_custom_call.1} parent=11 // pred_check
          %p292 = pneg %p83
        $region14: #{tpu_custom_call.1} parent=11 // pred_check_branch
          %294 = sbr.rel (%p292) target = $region16
        $region15: #{tpu_custom_call.1} parent=11 // pred_region
          %s296 = ssub.s32 1024, 1024
          %297 = vsyncadd [#allocation8], %s296
          %s298 = sshll.u32 [#allocation7], 4
          %s299 = int_to_ptr.vmem [resolvable:$true] %s298
          %304 = dma.hbm_to_vmem [thread:$0]  %s1, 1024, %s299, [#allocation8], 64, 64, 4
        $region16: #{tpu_custom_call.1} parent=11 // pred_fallthru
          _
        // Predicated region
        $region17: #{tpu_custom_call.1} parent=11 // pred_check
          %p305 = pneg %p104
        $region18: #{tpu_custom_call.1} parent=11 // pred_check_branch
          %307 = sbr.rel (%p305) target = $region20
        $region19: #{tpu_custom_call.1} parent=11 // pred_region
          %s309 = ssub.s32 2048, 2048
          %310 = vsyncadd [#allocation8], %s309
          %s311 = sshll.u32 [#allocation9], 4
          %s312 = int_to_ptr.vmem [resolvable:$true] %s311
          %317 = dma.hbm_to_vmem [thread:$0]  %s2, 2048, %s312, [#allocation8], 128, 128, 8
        $region20: #{tpu_custom_call.1} parent=11 // pred_fallthru
          _
        // Predicated region
        $region21: #{tpu_custom_call.1} parent=11 // pred_check
          %p318 = pneg %p125
        $region22: #{tpu_custom_call.1} parent=11 // pred_check_branch
          %320 = sbr.rel (%p318) target = $region24
        $region23: #{tpu_custom_call.1} parent=11 // pred_region
          _
        $region24: #{tpu_custom_call.1} parent=11 // pred_fallthru
          _
        // Predicated region
        $region25: #{tpu_custom_call.1} parent=11 // pred_check
          %p321 = pneg %p146
        $region26: #{tpu_custom_call.1} parent=11 // pred_check_branch
          %323 = sbr.rel (%p321) target = $region28
        $region27: #{tpu_custom_call.1} parent=11 // pred_region
          _
        $region28: #{tpu_custom_call.1} parent=11 // pred_fallthru
          _
        // Predicated region
        $region29: #{tpu_custom_call.1} parent=11 // pred_check
          %p324 = pneg %p167
        $region30: #{tpu_custom_call.1} parent=11 // pred_check_branch
          %326 = sbr.rel (%p324) target = $region32
        $region31: #{tpu_custom_call.1} parent=11 // pred_region
          _
        $region32: #{tpu_custom_call.1} parent=11 // pred_fallthru
          _
        // Predicated region
        $region33: #{tpu_custom_call.1} parent=11 // pred_check
          %p327 = pneg %p188
        $region34: #{tpu_custom_call.1} parent=11 // pred_check_branch
          %329 = sbr.rel (%p327) target = $region36
        $region35: #{tpu_custom_call.1} parent=11 // pred_region
          %s331 = ssub.s32 4096, 4096
          %332 = vsyncadd [#allocation11], %s331
          %s333 = sshll.u32 [#allocation10], 4
          %s334 = int_to_ptr.vmem [resolvable:$true] %s333
          %339 = dma.hbm_to_vmem [thread:$0]  %s6, 4096, %s334, [#allocation11], 256, 256, 16
        $region36: #{tpu_custom_call.1} parent=11 // pred_fallthru
          _
        // Predicated region
        $region37: #{tpu_custom_call.1} parent=11 // pred_check
          %p340 = pneg %p209
        $region38: #{tpu_custom_call.1} parent=11 // pred_check_branch
          %342 = sbr.rel (%p340) target = $region40
        $region39: #{tpu_custom_call.1} parent=11 // pred_region
          %s344 = ssub.s32 4096, 4096
          %345 = vsyncadd [#allocation11], %s344
          %s346 = sshll.u32 [#allocation12], 4
          %s347 = int_to_ptr.vmem [resolvable:$true] %s346
          %352 = dma.hbm_to_vmem [thread:$0]  %s7, 4096, %s347, [#allocation11], 64, 64, 4
        $region40: #{tpu_custom_call.1} parent=11 // pred_fallthru
          _
        // Predicated region
        $region41: #{tpu_custom_call.1} parent=11 // pred_check
          %p353 = pneg %p230
        $region42: #{tpu_custom_call.1} parent=11 // pred_check_branch
          %355 = sbr.rel (%p353) target = $region44
        $region43: #{tpu_custom_call.1} parent=11 // pred_region
          _
        $region44: #{tpu_custom_call.1} parent=11 // pred_fallthru
          _
        // Predicated region
        $region45: #{tpu_custom_call.1} parent=11 // pred_check
          %p356 = pneg %p251
        $region46: #{tpu_custom_call.1} parent=11 // pred_check_branch
          %358 = sbr.rel (%p356) target = $region48
        $region47: #{tpu_custom_call.1} parent=11 // pred_region
          _
        $region48: #{tpu_custom_call.1} parent=11 // pred_fallthru
          _
      $region12: #{tpu_custom_call.1} parent=5 // pred_fallthru
        _
      %p359 = scmp.lt.s32.totalorder %s24, 4
      // Predicated region
      $region49: #{tpu_custom_call.1} parent=5 // pred_check
        %p360 = pneg %p359
      $region50: #{tpu_custom_call.1} parent=5 // pred_check_branch
        %362 = sbr.rel (%p360) target = $region52
      $region51: #{tpu_custom_call.1} parent=5 // pred_region
        // Predicated region
        $region53: #{tpu_custom_call.1} parent=51 // pred_check
          %p363 = pneg %p56
        $region54: #{tpu_custom_call.1} parent=51 // pred_check_branch
          %365 = sbr.rel (%p363) target = $region56
        $region55: #{tpu_custom_call.1} parent=51 // pred_region
          %s366 = sand.u32 %s46, 1
          %s367 = scalar_lea.sflag [#allocation5], %s366
          %s368 = sand.u32 %s46, 1
          %s369 = smul.addr %s368, 256
          %s370 = scalar_lea.vmem [#allocation4], %s369
          %s372 = ssub.s32 4096, 4096
          %373 = vsyncadd %s367, %s372
          %s374 = smul.addr %s31, 32
          %s375 = smul.addr %s374, 128
          %s376 = scalar_lea.hbm %s0, %s375
          %s377 = sshll.u32 %s370, 4
          %s378 = int_to_ptr.vmem [resolvable:$true] %s377
          %383 = dma.hbm_to_vmem [thread:$0]  %s376, 4096, %s378, %s367, 128, 128, 8
        $region56: #{tpu_custom_call.1} parent=51 // pred_fallthru
          _
      $region52: #{tpu_custom_call.1} parent=5 // pred_fallthru
        _
      %p384 = scmp.le.s32.totalorder 1, %s24
      %p385 = scmp.lt.s32.totalorder %s24, 5
      %p386 = pnand %p384, %p385
      %p387 = pneg %p386
      // Predicated region
      $region57: #{tpu_custom_call.1} parent=5 // pred_check
        _
      $region58: #{tpu_custom_call.1} parent=5 // pred_check_branch
        %389 = sbr.rel (%p386) target = $region60
      $region59: #{tpu_custom_call.1} parent=5 // pred_region
        %s390 = ssub.s32 %s24, 1
        %s391 = sand.u32 %s49, 1
        %s392 = scalar_lea.sflag [#allocation5], %s391
        %s393 = sand.u32 %s49, 1
        %s394 = smul.addr %s393, 256
        %s395 = scalar_lea.vmem [#allocation4], %s394
        // Predicated region
        $region61: #{tpu_custom_call.1} parent=59 // pred_check
          %p396 = pneg %p62
        $region62: #{tpu_custom_call.1} parent=59 // pred_check_branch
          %398 = sbr.rel (%p396) target = $region64
        $region63: #{tpu_custom_call.1} parent=59 // pred_region
          %399 = dma.done %s392, 4096
        $region64: #{tpu_custom_call.1} parent=59 // pred_fallthru
          _
        // Predicated region
        $region65: #{tpu_custom_call.1} parent=59 // pred_check
          %p400 = pneg %p83
        $region66: #{tpu_custom_call.1} parent=59 // pred_check_branch
          %402 = sbr.rel (%p400) target = $region68
        $region67: #{tpu_custom_call.1} parent=59 // pred_region
          %403 = dma.done [#allocation8], 1024
        $region68: #{tpu_custom_call.1} parent=59 // pred_fallthru
          _
        // Predicated region
        $region69: #{tpu_custom_call.1} parent=59 // pred_check
          %p404 = pneg %p104
        $region70: #{tpu_custom_call.1} parent=59 // pred_check_branch
          %406 = sbr.rel (%p404) target = $region72
        $region71: #{tpu_custom_call.1} parent=59 // pred_region
          %407 = dma.done [#allocation8], 2048
        $region72: #{tpu_custom_call.1} parent=59 // pred_fallthru
          _
        // Predicated region
        $region73: #{tpu_custom_call.1} parent=59 // pred_check
          %p408 = pneg %p188
        $region74: #{tpu_custom_call.1} parent=59 // pred_check_branch
          %410 = sbr.rel (%p408) target = $region76
        $region75: #{tpu_custom_call.1} parent=59 // pred_region
          %411 = dma.done [#allocation11], 4096
        $region76: #{tpu_custom_call.1} parent=59 // pred_fallthru
          _
        // Predicated region
        $region77: #{tpu_custom_call.1} parent=59 // pred_check
          %p412 = pneg %p209
        $region78: #{tpu_custom_call.1} parent=59 // pred_check_branch
          %414 = sbr.rel (%p412) target = $region80
        $region79: #{tpu_custom_call.1} parent=59 // pred_region
          %415 = dma.done [#allocation11], 4096
        $region80: #{tpu_custom_call.1} parent=59 // pred_fallthru
          _
        %s416 = sand.u32 %s49, 1
        %s417 = scalar_lea.sflag [#allocation5], %s416
        %s418 = sand.u32 %s49, 1
        %s419 = smul.addr %s418, 256
        %s420 = scalar_lea.vmem [#allocation4], %s419
        %p421 = pneg %p62
        %p422 = pneg %p59
        %p423 = pneg %p83
        %p424 = pneg %p80
        %p425 = pneg %p104
        %p426 = pneg %p101
        %p427 = pneg %p125
        %p428 = pneg %p122
        %p429 = pneg %p146
        %p430 = pneg %p143
        %p431 = pneg %p167
        %p432 = pneg %p164
        %p433 = pneg %p188
        %p434 = pneg %p185
        %p435 = pneg %p209
        %p436 = pneg %p206
        %p437 = pneg %p230
        %p438 = pneg %p227
        %p439 = pneg %p251
        %p440 = pneg %p248
        %p441 = pneg %p277
        %p442 = pneg %p274
        %s443 = sand.u32 %s264, 1
        %s444 = scalar_lea.sflag [#allocation6], %s443
        %s445 = sand.u32 %s264, 1
        %s446 = smul.addr %s445, 256
        %s447 = scalar_lea.vmem [#allocation13], %s446
        %p449 = scmp.eq.s32.totalorder %s34, 0
        // Predicated region
        $region81: #{tpu_custom_call.1} parent=59 // pred_check
          %p450 = pneg %p449
        $region82: #{tpu_custom_call.1} parent=59 // pred_check_branch
          %452 = sbr.rel (%p450) target = $region84
        $region83: #{tpu_custom_call.1} parent=59 // pred_region
          loop: start=0, step=1, limit=2
          $region85: #{tpu_custom_call.1} parent=83 // loop_pre_header
            _
          $region86: #{tpu_custom_call.1} parent=83 // loop_header
            %s454 = sphi 0, %s458
            %p455 = scmp.ge.s32.totalorder %s454, 2
          $region87: #{tpu_custom_call.1} parent=83 // loop_header_branch
            %457 = sbr.rel (%p455) target = $region91
          $region88: #{tpu_custom_call.1} parent=83 // loop_body
            %s459 = smul.u32 %s454, 128
            %s460 = scalar_lea.vmem %s395, %s459 [#allocation4]
            %v461 = vld [vmem:[%s460] sm:$0xff]
            %v462 = vld [vmem:[%s460 + $0x8] sm:$0xff]
            %v463 = vld [vmem:[%s460 + $0x10] sm:$0xff]
            %v464 = vld [vmem:[%s460 + $0x18] sm:$0xff]
            %v465 = vld [vmem:[%s460 + $0x20] sm:$0xff]
            %v466 = vld [vmem:[%s460 + $0x28] sm:$0xff]
            %v467 = vld [vmem:[%s460 + $0x30] sm:$0xff]
            %v468 = vld [vmem:[%s460 + $0x38] sm:$0xff]
            %v469 = vld [vmem:[%s460 + $0x40] sm:$0xff]
            %v470 = vld [vmem:[%s460 + $0x48] sm:$0xff]
            %v471 = vld [vmem:[%s460 + $0x50] sm:$0xff]
            %v472 = vld [vmem:[%s460 + $0x58] sm:$0xff]
            %v473 = vld [vmem:[%s460 + $0x60] sm:$0xff]
            %v474 = vld [vmem:[%s460 + $0x68] sm:$0xff]
            %v475 = vld [vmem:[%s460 + $0x70] sm:$0xff]
            %v476 = vld [vmem:[%s460 + $0x78] sm:$0xff]
            %s477 = scalar_lea.vmem %s447, %s459 [#allocation13]
            %478 = vst [vmem:[%s477] sm:$0xff] %v461
            %479 = vst [vmem:[%s477 + $0x8] sm:$0xff] %v462
            %480 = vst [vmem:[%s477 + $0x10] sm:$0xff] %v463
            %481 = vst [vmem:[%s477 + $0x18] sm:$0xff] %v464
            %482 = vst [vmem:[%s477 + $0x20] sm:$0xff] %v465
            %483 = vst [vmem:[%s477 + $0x28] sm:$0xff] %v466
            %484 = vst [vmem:[%s477 + $0x30] sm:$0xff] %v467
            %485 = vst [vmem:[%s477 + $0x38] sm:$0xff] %v468
            %486 = vst [vmem:[%s477 + $0x40] sm:$0xff] %v469
            %487 = vst [vmem:[%s477 + $0x48] sm:$0xff] %v470
            %488 = vst [vmem:[%s477 + $0x50] sm:$0xff] %v471
            %489 = vst [vmem:[%s477 + $0x58] sm:$0xff] %v472
            %490 = vst [vmem:[%s477 + $0x60] sm:$0xff] %v473
            %491 = vst [vmem:[%s477 + $0x68] sm:$0xff] %v474
            %492 = vst [vmem:[%s477 + $0x70] sm:$0xff] %v475
            %493 = vst [vmem:[%s477 + $0x78] sm:$0xff] %v476
            %v494 = vpack.c.bf16 %v462, %v461
            %v495 = vpack.c.bf16 %v464, %v463
            %v496 = vpack.c.bf16 %v466, %v465
            %v497 = vpack.c.bf16 %v468, %v467
            %v498 = vpack.c.bf16 %v470, %v469
            %v499 = vpack.c.bf16 %v472, %v471
            %v500 = vpack.c.bf16 %v474, %v473
            %v501 = vpack.c.bf16 %v476, %v475
            %v502 = vld [vmem:[#allocation9] sm:$0xff]
            %v503 = vld [vmem:[#allocation9 + $0x8] sm:$0xff]
            %v504 = vld [vmem:[#allocation9 + $0x10] sm:$0xff]
            %v505 = vld [vmem:[#allocation9 + $0x18] sm:$0xff]
            %v506 = vld [vmem:[#allocation9 + $0x20] sm:$0xff]
            %v507 = vld [vmem:[#allocation9 + $0x28] sm:$0xff]
            %v508 = vld [vmem:[#allocation9 + $0x30] sm:$0xff]
            %v509 = vld [vmem:[#allocation9 + $0x38] sm:$0xff]
            %v510 = vld [vmem:[#allocation9 + $0x40] sm:$0xff]
            %v511 = vld [vmem:[#allocation9 + $0x48] sm:$0xff]
            %v512 = vld [vmem:[#allocation9 + $0x50] sm:$0xff]
            %v513 = vld [vmem:[#allocation9 + $0x58] sm:$0xff]
            %v514 = vld [vmem:[#allocation9 + $0x60] sm:$0xff]
            %v515 = vld [vmem:[#allocation9 + $0x68] sm:$0xff]
            %v516 = vld [vmem:[#allocation9 + $0x70] sm:$0xff]
            %v517 = vld [vmem:[#allocation9 + $0x78] sm:$0xff]
            %v534 = vunpack.c.l.b16 %v502
            %v535 = vunpack.c.h.b16 %v502
            %v536 = vunpack.c.l.b16 %v503
            %v537 = vunpack.c.h.b16 %v503
            %v538 = vunpack.c.l.b16 %v504
            %v539 = vunpack.c.h.b16 %v504
            %v540 = vunpack.c.l.b16 %v505
            %v541 = vunpack.c.h.b16 %v505
            %v542 = vunpack.c.l.b16 %v506
            %v543 = vunpack.c.h.b16 %v506
            %v544 = vunpack.c.l.b16 %v507
            %v545 = vunpack.c.h.b16 %v507
            %v546 = vunpack.c.l.b16 %v508
            %v547 = vunpack.c.h.b16 %v508
            %v548 = vunpack.c.l.b16 %v509
            %v549 = vunpack.c.h.b16 %v509
            %v550 = vunpack.c.l.b16 %v510
            %v551 = vunpack.c.h.b16 %v510
            %v552 = vunpack.c.l.b16 %v511
            %v553 = vunpack.c.h.b16 %v511
            %v554 = vunpack.c.l.b16 %v512
            %v555 = vunpack.c.h.b16 %v512
            %v556 = vunpack.c.l.b16 %v513
            %v557 = vunpack.c.h.b16 %v513
            %v558 = vunpack.c.l.b16 %v514
            %v559 = vunpack.c.h.b16 %v514
            %v560 = vunpack.c.l.b16 %v515
            %v561 = vunpack.c.h.b16 %v515
            %v562 = vunpack.c.l.b16 %v516
            %v563 = vunpack.c.h.b16 %v516
            %v564 = vunpack.c.l.b16 %v517
            %v565 = vunpack.c.h.b16 %v517
            %v566 = vpack.c.b16 %v536, %v534
            %v567 = vpack.c.b16 %v537, %v535
            %v568 = vpack.c.b16 %v540, %v538
            %v569 = vpack.c.b16 %v541, %v539
            %v570 = vpack.c.b16 %v544, %v542
            %v571 = vpack.c.b16 %v545, %v543
            %v572 = vpack.c.b16 %v548, %v546
            %v573 = vpack.c.b16 %v549, %v547
            %v574 = vpack.c.b16 %v552, %v550
            %v575 = vpack.c.b16 %v553, %v551
            %v576 = vpack.c.b16 %v556, %v554
            %v577 = vpack.c.b16 %v557, %v555
            %v578 = vpack.c.b16 %v560, %v558
            %v579 = vpack.c.b16 %v561, %v559
            %v580 = vpack.c.b16 %v564, %v562
            %v581 = vpack.c.b16 %v565, %v563
            %598 = vmatprep.subr.bf16.mxu0 %v567
            %599 = vmatpush1.bf16.msra.mxu0 %v566
            %600 = vmatprep.subr.bf16.mxu0 %v569
            %601 = vmatpush1.bf16.msra.mxu0 %v568
            %602 = vmatprep.subr.bf16.mxu0 %v571
            %603 = vmatpush1.bf16.msra.mxu0 %v570
            %604 = vmatprep.subr.bf16.mxu0 %v573
            %605 = vmatpush1.bf16.msra.mxu0 %v572
            %606 = vmatprep.subr.bf16.mxu0 %v575
            %607 = vmatpush1.bf16.msra.mxu0 %v574
            %608 = vmatprep.subr.bf16.mxu0 %v577
            %609 = vmatpush1.bf16.msra.mxu0 %v576
            %610 = vmatprep.subr.bf16.mxu0 %v579
            %611 = vmatpush1.bf16.msra.mxu0 %v578
            %612 = vmatprep.subr.bf16.mxu0 %v581
            %613 = vmatpush1.bf16.msra.mxu0 %v580
            %614 = vmatprep.subr.bf16.mxu0 0
            %615 = vmatpush1.bf16.msra.mxu0 0
            %616 = vmatprep.subr.bf16.mxu0 0
            %617 = vmatpush1.bf16.msra.mxu0 0
            %618 = vmatprep.subr.bf16.mxu0 0
            %619 = vmatpush1.bf16.msra.mxu0 0
            %620 = vmatprep.subr.bf16.mxu0 0
            %621 = vmatpush1.bf16.msra.mxu0 0
            %622 = vmatprep.subr.bf16.mxu0 0
            %623 = vmatpush1.bf16.msra.mxu0 0
            %624 = vmatprep.subr.bf16.mxu0 0
            %625 = vmatpush1.bf16.msra.mxu0 0
            %626 = vmatprep.subr.bf16.mxu0 0
            %627 = vmatpush1.bf16.msra.mxu0 0
            %628 = vmatprep.subr.bf16.mxu0 0
            %629 = vmatpush1.bf16.msra.mxu0 0
            %630 = vmatprep.mubr.bf16.mxu0 0
            %631 = vmatmul.mubr.bf16.gmra.mrb[0].mxu0 %v494
            %v632 = vpop.f32.mrb[0].mxu0
            %v633 = vadd.f32 0.0, %v632
            %v634 = vpop.f32.mrb[0].mxu0
            %v635 = vadd.f32 0.0, %v634
            %v636 = vpop.f32.mrb[0].mxu0
            %v637 = vadd.f32 0.0, %v636
            %v638 = vpop.f32.mrb[0].mxu0
            %v639 = vadd.f32 0.0, %v638
            %640 = vmatprep.mubr.bf16.mxu0 0
            %641 = vmatmul.mubr.bf16.gmra.mrb[0].mxu0 %v495
            %v642 = vpop.f32.mrb[0].mxu0
            %v643 = vadd.f32 0.0, %v642
            %v644 = vpop.f32.mrb[0].mxu0
            %v645 = vadd.f32 0.0, %v644
            %v646 = vpop.f32.mrb[0].mxu0
            %v647 = vadd.f32 0.0, %v646
            %v648 = vpop.f32.mrb[0].mxu0
            %v649 = vadd.f32 0.0, %v648
            %650 = vmatprep.mubr.bf16.mxu0 0
            %651 = vmatmul.mubr.bf16.gmra.mrb[0].mxu0 %v496
            %v652 = vpop.f32.mrb[0].mxu0
            %v653 = vadd.f32 0.0, %v652
            %v654 = vpop.f32.mrb[0].mxu0
            %v655 = vadd.f32 0.0, %v654
            %v656 = vpop.f32.mrb[0].mxu0
            %v657 = vadd.f32 0.0, %v656
            %v658 = vpop.f32.mrb[0].mxu0
            %v659 = vadd.f32 0.0, %v658
            %660 = vmatprep.mubr.bf16.mxu0 0
            %661 = vmatmul.mubr.bf16.gmra.mrb[0].mxu0 %v497
            %v662 = vpop.f32.mrb[0].mxu0
            %v663 = vadd.f32 0.0, %v662
            %v664 = vpop.f32.mrb[0].mxu0
            %v665 = vadd.f32 0.0, %v664
            %v666 = vpop.f32.mrb[0].mxu0
            %v667 = vadd.f32 0.0, %v666
            %v668 = vpop.f32.mrb[0].mxu0
            %v669 = vadd.f32 0.0, %v668
            %670 = vmatprep.mubr.bf16.mxu0 0
            %671 = vmatmul.mubr.bf16.gmra.mrb[0].mxu0 %v498
            %v672 = vpop.f32.mrb[0].mxu0
            %v673 = vadd.f32 0.0, %v672
            %v674 = vpop.f32.mrb[0].mxu0
            %v675 = vadd.f32 0.0, %v674
            %v676 = vpop.f32.mrb[0].mxu0
            %v677 = vadd.f32 0.0, %v676
            %v678 = vpop.f32.mrb[0].mxu0
            %v679 = vadd.f32 0.0, %v678
            %680 = vmatprep.mubr.bf16.mxu0 0
            %681 = vmatmul.mubr.bf16.gmra.mrb[0].mxu0 %v499
            %v682 = vpop.f32.mrb[0].mxu0
            %v683 = vadd.f32 0.0, %v682
            %v684 = vpop.f32.mrb[0].mxu0
            %v685 = vadd.f32 0.0, %v684
            %v686 = vpop.f32.mrb[0].mxu0
            %v687 = vadd.f32 0.0, %v686
            %v688 = vpop.f32.mrb[0].mxu0
            %v689 = vadd.f32 0.0, %v688
            %690 = vmatprep.mubr.bf16.mxu0 0
            %691 = vmatmul.mubr.bf16.gmra.mrb[0].mxu0 %v500
            %v692 = vpop.f32.mrb[0].mxu0
            %v693 = vadd.f32 0.0, %v692
            %v694 = vpop.f32.mrb[0].mxu0
            %v695 = vadd.f32 0.0, %v694
            %v696 = vpop.f32.mrb[0].mxu0
            %v697 = vadd.f32 0.0, %v696
            %v698 = vpop.f32.mrb[0].mxu0
            %v699 = vadd.f32 0.0, %v698
            %700 = vmatprep.mubr.bf16.mxu0 0
            %701 = vmatmul.mubr.bf16.gmra.mrb[0].mxu0 %v501
            %v702 = vpop.f32.mrb[0].mxu0
            %v703 = vadd.f32 0.0, %v702
            %v704 = vpop.f32.mrb[0].mxu0
            %v705 = vadd.f32 0.0, %v704
            %v706 = vpop.f32.mrb[0].mxu0
            %v707 = vadd.f32 0.0, %v706
            %v708 = vpop.f32.mrb[0].mxu0
            %v709 = vadd.f32 0.0, %v708
            %710 = vdwg.mxu0
            %v711 = vpack.c.bf16 %v637, %v633
            %v712 = vpack.c.bf16 %v647, %v643
            %v713 = vpack.c.bf16 %v657, %v653
            %v714 = vpack.c.bf16 %v667, %v663
            %v715 = vpack.c.bf16 %v677, %v673
            %v716 = vpack.c.bf16 %v687, %v683
            %v717 = vpack.c.bf16 %v697, %v693
            %v718 = vpack.c.bf16 %v707, %v703
            %s719 = sshra.s32 %s459, 4
            %s720 = sand.u32 %s459, 15
            %s721 = smul.addr %s719, 8
            %s722 = scalar_lea.vmem [#allocation2], %s721
            %723 = vst [vmem:[%s722] sm:$0xff] %v711
            %724 = vst [vmem:[%s722 + $0x8] sm:$0xff] %v712
            %725 = vst [vmem:[%s722 + $0x10] sm:$0xff] %v713
            %726 = vst [vmem:[%s722 + $0x18] sm:$0xff] %v714
            %727 = vst [vmem:[%s722 + $0x20] sm:$0xff] %v715
            %728 = vst [vmem:[%s722 + $0x28] sm:$0xff] %v716
            %729 = vst [vmem:[%s722 + $0x30] sm:$0xff] %v717
            %730 = vst [vmem:[%s722 + $0x38] sm:$0xff] %v718
            %v731 = vld [vmem:[%s3] sm:$0x1]
            %v733 = vlaneseq
            %v734 = vshrl.u32 %v733, 7
            %v735 = vsub.s32 0, %v734
            %v736 = vrot.slane %v731, %v735
            %v738 = vadd.f32 %v635, %v736
            %v739 = vadd.f32 %v639, %v736
            %v740 = vadd.f32 %v645, %v736
            %v741 = vadd.f32 %v649, %v736
            %v742 = vadd.f32 %v655, %v736
            %v743 = vadd.f32 %v659, %v736
            %v744 = vadd.f32 %v665, %v736
            %v745 = vadd.f32 %v669, %v736
            %v746 = vadd.f32 %v675, %v736
            %v747 = vadd.f32 %v679, %v736
            %v748 = vadd.f32 %v685, %v736
            %v749 = vadd.f32 %v689, %v736
            %v750 = vadd.f32 %v695, %v736
            %v751 = vadd.f32 %v699, %v736
            %v752 = vadd.f32 %v705, %v736
            %v753 = vadd.f32 %v709, %v736
            %v754 = vpack.c.bf16 %v739, %v738
            %v755 = vpack.c.bf16 %v741, %v740
            %v756 = vpack.c.bf16 %v743, %v742
            %v757 = vpack.c.bf16 %v745, %v744
            %v758 = vpack.c.bf16 %v747, %v746
            %v759 = vpack.c.bf16 %v749, %v748
            %v760 = vpack.c.bf16 %v751, %v750
            %v761 = vpack.c.bf16 %v753, %v752
            %s762 = smul.addr %s719, 8
            %s763 = scalar_lea.vmem [#allocation3], %s762
            %764 = vst [vmem:[%s763] sm:$0xff] %v754
            %765 = vst [vmem:[%s763 + $0x8] sm:$0xff] %v755
            %766 = vst [vmem:[%s763 + $0x10] sm:$0xff] %v756
            %767 = vst [vmem:[%s763 + $0x18] sm:$0xff] %v757
            %768 = vst [vmem:[%s763 + $0x20] sm:$0xff] %v758
            %769 = vst [vmem:[%s763 + $0x28] sm:$0xff] %v759
            %770 = vst [vmem:[%s763 + $0x30] sm:$0xff] %v760
            %771 = vst [vmem:[%s763 + $0x38] sm:$0xff] %v761
          $region89: #{tpu_custom_call.1} parent=83 // loop_footer
            %s458 = sadd.s32 1, %s454
          $region90: #{tpu_custom_call.1} parent=83 // loop_footer_branch
            %453 = sbr.rel target = $region86
          $region91: #{tpu_custom_call.1} parent=83 // loop_exit
            _
        $region84: #{tpu_custom_call.1} parent=59 // pred_fallthru
          _
        %s772 = smul.u32 %s34, 128
        %s773 = scalar_lea.vmem %s395, %s772 [#allocation4]
        %v774 = vld [vmem:[%s773] sm:$0xff]
        %v775 = vld [vmem:[%s773 + $0x8] sm:$0xff]
        %v776 = vld [vmem:[%s773 + $0x10] sm:$0xff]
        %v777 = vld [vmem:[%s773 + $0x18] sm:$0xff]
        %v778 = vld [vmem:[%s773 + $0x20] sm:$0xff]
        %v779 = vld [vmem:[%s773 + $0x28] sm:$0xff]
        %v780 = vld [vmem:[%s773 + $0x30] sm:$0xff]
        %v781 = vld [vmem:[%s773 + $0x38] sm:$0xff]
        %v782 = vld [vmem:[%s773 + $0x40] sm:$0xff]
        %v783 = vld [vmem:[%s773 + $0x48] sm:$0xff]
        %v784 = vld [vmem:[%s773 + $0x50] sm:$0xff]
        %v785 = vld [vmem:[%s773 + $0x58] sm:$0xff]
        %v786 = vld [vmem:[%s773 + $0x60] sm:$0xff]
        %v787 = vld [vmem:[%s773 + $0x68] sm:$0xff]
        %v788 = vld [vmem:[%s773 + $0x70] sm:$0xff]
        %v789 = vld [vmem:[%s773 + $0x78] sm:$0xff]
        %v790 = vpack.c.bf16 %v775, %v774
        %v791 = vpack.c.bf16 %v777, %v776
        %v792 = vpack.c.bf16 %v779, %v778
        %v793 = vpack.c.bf16 %v781, %v780
        %v794 = vpack.c.bf16 %v783, %v782
        %v795 = vpack.c.bf16 %v785, %v784
        %v796 = vpack.c.bf16 %v787, %v786
        %v797 = vpack.c.bf16 %v789, %v788
        %v798 = vld [vmem:[#allocation7] sm:$0xf]
        %v799 = vld [vmem:[#allocation7 + $0x4] sm:$0xf]
        %v800 = vld [vmem:[#allocation7 + $0x8] sm:$0xf]
        %v801 = vld [vmem:[#allocation7 + $0xc] sm:$0xf]
        %v802 = vld [vmem:[#allocation7 + $0x10] sm:$0xf]
        %v803 = vld [vmem:[#allocation7 + $0x14] sm:$0xf]
        %v804 = vld [vmem:[#allocation7 + $0x18] sm:$0xf]
        %v805 = vld [vmem:[#allocation7 + $0x1c] sm:$0xf]
        %v806 = vld [vmem:[#allocation7 + $0x20] sm:$0xf]
        %v807 = vld [vmem:[#allocation7 + $0x24] sm:$0xf]
        %v808 = vld [vmem:[#allocation7 + $0x28] sm:$0xf]
        %v809 = vld [vmem:[#allocation7 + $0x2c] sm:$0xf]
        %v810 = vld [vmem:[#allocation7 + $0x30] sm:$0xf]
        %v811 = vld [vmem:[#allocation7 + $0x34] sm:$0xf]
        %v812 = vld [vmem:[#allocation7 + $0x38] sm:$0xf]
        %v813 = vld [vmem:[#allocation7 + $0x3c] sm:$0xf]
        %v830 = vunpack.c.l.b16 %v798
        %v831 = vunpack.c.l.b16 %v799
        %v832 = vunpack.c.l.b16 %v800
        %v833 = vunpack.c.l.b16 %v801
        %v834 = vunpack.c.l.b16 %v802
        %v835 = vunpack.c.l.b16 %v803
        %v836 = vunpack.c.l.b16 %v804
        %v837 = vunpack.c.l.b16 %v805
        %v838 = vunpack.c.l.b16 %v806
        %v839 = vunpack.c.l.b16 %v807
        %v840 = vunpack.c.l.b16 %v808
        %v841 = vunpack.c.l.b16 %v809
        %v842 = vunpack.c.l.b16 %v810
        %v843 = vunpack.c.l.b16 %v811
        %v844 = vunpack.c.l.b16 %v812
        %v845 = vunpack.c.l.b16 %v813
        %v846 = vpack.c.b16 %v831, %v830
        %v847 = vpack.c.b16 %v833, %v832
        %v848 = vpack.c.b16 %v835, %v834
        %v849 = vpack.c.b16 %v837, %v836
        %v850 = vpack.c.b16 %v839, %v838
        %v851 = vpack.c.b16 %v841, %v840
        %v852 = vpack.c.b16 %v843, %v842
        %v853 = vpack.c.b16 %v845, %v844
        %862 = vmatprep.subr.bf16.mxu0 0
        %863 = vmatpush1.bf16.msra.mxu0 %v846
        %864 = vmatprep.subr.bf16.mxu0 0
        %865 = vmatpush1.bf16.msra.mxu0 %v847
        %866 = vmatprep.subr.bf16.mxu0 0
        %867 = vmatpush1.bf16.msra.mxu0 %v848
        %868 = vmatprep.subr.bf16.mxu0 0
        %869 = vmatpush1.bf16.msra.mxu0 %v849
        %870 = vmatprep.subr.bf16.mxu0 0
        %871 = vmatpush1.bf16.msra.mxu0 %v850
        %872 = vmatprep.subr.bf16.mxu0 0
        %873 = vmatpush1.bf16.msra.mxu0 %v851
        %874 = vmatprep.subr.bf16.mxu0 0
        %875 = vmatpush1.bf16.msra.mxu0 %v852
        %876 = vmatprep.subr.bf16.mxu0 0
        %877 = vmatpush1.bf16.msra.mxu0 %v853
        %878 = vmatprep.subr.bf16.mxu0 0
        %879 = vmatpush1.bf16.msra.mxu0 0
        %880 = vmatprep.subr.bf16.mxu0 0
        %881 = vmatpush1.bf16.msra.mxu0 0
        %882 = vmatprep.subr.bf16.mxu0 0
        %883 = vmatpush1.bf16.msra.mxu0 0
        %884 = vmatprep.subr.bf16.mxu0 0
        %885 = vmatpush1.bf16.msra.mxu0 0
        %886 = vmatprep.subr.bf16.mxu0 0
        %887 = vmatpush1.bf16.msra.mxu0 0
        %888 = vmatprep.subr.bf16.mxu0 0
        %889 = vmatpush1.bf16.msra.mxu0 0
        %890 = vmatprep.subr.bf16.mxu0 0
        %891 = vmatpush1.bf16.msra.mxu0 0
        %892 = vmatprep.subr.bf16.mxu0 0
        %893 = vmatpush1.bf16.msra.mxu0 0
        %894 = vmatprep.mubr.bf16.mxu0 0
        %895 = vmatmul.mubr.bf16.gmra.mrb[0].mxu0 %v790
        %v896 = vpop.f32.mrb[0].mxu0
        %v897 = vadd.f32 0.0, %v896
        %v898 = vpop.f32.mrb[0].mxu0
        %v899 = vpop.f32.mrb[0].mxu0
        %v900 = vadd.f32 0.0, %v899
        %v901 = vpop.f32.mrb[0].mxu0
        %902 = vmatprep.mubr.bf16.mxu0 0
        %903 = vmatmul.mubr.bf16.gmra.mrb[0].mxu0 %v791
        %v904 = vpop.f32.mrb[0].mxu0
        %v905 = vadd.f32 0.0, %v904
        %v906 = vpop.f32.mrb[0].mxu0
        %v907 = vpop.f32.mrb[0].mxu0
        %v908 = vadd.f32 0.0, %v907
        %v909 = vpop.f32.mrb[0].mxu0
        %910 = vmatprep.mubr.bf16.mxu0 0
        %911 = vmatmul.mubr.bf16.gmra.mrb[0].mxu0 %v792
        %v912 = vpop.f32.mrb[0].mxu0
        %v913 = vadd.f32 0.0, %v912
        %v914 = vpop.f32.mrb[0].mxu0
        %v915 = vpop.f32.mrb[0].mxu0
        %v916 = vadd.f32 0.0, %v915
        %v917 = vpop.f32.mrb[0].mxu0
        %918 = vmatprep.mubr.bf16.mxu0 0
        %919 = vmatmul.mubr.bf16.gmra.mrb[0].mxu0 %v793
        %v920 = vpop.f32.mrb[0].mxu0
        %v921 = vadd.f32 0.0, %v920
        %v922 = vpop.f32.mrb[0].mxu0
        %v923 = vpop.f32.mrb[0].mxu0
        %v924 = vadd.f32 0.0, %v923
        %v925 = vpop.f32.mrb[0].mxu0
        %926 = vmatprep.mubr.bf16.mxu0 0
        %927 = vmatmul.mubr.bf16.gmra.mrb[0].mxu0 %v794
        %v928 = vpop.f32.mrb[0].mxu0
        %v929 = vadd.f32 0.0, %v928
        %v930 = vpop.f32.mrb[0].mxu0
        %v931 = vpop.f32.mrb[0].mxu0
        %v932 = vadd.f32 0.0, %v931
        %v933 = vpop.f32.mrb[0].mxu0
        %934 = vmatprep.mubr.bf16.mxu0 0
        %935 = vmatmul.mubr.bf16.gmra.mrb[0].mxu0 %v795
        %v936 = vpop.f32.mrb[0].mxu0
        %v937 = vadd.f32 0.0, %v936
        %v938 = vpop.f32.mrb[0].mxu0
        %v939 = vpop.f32.mrb[0].mxu0
        %v940 = vadd.f32 0.0, %v939
        %v941 = vpop.f32.mrb[0].mxu0
        %942 = vmatprep.mubr.bf16.mxu0 0
        %943 = vmatmul.mubr.bf16.gmra.mrb[0].mxu0 %v796
        %v944 = vpop.f32.mrb[0].mxu0
        %v945 = vadd.f32 0.0, %v944
        %v946 = vpop.f32.mrb[0].mxu0
        %v947 = vpop.f32.mrb[0].mxu0
        %v948 = vadd.f32 0.0, %v947
        %v949 = vpop.f32.mrb[0].mxu0
        %950 = vmatprep.mubr.bf16.mxu0 0
        %951 = vmatmul.mubr.bf16.gmra.mrb[0].mxu0 %v797
        %v952 = vpop.f32.mrb[0].mxu0
        %v953 = vadd.f32 0.0, %v952
        %v954 = vpop.f32.mrb[0].mxu0
        %v955 = vpop.f32.mrb[0].mxu0
        %v956 = vadd.f32 0.0, %v955
        %v957 = vpop.f32.mrb[0].mxu0
        %958 = vdwg.mxu0
        %v959 = vpack.c.bf16 %v900, %v897
        %v960 = vpack.c.bf16 %v908, %v905
        %v961 = vpack.c.bf16 %v916, %v913
        %v962 = vpack.c.bf16 %v924, %v921
        %v963 = vpack.c.bf16 %v932, %v929
        %v964 = vpack.c.bf16 %v940, %v937
        %v965 = vpack.c.bf16 %v948, %v945
        %v966 = vpack.c.bf16 %v956, %v953
        %v967 = vld [vmem:[#allocation2] sm:$0xff]
        %v968 = vld [vmem:[#allocation2 + $0x8] sm:$0xff]
        %v969 = vld [vmem:[#allocation2 + $0x10] sm:$0xff]
        %v970 = vld [vmem:[#allocation2 + $0x18] sm:$0xff]
        %v971 = vld [vmem:[#allocation2 + $0x20] sm:$0xff]
        %v972 = vld [vmem:[#allocation2 + $0x28] sm:$0xff]
        %v973 = vld [vmem:[#allocation2 + $0x30] sm:$0xff]
        %v974 = vld [vmem:[#allocation2 + $0x38] sm:$0xff]
        %v975 = vld [vmem:[#allocation2 + $0x40] sm:$0xff]
        %v976 = vld [vmem:[#allocation2 + $0x48] sm:$0xff]
        %v977 = vld [vmem:[#allocation2 + $0x50] sm:$0xff]
        %v978 = vld [vmem:[#allocation2 + $0x58] sm:$0xff]
        %v979 = vld [vmem:[#allocation2 + $0x60] sm:$0xff]
        %v980 = vld [vmem:[#allocation2 + $0x68] sm:$0xff]
        %v981 = vld [vmem:[#allocation2 + $0x70] sm:$0xff]
        %v982 = vld [vmem:[#allocation2 + $0x78] sm:$0xff]
        %983 = vmatprep.subr.bf16.mxu0 0
        %984 = vmatpush1.bf16.xpose.msra.mxu0 %v967
        %985 = vmatprep.subr.bf16.mxu0 0
        %986 = vmatpush1.bf16.xpose.msra.mxu0 %v968
        %987 = vmatprep.subr.bf16.mxu0 0
        %988 = vmatpush1.bf16.xpose.msra.mxu0 %v969
        %989 = vmatprep.subr.bf16.mxu0 0
        %990 = vmatpush1.bf16.xpose.msra.mxu0 %v970
        %991 = vmatprep.subr.bf16.mxu0 0
        %992 = vmatpush1.bf16.xpose.msra.mxu0 %v971
        %993 = vmatprep.subr.bf16.mxu0 0
        %994 = vmatpush1.bf16.xpose.msra.mxu0 %v972
        %995 = vmatprep.subr.bf16.mxu0 0
        %996 = vmatpush1.bf16.xpose.msra.mxu0 %v973
        %997 = vmatprep.subr.bf16.mxu0 0
        %998 = vmatpush1.bf16.xpose.msra.mxu0 %v974
        %999 = vmatprep.subr.bf16.mxu0 0
        %1000 = vmatpush1.bf16.xpose.msra.mxu0 %v975
        %1001 = vmatprep.subr.bf16.mxu0 0
        %1002 = vmatpush1.bf16.xpose.msra.mxu0 %v976
        %1003 = vmatprep.subr.bf16.mxu0 0
        %1004 = vmatpush1.bf16.xpose.msra.mxu0 %v977
        %1005 = vmatprep.subr.bf16.mxu0 0
        %1006 = vmatpush1.bf16.xpose.msra.mxu0 %v978
        %1007 = vmatprep.subr.bf16.mxu0 0
        %1008 = vmatpush1.bf16.xpose.msra.mxu0 %v979
        %1009 = vmatprep.subr.bf16.mxu0 0
        %1010 = vmatpush1.bf16.xpose.msra.mxu0 %v980
        %1011 = vmatprep.subr.bf16.mxu0 0
        %1012 = vmatpush1.bf16.xpose.msra.mxu0 %v981
        %1013 = vmatprep.subr.bf16.mxu0 0
        %1014 = vmatpush1.bf16.xpose.msra.mxu0 %v982
        %1015 = vmatprep.mubr.bf16.mxu0 0
        %1016 = vmatmul.mubr.bf16.gmra.mrb[0].mxu0 %v959
        %v1017 = vpop.f32.mrb[0].mxu0
        %v1018 = vadd.f32 0.0, %v1017
        %v1019 = vpop.f32.mrb[0].mxu0
        %v1020 = vadd.f32 0.0, %v1019
        %v1021 = vpop.f32.mrb[0].mxu0
        %v1022 = vadd.f32 0.0, %v1021
        %v1023 = vpop.f32.mrb[0].mxu0
        %v1024 = vadd.f32 0.0, %v1023
        %1025 = vmatprep.mubr.bf16.mxu0 0
        %1026 = vmatmul.mubr.bf16.gmra.mrb[0].mxu0 %v960
        %v1027 = vpop.f32.mrb[0].mxu0
        %v1028 = vadd.f32 0.0, %v1027
        %v1029 = vpop.f32.mrb[0].mxu0
        %v1030 = vadd.f32 0.0, %v1029
        %v1031 = vpop.f32.mrb[0].mxu0
        %v1032 = vadd.f32 0.0, %v1031
        %v1033 = vpop.f32.mrb[0].mxu0
        %v1034 = vadd.f32 0.0, %v1033
        %1035 = vmatprep.mubr.bf16.mxu0 0
        %1036 = vmatmul.mubr.bf16.gmra.mrb[0].mxu0 %v961
        %v1037 = vpop.f32.mrb[0].mxu0
        %v1038 = vadd.f32 0.0, %v1037
        %v1039 = vpop.f32.mrb[0].mxu0
        %v1040 = vadd.f32 0.0, %v1039
        %v1041 = vpop.f32.mrb[0].mxu0
        %v1042 = vadd.f32 0.0, %v1041
        %v1043 = vpop.f32.mrb[0].mxu0
        %v1044 = vadd.f32 0.0, %v1043
        %1045 = vmatprep.mubr.bf16.mxu0 0
        %1046 = vmatmul.mubr.bf16.gmra.mrb[0].mxu0 %v962
        %v1047 = vpop.f32.mrb[0].mxu0
        %v1048 = vadd.f32 0.0, %v1047
        %v1049 = vpop.f32.mrb[0].mxu0
        %v1050 = vadd.f32 0.0, %v1049
        %v1051 = vpop.f32.mrb[0].mxu0
        %v1052 = vadd.f32 0.0, %v1051
        %v1053 = vpop.f32.mrb[0].mxu0
        %v1054 = vadd.f32 0.0, %v1053
        %1055 = vmatprep.mubr.bf16.mxu0 0
        %1056 = vmatmul.mubr.bf16.gmra.mrb[0].mxu0 %v963
        %v1057 = vpop.f32.mrb[0].mxu0
        %v1058 = vadd.f32 0.0, %v1057
        %v1059 = vpop.f32.mrb[0].mxu0
        %v1060 = vadd.f32 0.0, %v1059
        %v1061 = vpop.f32.mrb[0].mxu0
        %v1062 = vadd.f32 0.0, %v1061
        %v1063 = vpop.f32.mrb[0].mxu0
        %v1064 = vadd.f32 0.0, %v1063
        %1065 = vmatprep.mubr.bf16.mxu0 0
        %1066 = vmatmul.mubr.bf16.gmra.mrb[0].mxu0 %v964
        %v1067 = vpop.f32.mrb[0].mxu0
        %v1068 = vadd.f32 0.0, %v1067
        %v1069 = vpop.f32.mrb[0].mxu0
        %v1070 = vadd.f32 0.0, %v1069
        %v1071 = vpop.f32.mrb[0].mxu0
        %v1072 = vadd.f32 0.0, %v1071
        %v1073 = vpop.f32.mrb[0].mxu0
        %v1074 = vadd.f32 0.0, %v1073
        %1075 = vmatprep.mubr.bf16.mxu0 0
        %1076 = vmatmul.mubr.bf16.gmra.mrb[0].mxu0 %v965
        %v1077 = vpop.f32.mrb[0].mxu0
        %v1078 = vadd.f32 0.0, %v1077
        %v1079 = vpop.f32.mrb[0].mxu0
        %v1080 = vadd.f32 0.0, %v1079
        %v1081 = vpop.f32.mrb[0].mxu0
        %v1082 = vadd.f32 0.0, %v1081
        %v1083 = vpop.f32.mrb[0].mxu0
        %v1084 = vadd.f32 0.0, %v1083
        %1085 = vmatprep.mubr.bf16.mxu0 0
        %1086 = vmatmul.mubr.bf16.gmra.mrb[0].mxu0 %v966
        %v1087 = vpop.f32.mrb[0].mxu0
        %v1088 = vadd.f32 0.0, %v1087
        %v1089 = vpop.f32.mrb[0].mxu0
        %v1090 = vadd.f32 0.0, %v1089
        %v1091 = vpop.f32.mrb[0].mxu0
        %v1092 = vadd.f32 0.0, %v1091
        %v1093 = vpop.f32.mrb[0].mxu0
        %v1094 = vadd.f32 0.0, %v1093
        %1095 = vdwg.mxu0
        %v1096 = vmax.f32 %v1018, %v1020
        %v1097 = vmax.f32 %v1022, %v1024
        %v1098 = vmax.f32 %v1028, %v1030
        %v1099 = vmax.f32 %v1032, %v1034
        %v1100 = vmax.f32 %v1038, %v1040
        %v1101 = vmax.f32 %v1042, %v1044
        %v1102 = vmax.f32 %v1048, %v1050
        %v1103 = vmax.f32 %v1052, %v1054
        %v1104 = vmax.f32 %v1058, %v1060
        %v1105 = vmax.f32 %v1062, %v1064
        %v1106 = vmax.f32 %v1068, %v1070
        %v1107 = vmax.f32 %v1072, %v1074
        %v1108 = vmax.f32 %v1078, %v1080
        %v1109 = vmax.f32 %v1082, %v1084
        %v1110 = vmax.f32 %v1088, %v1090
        %v1111 = vmax.f32 %v1092, %v1094
        %1112 = vmax.xlane.f32.xlu0 %v1096
        %v1113 = vpop.xlane.xlu0 %1112
        %1114 = vmax.xlane.f32.xlu0 %v1097
        %v1115 = vpop.xlane.xlu0 %1114
        %1116 = vmax.xlane.f32.xlu0 %v1098
        %v1117 = vpop.xlane.xlu0 %1116
        %1118 = vmax.xlane.f32.xlu0 %v1099
        %v1119 = vpop.xlane.xlu0 %1118
        %1120 = vmax.xlane.f32.xlu0 %v1100
        %v1121 = vpop.xlane.xlu0 %1120
        %1122 = vmax.xlane.f32.xlu0 %v1101
        %v1123 = vpop.xlane.xlu0 %1122
        %1124 = vmax.xlane.f32.xlu0 %v1102
        %v1125 = vpop.xlane.xlu0 %1124
        %1126 = vmax.xlane.f32.xlu0 %v1103
        %v1127 = vpop.xlane.xlu0 %1126
        %1128 = vmax.xlane.f32.xlu0 %v1104
        %v1129 = vpop.xlane.xlu0 %1128
        %1130 = vmax.xlane.f32.xlu0 %v1105
        %v1131 = vpop.xlane.xlu0 %1130
        %1132 = vmax.xlane.f32.xlu0 %v1106
        %v1133 = vpop.xlane.xlu0 %1132
        %1134 = vmax.xlane.f32.xlu0 %v1107
        %v1135 = vpop.xlane.xlu0 %1134
        %1136 = vmax.xlane.f32.xlu0 %v1108
        %v1137 = vpop.xlane.xlu0 %1136
        %1138 = vmax.xlane.f32.xlu0 %v1109
        %v1139 = vpop.xlane.xlu0 %1138
        %1140 = vmax.xlane.f32.xlu0 %v1110
        %v1141 = vpop.xlane.xlu0 %1140
        %1142 = vmax.xlane.f32.xlu0 %v1111
        %v1143 = vpop.xlane.xlu0 %1142
        %v1144 = vsub.f32 %v1018, %v1113
        %v1145 = vsub.f32 %v1020, %v1113
        %v1146 = vsub.f32 %v1022, %v1115
        %v1147 = vsub.f32 %v1024, %v1115
        %v1148 = vsub.f32 %v1028, %v1117
        %v1149 = vsub.f32 %v1030, %v1117
        %v1150 = vsub.f32 %v1032, %v1119
        %v1151 = vsub.f32 %v1034, %v1119
        %v1152 = vsub.f32 %v1038, %v1121
        %v1153 = vsub.f32 %v1040, %v1121
        %v1154 = vsub.f32 %v1042, %v1123
        %v1155 = vsub.f32 %v1044, %v1123
        %v1156 = vsub.f32 %v1048, %v1125
        %v1157 = vsub.f32 %v1050, %v1125
        %v1158 = vsub.f32 %v1052, %v1127
        %v1159 = vsub.f32 %v1054, %v1127
        %v1160 = vsub.f32 %v1058, %v1129
        %v1161 = vsub.f32 %v1060, %v1129
        %v1162 = vsub.f32 %v1062, %v1131
        %v1163 = vsub.f32 %v1064, %v1131
        %v1164 = vsub.f32 %v1068, %v1133
        %v1165 = vsub.f32 %v1070, %v1133
        %v1166 = vsub.f32 %v1072, %v1135
        %v1167 = vsub.f32 %v1074, %v1135
        %v1168 = vsub.f32 %v1078, %v1137
        %v1169 = vsub.f32 %v1080, %v1137
        %v1170 = vsub.f32 %v1082, %v1139
        %v1171 = vsub.f32 %v1084, %v1139
        %v1172 = vsub.f32 %v1088, %v1141
        %v1173 = vsub.f32 %v1090, %v1141
        %v1174 = vsub.f32 %v1092, %v1143
        %v1175 = vsub.f32 %v1094, %v1143
        %v1176 = vmul.f32 %v1144, 1.442695
        %v1177 = vpow.pop %v1176
        %v1178 = vmul.f32 %v1145, 1.442695
        %v1179 = vpow.pop %v1178
        %v1180 = vmul.f32 %v1146, 1.442695
        %v1181 = vpow.pop %v1180
        %v1182 = vmul.f32 %v1147, 1.442695
        %v1183 = vpow.pop %v1182
        %v1184 = vmul.f32 %v1148, 1.442695
        %v1185 = vpow.pop %v1184
        %v1186 = vmul.f32 %v1149, 1.442695
        %v1187 = vpow.pop %v1186
        %v1188 = vmul.f32 %v1150, 1.442695
        %v1189 = vpow.pop %v1188
        %v1190 = vmul.f32 %v1151, 1.442695
        %v1191 = vpow.pop %v1190
        %v1192 = vmul.f32 %v1152, 1.442695
        %v1193 = vpow.pop %v1192
        %v1194 = vmul.f32 %v1153, 1.442695
        %v1195 = vpow.pop %v1194
        %v1196 = vmul.f32 %v1154, 1.442695
        %v1197 = vpow.pop %v1196
        %v1198 = vmul.f32 %v1155, 1.442695
        %v1199 = vpow.pop %v1198
        %v1200 = vmul.f32 %v1156, 1.442695
        %v1201 = vpow.pop %v1200
        %v1202 = vmul.f32 %v1157, 1.442695
        %v1203 = vpow.pop %v1202
        %v1204 = vmul.f32 %v1158, 1.442695
        %v1205 = vpow.pop %v1204
        %v1206 = vmul.f32 %v1159, 1.442695
        %v1207 = vpow.pop %v1206
        %v1208 = vmul.f32 %v1160, 1.442695
        %v1209 = vpow.pop %v1208
        %v1210 = vmul.f32 %v1161, 1.442695
        %v1211 = vpow.pop %v1210
        %v1212 = vmul.f32 %v1162, 1.442695
        %v1213 = vpow.pop %v1212
        %v1214 = vmul.f32 %v1163, 1.442695
        %v1215 = vpow.pop %v1214
        %v1216 = vmul.f32 %v1164, 1.442695
        %v1217 = vpow.pop %v1216
        %v1218 = vmul.f32 %v1165, 1.442695
        %v1219 = vpow.pop %v1218
        %v1220 = vmul.f32 %v1166, 1.442695
        %v1221 = vpow.pop %v1220
        %v1222 = vmul.f32 %v1167, 1.442695
        %v1223 = vpow.pop %v1222
        %v1224 = vmul.f32 %v1168, 1.442695
        %v1225 = vpow.pop %v1224
        %v1226 = vmul.f32 %v1169, 1.442695
        %v1227 = vpow.pop %v1226
        %v1228 = vmul.f32 %v1170, 1.442695
        %v1229 = vpow.pop %v1228
        %v1230 = vmul.f32 %v1171, 1.442695
        %v1231 = vpow.pop %v1230
        %v1232 = vmul.f32 %v1172, 1.442695
        %v1233 = vpow.pop %v1232
        %v1234 = vmul.f32 %v1173, 1.442695
        %v1235 = vpow.pop %v1234
        %v1236 = vmul.f32 %v1174, 1.442695
        %v1237 = vpow.pop %v1236
        %v1238 = vmul.f32 %v1175, 1.442695
        %v1239 = vpow.pop %v1238
        %v1240 = vadd.f32 %v1177, %v1179
        %v1241 = vadd.f32 %v1181, %v1183
        %v1242 = vadd.f32 %v1185, %v1187
        %v1243 = vadd.f32 %v1189, %v1191
        %v1244 = vadd.f32 %v1193, %v1195
        %v1245 = vadd.f32 %v1197, %v1199
        %v1246 = vadd.f32 %v1201, %v1203
        %v1247 = vadd.f32 %v1205, %v1207
        %v1248 = vadd.f32 %v1209, %v1211
        %v1249 = vadd.f32 %v1213, %v1215
        %v1250 = vadd.f32 %v1217, %v1219
        %v1251 = vadd.f32 %v1221, %v1223
        %v1252 = vadd.f32 %v1225, %v1227
        %v1253 = vadd.f32 %v1229, %v1231
        %v1254 = vadd.f32 %v1233, %v1235
        %v1255 = vadd.f32 %v1237, %v1239
        %1256 = vadd.xlane.f32.xlu0 %v1240
        %v1257 = vpop.xlane.xlu0 %1256
        %1258 = vadd.xlane.f32.xlu0 %v1241
        %v1259 = vpop.xlane.xlu0 %1258
        %1260 = vadd.xlane.f32.xlu0 %v1242
        %v1261 = vpop.xlane.xlu0 %1260
        %1262 = vadd.xlane.f32.xlu0 %v1243
        %v1263 = vpop.xlane.xlu0 %1262
        %1264 = vadd.xlane.f32.xlu0 %v1244
        %v1265 = vpop.xlane.xlu0 %1264
        %1266 = vadd.xlane.f32.xlu0 %v1245
        %v1267 = vpop.xlane.xlu0 %1266
        %1268 = vadd.xlane.f32.xlu0 %v1246
        %v1269 = vpop.xlane.xlu0 %1268
        %1270 = vadd.xlane.f32.xlu0 %v1247
        %v1271 = vpop.xlane.xlu0 %1270
        %1272 = vadd.xlane.f32.xlu0 %v1248
        %v1273 = vpop.xlane.xlu0 %1272
        %1274 = vadd.xlane.f32.xlu0 %v1249
        %v1275 = vpop.xlane.xlu0 %1274
        %1276 = vadd.xlane.f32.xlu0 %v1250
        %v1277 = vpop.xlane.xlu0 %1276
        %1278 = vadd.xlane.f32.xlu0 %v1251
        %v1279 = vpop.xlane.xlu0 %1278
        %1280 = vadd.xlane.f32.xlu0 %v1252
        %v1281 = vpop.xlane.xlu0 %1280
        %1282 = vadd.xlane.f32.xlu0 %v1253
        %v1283 = vpop.xlane.xlu0 %1282
        %1284 = vadd.xlane.f32.xlu0 %v1254
        %v1285 = vpop.xlane.xlu0 %1284
        %1286 = vadd.xlane.f32.xlu0 %v1255
        %v1287 = vpop.xlane.xlu0 %1286
        %v1288 = vrcp.pop %v1257
        %v1289 = vrcp.pop %v1259
        %v1290 = vrcp.pop %v1261
        %v1291 = vrcp.pop %v1263
        %v1292 = vrcp.pop %v1265
        %v1293 = vrcp.pop %v1267
        %v1294 = vrcp.pop %v1269
        %v1295 = vrcp.pop %v1271
        %v1296 = vrcp.pop %v1273
        %v1297 = vrcp.pop %v1275
        %v1298 = vrcp.pop %v1277
        %v1299 = vrcp.pop %v1279
        %v1300 = vrcp.pop %v1281
        %v1301 = vrcp.pop %v1283
        %v1302 = vrcp.pop %v1285
        %v1303 = vrcp.pop %v1287
        %s1304 = sshra.s32 %s772, 4
        %s1305 = sand.u32 %s772, 15
        %s1306 = smul.addr %s1304, 8
        %s1307 = scalar_lea.vmem [#allocation3], %s1306
        %v1308 = vld [vmem:[%s1307] sm:$0xff]
        %v1309 = vld [vmem:[%s1307 + $0x8] sm:$0xff]
        %v1310 = vld [vmem:[%s1307 + $0x10] sm:$0xff]
        %v1311 = vld [vmem:[%s1307 + $0x18] sm:$0xff]
        %v1312 = vld [vmem:[%s1307 + $0x20] sm:$0xff]
        %v1313 = vld [vmem:[%s1307 + $0x28] sm:$0xff]
        %v1314 = vld [vmem:[%s1307 + $0x30] sm:$0xff]
        %v1315 = vld [vmem:[%s1307 + $0x38] sm:$0xff]
        %v1316 = vunpack.c.l.bf16 %v1308
        %v1317 = vunpack.c.h.bf16 %v1308
        %v1318 = vunpack.c.l.bf16 %v1309
        %v1319 = vunpack.c.h.bf16 %v1309
        %v1320 = vunpack.c.l.bf16 %v1310
        %v1321 = vunpack.c.h.bf16 %v1310
        %v1322 = vunpack.c.l.bf16 %v1311
        %v1323 = vunpack.c.h.bf16 %v1311
        %v1324 = vunpack.c.l.bf16 %v1312
        %v1325 = vunpack.c.h.bf16 %v1312
        %v1326 = vunpack.c.l.bf16 %v1313
        %v1327 = vunpack.c.h.bf16 %v1313
        %v1328 = vunpack.c.l.bf16 %v1314
        %v1329 = vunpack.c.h.bf16 %v1314
        %v1330 = vunpack.c.l.bf16 %v1315
        %v1331 = vunpack.c.h.bf16 %v1315
        %v1332 = vmul.f32 %v1316, %v1288
        %v1333 = vmul.f32 %v1317, %v1289
        %v1334 = vmul.f32 %v1318, %v1290
        %v1335 = vmul.f32 %v1319, %v1291
        %v1336 = vmul.f32 %v1320, %v1292
        %v1337 = vmul.f32 %v1321, %v1293
        %v1338 = vmul.f32 %v1322, %v1294
        %v1339 = vmul.f32 %v1323, %v1295
        %v1340 = vmul.f32 %v1324, %v1296
        %v1341 = vmul.f32 %v1325, %v1297
        %v1342 = vmul.f32 %v1326, %v1298
        %v1343 = vmul.f32 %v1327, %v1299
        %v1344 = vmul.f32 %v1328, %v1300
        %v1345 = vmul.f32 %v1329, %v1301
        %v1346 = vmul.f32 %v1330, %v1302
        %v1347 = vmul.f32 %v1331, %v1303
        %v1348 = vpack.c.bf16 %v1333, %v1332
        %v1349 = vpack.c.bf16 %v1335, %v1334
        %v1350 = vpack.c.bf16 %v1337, %v1336
        %v1351 = vpack.c.bf16 %v1339, %v1338
        %v1352 = vpack.c.bf16 %v1341, %v1340
        %v1353 = vpack.c.bf16 %v1343, %v1342
        %v1354 = vpack.c.bf16 %v1345, %v1344
        %v1355 = vpack.c.bf16 %v1347, %v1346
        %v1356 = vpack.c.bf16 %v1181, %v1177
        %v1357 = vpack.c.bf16 %v1183, %v1179
        %v1358 = vpack.c.bf16 %v1189, %v1185
        %v1359 = vpack.c.bf16 %v1191, %v1187
        %v1360 = vpack.c.bf16 %v1197, %v1193
        %v1361 = vpack.c.bf16 %v1199, %v1195
        %v1362 = vpack.c.bf16 %v1205, %v1201
        %v1363 = vpack.c.bf16 %v1207, %v1203
        %v1364 = vpack.c.bf16 %v1213, %v1209
        %v1365 = vpack.c.bf16 %v1215, %v1211
        %v1366 = vpack.c.bf16 %v1221, %v1217
        %v1367 = vpack.c.bf16 %v1223, %v1219
        %v1368 = vpack.c.bf16 %v1229, %v1225
        %v1369 = vpack.c.bf16 %v1231, %v1227
        %v1370 = vpack.c.bf16 %v1237, %v1233
        %v1371 = vpack.c.bf16 %v1239, %v1235
        %1372 = vxpose.xlu0.c.b16.start [1/8] %v1356, 128
        %1373 = vxpose.xlu0.c.b16.cont [2/8] %v1358, 128
        %1374 = vxpose.xlu0.c.b16.cont [3/8] %v1360, 128
        %1375 = vxpose.xlu0.c.b16.cont [4/8] %v1362, 128
        %1376 = vxpose.xlu0.c.b16.cont [5/8] %v1364, 128
        %1377 = vxpose.xlu0.c.b16.cont [6/8] %v1366, 128
        %1378 = vxpose.xlu0.c.b16.cont [7/8] %v1368, 128
        %1379 = vxpose.xlu0.c.b16.end [8/8] %v1370, 128
        %v1380 = vpop.trf.xlu0
        %v1381 = vpop.trf.xlu0
        %v1382 = vpop.trf.xlu0
        %v1383 = vpop.trf.xlu0
        %v1384 = vpop.trf.xlu0
        %v1385 = vpop.trf.xlu0
        %v1386 = vpop.trf.xlu0
        %v1387 = vpop.trf.xlu0
        %1388 = vxpose.xlu0.c.b16.start [1/8] %v1357, 128
        %1389 = vxpose.xlu0.c.b16.cont [2/8] %v1359, 128
        %1390 = vxpose.xlu0.c.b16.cont [3/8] %v1361, 128
        %1391 = vxpose.xlu0.c.b16.cont [4/8] %v1363, 128
        %1392 = vxpose.xlu0.c.b16.cont [5/8] %v1365, 128
        %1393 = vxpose.xlu0.c.b16.cont [6/8] %v1367, 128
        %1394 = vxpose.xlu0.c.b16.cont [7/8] %v1369, 128
        %1395 = vxpose.xlu0.c.b16.end [8/8] %v1371, 128
        %v1396 = vpop.trf.xlu0
        %v1397 = vpop.trf.xlu0
        %v1398 = vpop.trf.xlu0
        %v1399 = vpop.trf.xlu0
        %v1400 = vpop.trf.xlu0
        %v1401 = vpop.trf.xlu0
        %v1402 = vpop.trf.xlu0
        %v1403 = vpop.trf.xlu0
        %1404 = vmatprep.subr.bf16.mxu0 0
        %1405 = vmatpush1.bf16.msra.mxu0 %v1348
        %1406 = vmatprep.subr.bf16.mxu0 0
        %1407 = vmatpush1.bf16.msra.mxu0 %v1349
        %1408 = vmatprep.subr.bf16.mxu0 0
        %1409 = vmatpush1.bf16.msra.mxu0 %v1350
        %1410 = vmatprep.subr.bf16.mxu0 0
        %1411 = vmatpush1.bf16.msra.mxu0 %v1351
        %1412 = vmatprep.subr.bf16.mxu0 0
        %1413 = vmatpush1.bf16.msra.mxu0 %v1352
        %1414 = vmatprep.subr.bf16.mxu0 0
        %1415 = vmatpush1.bf16.msra.mxu0 %v1353
        %1416 = vmatprep.subr.bf16.mxu0 0
        %1417 = vmatpush1.bf16.msra.mxu0 %v1354
        %1418 = vmatprep.subr.bf16.mxu0 0
        %1419 = vmatpush1.bf16.msra.mxu0 %v1355
        %1420 = vmatprep.subr.bf16.mxu0 0
        %1421 = vmatpush1.bf16.msra.mxu0 0
        %1422 = vmatprep.subr.bf16.mxu0 0
        %1423 = vmatpush1.bf16.msra.mxu0 0
        %1424 = vmatprep.subr.bf16.mxu0 0
        %1425 = vmatpush1.bf16.msra.mxu0 0
        %1426 = vmatprep.subr.bf16.mxu0 0
        %1427 = vmatpush1.bf16.msra.mxu0 0
        %1428 = vmatprep.subr.bf16.mxu0 0
        %1429 = vmatpush1.bf16.msra.mxu0 0
        %1430 = vmatprep.subr.bf16.mxu0 0
        %1431 = vmatpush1.bf16.msra.mxu0 0
        %1432 = vmatprep.subr.bf16.mxu0 0
        %1433 = vmatpush1.bf16.msra.mxu0 0
        %1434 = vmatprep.subr.bf16.mxu0 0
        %1435 = vmatpush1.bf16.msra.mxu0 0
        %1436 = vmatprep.mubr.bf16.mxu0 0
        %1437 = vmatmul.mubr.bf16.gmra.mrb[0].mxu0 %v1380
        %v1438 = vpop.f32.mrb[0].mxu0
        %v1439 = vadd.f32 0.0, %v1438
        %v1440 = vpop.f32.mrb[0].mxu0
        %v1441 = vpop.f32.mrb[0].mxu0
        %v1442 = vadd.f32 0.0, %v1441
        %v1443 = vpop.f32.mrb[0].mxu0
        %1444 = vmatprep.mubr.bf16.mxu0 0
        %1445 = vmatmul.mubr.bf16.gmra.mrb[0].mxu0 %v1381
        %v1446 = vpop.f32.mrb[0].mxu0
        %v1447 = vadd.f32 0.0, %v1446
        %v1448 = vpop.f32.mrb[0].mxu0
        %v1449 = vpop.f32.mrb[0].mxu0
        %v1450 = vadd.f32 0.0, %v1449
        %v1451 = vpop.f32.mrb[0].mxu0
        %1452 = vmatprep.mubr.bf16.mxu0 0
        %1453 = vmatmul.mubr.bf16.gmra.mrb[0].mxu0 %v1382
        %v1454 = vpop.f32.mrb[0].mxu0
        %v1455 = vadd.f32 0.0, %v1454
        %v1456 = vpop.f32.mrb[0].mxu0
        %v1457 = vpop.f32.mrb[0].mxu0
        %v1458 = vadd.f32 0.0, %v1457
        %v1459 = vpop.f32.mrb[0].mxu0
        %1460 = vmatprep.mubr.bf16.mxu0 0
        %1461 = vmatmul.mubr.bf16.gmra.mrb[0].mxu0 %v1383
        %v1462 = vpop.f32.mrb[0].mxu0
        %v1463 = vadd.f32 0.0, %v1462
        %v1464 = vpop.f32.mrb[0].mxu0
        %v1465 = vpop.f32.mrb[0].mxu0
        %v1466 = vadd.f32 0.0, %v1465
        %v1467 = vpop.f32.mrb[0].mxu0
        %1468 = vmatprep.mubr.bf16.mxu0 0
        %1469 = vmatmul.mubr.bf16.gmra.mrb[0].mxu0 %v1384
        %v1470 = vpop.f32.mrb[0].mxu0
        %v1471 = vadd.f32 0.0, %v1470
        %v1472 = vpop.f32.mrb[0].mxu0
        %v1473 = vpop.f32.mrb[0].mxu0
        %v1474 = vadd.f32 0.0, %v1473
        %v1475 = vpop.f32.mrb[0].mxu0
        %1476 = vmatprep.mubr.bf16.mxu0 0
        %1477 = vmatmul.mubr.bf16.gmra.mrb[0].mxu0 %v1385
        %v1478 = vpop.f32.mrb[0].mxu0
        %v1479 = vadd.f32 0.0, %v1478
        %v1480 = vpop.f32.mrb[0].mxu0
        %v1481 = vpop.f32.mrb[0].mxu0
        %v1482 = vadd.f32 0.0, %v1481
        %v1483 = vpop.f32.mrb[0].mxu0
        %1484 = vmatprep.mubr.bf16.mxu0 0
        %1485 = vmatmul.mubr.bf16.gmra.mrb[0].mxu0 %v1386
        %v1486 = vpop.f32.mrb[0].mxu0
        %v1487 = vadd.f32 0.0, %v1486
        %v1488 = vpop.f32.mrb[0].mxu0
        %v1489 = vpop.f32.mrb[0].mxu0
        %v1490 = vadd.f32 0.0, %v1489
        %v1491 = vpop.f32.mrb[0].mxu0
        %1492 = vmatprep.mubr.bf16.mxu0 0
        %1493 = vmatmul.mubr.bf16.gmra.mrb[0].mxu0 %v1387
        %v1494 = vpop.f32.mrb[0].mxu0
        %v1495 = vadd.f32 0.0, %v1494
        %v1496 = vpop.f32.mrb[0].mxu0
        %v1497 = vpop.f32.mrb[0].mxu0
        %v1498 = vadd.f32 0.0, %v1497
        %v1499 = vpop.f32.mrb[0].mxu0
        %1500 = vmatprep.mubr.bf16.mxu0 0
        %1501 = vmatmul.mubr.bf16.gmra.mrb[0].mxu0 %v1396
        %v1502 = vpop.f32.mrb[0].mxu0
        %v1503 = vadd.f32 0.0, %v1502
        %v1504 = vpop.f32.mrb[0].mxu0
        %v1505 = vpop.f32.mrb[0].mxu0
        %v1506 = vadd.f32 0.0, %v1505
        %v1507 = vpop.f32.mrb[0].mxu0
        %1508 = vmatprep.mubr.bf16.mxu0 0
        %1509 = vmatmul.mubr.bf16.gmra.mrb[0].mxu0 %v1397
        %v1510 = vpop.f32.mrb[0].mxu0
        %v1511 = vadd.f32 0.0, %v1510
        %v1512 = vpop.f32.mrb[0].mxu0
        %v1513 = vpop.f32.mrb[0].mxu0
        %v1514 = vadd.f32 0.0, %v1513
        %v1515 = vpop.f32.mrb[0].mxu0
        %1516 = vmatprep.mubr.bf16.mxu0 0
        %1517 = vmatmul.mubr.bf16.gmra.mrb[0].mxu0 %v1398
        %v1518 = vpop.f32.mrb[0].mxu0
        %v1519 = vadd.f32 0.0, %v1518
        %v1520 = vpop.f32.mrb[0].mxu0
        %v1521 = vpop.f32.mrb[0].mxu0
        %v1522 = vadd.f32 0.0, %v1521
        %v1523 = vpop.f32.mrb[0].mxu0
        %1524 = vmatprep.mubr.bf16.mxu0 0
        %1525 = vmatmul.mubr.bf16.gmra.mrb[0].mxu0 %v1399
        %v1526 = vpop.f32.mrb[0].mxu0
        %v1527 = vadd.f32 0.0, %v1526
        %v1528 = vpop.f32.mrb[0].mxu0
        %v1529 = vpop.f32.mrb[0].mxu0
        %v1530 = vadd.f32 0.0, %v1529
        %v1531 = vpop.f32.mrb[0].mxu0
        %1532 = vmatprep.mubr.bf16.mxu0 0
        %1533 = vmatmul.mubr.bf16.gmra.mrb[0].mxu0 %v1400
        %v1534 = vpop.f32.mrb[0].mxu0
        %v1535 = vadd.f32 0.0, %v1534
        %v1536 = vpop.f32.mrb[0].mxu0
        %v1537 = vpop.f32.mrb[0].mxu0
        %v1538 = vadd.f32 0.0, %v1537
        %v1539 = vpop.f32.mrb[0].mxu0
        %1540 = vmatprep.mubr.bf16.mxu0 0
        %1541 = vmatmul.mubr.bf16.gmra.mrb[0].mxu0 %v1401
        %v1542 = vpop.f32.mrb[0].mxu0
        %v1543 = vadd.f32 0.0, %v1542
        %v1544 = vpop.f32.mrb[0].mxu0
        %v1545 = vpop.f32.mrb[0].mxu0
        %v1546 = vadd.f32 0.0, %v1545
        %v1547 = vpop.f32.mrb[0].mxu0
        %1548 = vmatprep.mubr.bf16.mxu0 0
        %1549 = vmatmul.mubr.bf16.gmra.mrb[0].mxu0 %v1402
        %v1550 = vpop.f32.mrb[0].mxu0
        %v1551 = vadd.f32 0.0, %v1550
        %v1552 = vpop.f32.mrb[0].mxu0
        %v1553 = vpop.f32.mrb[0].mxu0
        %v1554 = vadd.f32 0.0, %v1553
        %v1555 = vpop.f32.mrb[0].mxu0
        %1556 = vmatprep.mubr.bf16.mxu0 0
        %1557 = vmatmul.mubr.bf16.gmra.mrb[0].mxu0 %v1403
        %v1558 = vpop.f32.mrb[0].mxu0
        %v1559 = vadd.f32 0.0, %v1558
        %v1560 = vpop.f32.mrb[0].mxu0
        %v1561 = vpop.f32.mrb[0].mxu0
        %v1562 = vadd.f32 0.0, %v1561
        %v1563 = vpop.f32.mrb[0].mxu0
        %1564 = vdwg.mxu0
        %v1565 = vld [vmem:[%s447] sm:$0xff]
        %v1566 = vld [vmem:[%s447 + $0x8] sm:$0xff]
        %v1567 = vld [vmem:[%s447 + $0x10] sm:$0xff]
        %v1568 = vld [vmem:[%s447 + $0x18] sm:$0xff]
        %v1569 = vld [vmem:[%s447 + $0x20] sm:$0xff]
        %v1570 = vld [vmem:[%s447 + $0x28] sm:$0xff]
        %v1571 = vld [vmem:[%s447 + $0x30] sm:$0xff]
        %v1572 = vld [vmem:[%s447 + $0x38] sm:$0xff]
        %v1573 = vld [vmem:[%s447 + $0x40] sm:$0xff]
        %v1574 = vld [vmem:[%s447 + $0x48] sm:$0xff]
        %v1575 = vld [vmem:[%s447 + $0x50] sm:$0xff]
        %v1576 = vld [vmem:[%s447 + $0x58] sm:$0xff]
        %v1577 = vld [vmem:[%s447 + $0x60] sm:$0xff]
        %v1578 = vld [vmem:[%s447 + $0x68] sm:$0xff]
        %v1579 = vld [vmem:[%s447 + $0x70] sm:$0xff]
        %v1580 = vld [vmem:[%s447 + $0x78] sm:$0xff]
        %v1581 = vld [vmem:[%s447 + $0x80] sm:$0xff]
        %v1582 = vld [vmem:[%s447 + $0x88] sm:$0xff]
        %v1583 = vld [vmem:[%s447 + $0x90] sm:$0xff]
        %v1584 = vld [vmem:[%s447 + $0x98] sm:$0xff]
        %v1585 = vld [vmem:[%s447 + $0xa0] sm:$0xff]
        %v1586 = vld [vmem:[%s447 + $0xa8] sm:$0xff]
        %v1587 = vld [vmem:[%s447 + $0xb0] sm:$0xff]
        %v1588 = vld [vmem:[%s447 + $0xb8] sm:$0xff]
        %v1589 = vld [vmem:[%s447 + $0xc0] sm:$0xff]
        %v1590 = vld [vmem:[%s447 + $0xc8] sm:$0xff]
        %v1591 = vld [vmem:[%s447 + $0xd0] sm:$0xff]
        %v1592 = vld [vmem:[%s447 + $0xd8] sm:$0xff]
        %v1593 = vld [vmem:[%s447 + $0xe0] sm:$0xff]
        %v1594 = vld [vmem:[%s447 + $0xe8] sm:$0xff]
        %v1595 = vld [vmem:[%s447 + $0xf0] sm:$0xff]
        %v1596 = vld [vmem:[%s447 + $0xf8] sm:$0xff]
        %v1597 = vadd.f32 %v1565, %v1439
        %v1598 = vadd.f32 %v1566, %v1442
        %v1599 = vadd.f32 %v1567, %v1447
        %v1600 = vadd.f32 %v1568, %v1450
        %v1601 = vadd.f32 %v1569, %v1455
        %v1602 = vadd.f32 %v1570, %v1458
        %v1603 = vadd.f32 %v1571, %v1463
        %v1604 = vadd.f32 %v1572, %v1466
        %v1605 = vadd.f32 %v1573, %v1471
        %v1606 = vadd.f32 %v1574, %v1474
        %v1607 = vadd.f32 %v1575, %v1479
        %v1608 = vadd.f32 %v1576, %v1482
        %v1609 = vadd.f32 %v1577, %v1487
        %v1610 = vadd.f32 %v1578, %v1490
        %v1611 = vadd.f32 %v1579, %v1495
        %v1612 = vadd.f32 %v1580, %v1498
        %v1613 = vadd.f32 %v1581, %v1503
        %v1614 = vadd.f32 %v1582, %v1506
        %v1615 = vadd.f32 %v1583, %v1511
        %v1616 = vadd.f32 %v1584, %v1514
        %v1617 = vadd.f32 %v1585, %v1519
        %v1618 = vadd.f32 %v1586, %v1522
        %v1619 = vadd.f32 %v1587, %v1527
        %v1620 = vadd.f32 %v1588, %v1530
        %v1621 = vadd.f32 %v1589, %v1535
        %v1622 = vadd.f32 %v1590, %v1538
        %v1623 = vadd.f32 %v1591, %v1543
        %v1624 = vadd.f32 %v1592, %v1546
        %v1625 = vadd.f32 %v1593, %v1551
        %v1626 = vadd.f32 %v1594, %v1554
        %v1627 = vadd.f32 %v1595, %v1559
        %v1628 = vadd.f32 %v1596, %v1562
        %1629 = vst [vmem:[%s447] sm:$0xff] %v1597
        %1630 = vst [vmem:[%s447 + $0x8] sm:$0xff] %v1598
        %1631 = vst [vmem:[%s447 + $0x10] sm:$0xff] %v1599
        %1632 = vst [vmem:[%s447 + $0x18] sm:$0xff] %v1600
        %1633 = vst [vmem:[%s447 + $0x20] sm:$0xff] %v1601
        %1634 = vst [vmem:[%s447 + $0x28] sm:$0xff] %v1602
        %1635 = vst [vmem:[%s447 + $0x30] sm:$0xff] %v1603
        %1636 = vst [vmem:[%s447 + $0x38] sm:$0xff] %v1604
        %1637 = vst [vmem:[%s447 + $0x40] sm:$0xff] %v1605
        %1638 = vst [vmem:[%s447 + $0x48] sm:$0xff] %v1606
        %1639 = vst [vmem:[%s447 + $0x50] sm:$0xff] %v1607
        %1640 = vst [vmem:[%s447 + $0x58] sm:$0xff] %v1608
        %1641 = vst [vmem:[%s447 + $0x60] sm:$0xff] %v1609
        %1642 = vst [vmem:[%s447 + $0x68] sm:$0xff] %v1610
        %1643 = vst [vmem:[%s447 + $0x70] sm:$0xff] %v1611
        %1644 = vst [vmem:[%s447 + $0x78] sm:$0xff] %v1612
        %1645 = vst [vmem:[%s447 + $0x80] sm:$0xff] %v1613
        %1646 = vst [vmem:[%s447 + $0x88] sm:$0xff] %v1614
        %1647 = vst [vmem:[%s447 + $0x90] sm:$0xff] %v1615
        %1648 = vst [vmem:[%s447 + $0x98] sm:$0xff] %v1616
        %1649 = vst [vmem:[%s447 + $0xa0] sm:$0xff] %v1617
        %1650 = vst [vmem:[%s447 + $0xa8] sm:$0xff] %v1618
        %1651 = vst [vmem:[%s447 + $0xb0] sm:$0xff] %v1619
        %1652 = vst [vmem:[%s447 + $0xb8] sm:$0xff] %v1620
        %1653 = vst [vmem:[%s447 + $0xc0] sm:$0xff] %v1621
        %1654 = vst [vmem:[%s447 + $0xc8] sm:$0xff] %v1622
        %1655 = vst [vmem:[%s447 + $0xd0] sm:$0xff] %v1623
        %1656 = vst [vmem:[%s447 + $0xd8] sm:$0xff] %v1624
        %1657 = vst [vmem:[%s447 + $0xe0] sm:$0xff] %v1625
        %1658 = vst [vmem:[%s447 + $0xe8] sm:$0xff] %v1626
        %1659 = vst [vmem:[%s447 + $0xf0] sm:$0xff] %v1627
        %1660 = vst [vmem:[%s447 + $0xf8] sm:$0xff] %v1628
        %p1661 = scmp.eq.s32.totalorder %s34, 1
        // Predicated region
        $region92: #{tpu_custom_call.1} parent=59 // pred_check
          %p1662 = pneg %p1661
        $region93: #{tpu_custom_call.1} parent=59 // pred_check_branch
          %1664 = sbr.rel (%p1662) target = $region95
        $region94: #{tpu_custom_call.1} parent=59 // pred_region
          loop: start=0, step=1, limit=2
          $region96: #{tpu_custom_call.1} parent=94 // loop_pre_header
            _
          $region97: #{tpu_custom_call.1} parent=94 // loop_header
            %s1666 = sphi 0, %s1670
            %p1667 = scmp.ge.s32.totalorder %s1666, 2
          $region98: #{tpu_custom_call.1} parent=94 // loop_header_branch
            %1669 = sbr.rel (%p1667) target = $region102
          $region99: #{tpu_custom_call.1} parent=94 // loop_body
            %s1671 = smul.u32 %s1666, 128
            %s1672 = scalar_lea.vmem %s447, %s1671 [#allocation13]
            %v1673 = vld [vmem:[%s1672] sm:$0xff]
            %v1674 = vld [vmem:[%s1672 + $0x8] sm:$0xff]
            %v1675 = vld [vmem:[%s1672 + $0x10] sm:$0xff]
            %v1676 = vld [vmem:[%s1672 + $0x18] sm:$0xff]
            %v1677 = vld [vmem:[%s1672 + $0x20] sm:$0xff]
            %v1678 = vld [vmem:[%s1672 + $0x28] sm:$0xff]
            %v1679 = vld [vmem:[%s1672 + $0x30] sm:$0xff]
            %v1680 = vld [vmem:[%s1672 + $0x38] sm:$0xff]
            %v1681 = vld [vmem:[%s1672 + $0x40] sm:$0xff]
            %v1682 = vld [vmem:[%s1672 + $0x48] sm:$0xff]
            %v1683 = vld [vmem:[%s1672 + $0x50] sm:$0xff]
            %v1684 = vld [vmem:[%s1672 + $0x58] sm:$0xff]
            %v1685 = vld [vmem:[%s1672 + $0x60] sm:$0xff]
            %v1686 = vld [vmem:[%s1672 + $0x68] sm:$0xff]
            %v1687 = vld [vmem:[%s1672 + $0x70] sm:$0xff]
            %v1688 = vld [vmem:[%s1672 + $0x78] sm:$0xff]
            %v1689 = vld [vmem:[%s4] sm:$0x1]
            %v1691 = vlaneseq
            %v1692 = vshrl.u32 %v1691, 7
            %v1693 = vsub.s32 0, %v1692
            %v1694 = vrot.slane %v1689, %v1693
            %v1696 = vmul.f32 %v1673, %v1694
            %v1697 = vmul.f32 %v1674, %v1694
            %v1698 = vmul.f32 %v1675, %v1694
            %v1699 = vmul.f32 %v1676, %v1694
            %v1700 = vmul.f32 %v1677, %v1694
            %v1701 = vmul.f32 %v1678, %v1694
            %v1702 = vmul.f32 %v1679, %v1694
            %v1703 = vmul.f32 %v1680, %v1694
            %v1704 = vmul.f32 %v1681, %v1694
            %v1705 = vmul.f32 %v1682, %v1694
            %v1706 = vmul.f32 %v1683, %v1694
            %v1707 = vmul.f32 %v1684, %v1694
            %v1708 = vmul.f32 %v1685, %v1694
            %v1709 = vmul.f32 %v1686, %v1694
            %v1710 = vmul.f32 %v1687, %v1694
            %v1711 = vmul.f32 %v1688, %v1694
            %v1712 = vld [vmem:[%s5] sm:$0x1]
            %v1714 = vlaneseq
            %v1715 = vshrl.u32 %v1714, 7
            %v1716 = vsub.s32 0, %v1715
            %v1717 = vrot.slane %v1712, %v1716
            %v1719 = vadd.f32 %v1696, %v1717
            %v1720 = vadd.f32 %v1697, %v1717
            %v1721 = vadd.f32 %v1698, %v1717
            %v1722 = vadd.f32 %v1699, %v1717
            %v1723 = vadd.f32 %v1700, %v1717
            %v1724 = vadd.f32 %v1701, %v1717
            %v1725 = vadd.f32 %v1702, %v1717
            %v1726 = vadd.f32 %v1703, %v1717
            %v1727 = vadd.f32 %v1704, %v1717
            %v1728 = vadd.f32 %v1705, %v1717
            %v1729 = vadd.f32 %v1706, %v1717
            %v1730 = vadd.f32 %v1707, %v1717
            %v1731 = vadd.f32 %v1708, %v1717
            %v1732 = vadd.f32 %v1709, %v1717
            %v1733 = vadd.f32 %v1710, %v1717
            %v1734 = vadd.f32 %v1711, %v1717
            %v1735 = vpack.c.bf16 %v1720, %v1719
            %v1736 = vpack.c.bf16 %v1722, %v1721
            %v1737 = vpack.c.bf16 %v1724, %v1723
            %v1738 = vpack.c.bf16 %v1726, %v1725
            %v1739 = vpack.c.bf16 %v1728, %v1727
            %v1740 = vpack.c.bf16 %v1730, %v1729
            %v1741 = vpack.c.bf16 %v1732, %v1731
            %v1742 = vpack.c.bf16 %v1734, %v1733
            %v1743 = vld [vmem:[#allocation10] sm:$0xff]
            %v1744 = vld [vmem:[#allocation10 + $0x8] sm:$0xff]
            %v1745 = vld [vmem:[#allocation10 + $0x10] sm:$0xff]
            %v1746 = vld [vmem:[#allocation10 + $0x18] sm:$0xff]
            %v1747 = vld [vmem:[#allocation10 + $0x20] sm:$0xff]
            %v1748 = vld [vmem:[#allocation10 + $0x28] sm:$0xff]
            %v1749 = vld [vmem:[#allocation10 + $0x30] sm:$0xff]
            %v1750 = vld [vmem:[#allocation10 + $0x38] sm:$0xff]
            %v1751 = vld [vmem:[#allocation10 + $0x40] sm:$0xff]
            %v1752 = vld [vmem:[#allocation10 + $0x48] sm:$0xff]
            %v1753 = vld [vmem:[#allocation10 + $0x50] sm:$0xff]
            %v1754 = vld [vmem:[#allocation10 + $0x58] sm:$0xff]
            %v1755 = vld [vmem:[#allocation10 + $0x60] sm:$0xff]
            %v1756 = vld [vmem:[#allocation10 + $0x68] sm:$0xff]
            %v1757 = vld [vmem:[#allocation10 + $0x70] sm:$0xff]
            %v1758 = vld [vmem:[#allocation10 + $0x78] sm:$0xff]
            %v1759 = vld [vmem:[#allocation10 + $0x80] sm:$0xff]
            %v1760 = vld [vmem:[#allocation10 + $0x88] sm:$0xff]
            %v1761 = vld [vmem:[#allocation10 + $0x90] sm:$0xff]
            %v1762 = vld [vmem:[#allocation10 + $0x98] sm:$0xff]
            %v1763 = vld [vmem:[#allocation10 + $0xa0] sm:$0xff]
            %v1764 = vld [vmem:[#allocation10 + $0xa8] sm:$0xff]
            %v1765 = vld [vmem:[#allocation10 + $0xb0] sm:$0xff]
            %v1766 = vld [vmem:[#allocation10 + $0xb8] sm:$0xff]
            %v1767 = vld [vmem:[#allocation10 + $0xc0] sm:$0xff]
            %v1768 = vld [vmem:[#allocation10 + $0xc8] sm:$0xff]
            %v1769 = vld [vmem:[#allocation10 + $0xd0] sm:$0xff]
            %v1770 = vld [vmem:[#allocation10 + $0xd8] sm:$0xff]
            %v1771 = vld [vmem:[#allocation10 + $0xe0] sm:$0xff]
            %v1772 = vld [vmem:[#allocation10 + $0xe8] sm:$0xff]
            %v1773 = vld [vmem:[#allocation10 + $0xf0] sm:$0xff]
            %v1774 = vld [vmem:[#allocation10 + $0xf8] sm:$0xff]
            %v1807 = vunpack.c.l.b16 %v1743
            %v1808 = vunpack.c.h.b16 %v1743
            %v1809 = vunpack.c.l.b16 %v1744
            %v1810 = vunpack.c.h.b16 %v1744
            %v1811 = vunpack.c.l.b16 %v1745
            %v1812 = vunpack.c.h.b16 %v1745
            %v1813 = vunpack.c.l.b16 %v1746
            %v1814 = vunpack.c.h.b16 %v1746
            %v1815 = vunpack.c.l.b16 %v1747
            %v1816 = vunpack.c.h.b16 %v1747
            %v1817 = vunpack.c.l.b16 %v1748
            %v1818 = vunpack.c.h.b16 %v1748
            %v1819 = vunpack.c.l.b16 %v1749
            %v1820 = vunpack.c.h.b16 %v1749
            %v1821 = vunpack.c.l.b16 %v1750
            %v1822 = vunpack.c.h.b16 %v1750
            %v1823 = vunpack.c.l.b16 %v1751
            %v1824 = vunpack.c.h.b16 %v1751
            %v1825 = vunpack.c.l.b16 %v1752
            %v1826 = vunpack.c.h.b16 %v1752
            %v1827 = vunpack.c.l.b16 %v1753
            %v1828 = vunpack.c.h.b16 %v1753
            %v1829 = vunpack.c.l.b16 %v1754
            %v1830 = vunpack.c.h.b16 %v1754
            %v1831 = vunpack.c.l.b16 %v1755
            %v1832 = vunpack.c.h.b16 %v1755
            %v1833 = vunpack.c.l.b16 %v1756
            %v1834 = vunpack.c.h.b16 %v1756
            %v1835 = vunpack.c.l.b16 %v1757
            %v1836 = vunpack.c.h.b16 %v1757
            %v1837 = vunpack.c.l.b16 %v1758
            %v1838 = vunpack.c.h.b16 %v1758
            %v1839 = vunpack.c.l.b16 %v1759
            %v1840 = vunpack.c.h.b16 %v1759
            %v1841 = vunpack.c.l.b16 %v1760
            %v1842 = vunpack.c.h.b16 %v1760
            %v1843 = vunpack.c.l.b16 %v1761
            %v1844 = vunpack.c.h.b16 %v1761
            %v1845 = vunpack.c.l.b16 %v1762
            %v1846 = vunpack.c.h.b16 %v1762
            %v1847 = vunpack.c.l.b16 %v1763
            %v1848 = vunpack.c.h.b16 %v1763
            %v1849 = vunpack.c.l.b16 %v1764
            %v1850 = vunpack.c.h.b16 %v1764
            %v1851 = vunpack.c.l.b16 %v1765
            %v1852 = vunpack.c.h.b16 %v1765
            %v1853 = vunpack.c.l.b16 %v1766
            %v1854 = vunpack.c.h.b16 %v1766
            %v1855 = vunpack.c.l.b16 %v1767
            %v1856 = vunpack.c.h.b16 %v1767
            %v1857 = vunpack.c.l.b16 %v1768
            %v1858 = vunpack.c.h.b16 %v1768
            %v1859 = vunpack.c.l.b16 %v1769
            %v1860 = vunpack.c.h.b16 %v1769
            %v1861 = vunpack.c.l.b16 %v1770
            %v1862 = vunpack.c.h.b16 %v1770
            %v1863 = vunpack.c.l.b16 %v1771
            %v1864 = vunpack.c.h.b16 %v1771
            %v1865 = vunpack.c.l.b16 %v1772
            %v1866 = vunpack.c.h.b16 %v1772
            %v1867 = vunpack.c.l.b16 %v1773
            %v1868 = vunpack.c.h.b16 %v1773
            %v1869 = vunpack.c.l.b16 %v1774
            %v1870 = vunpack.c.h.b16 %v1774
            %v1871 = vpack.c.b16 %v1811, %v1807
            %v1872 = vpack.c.b16 %v1812, %v1808
            %v1873 = vpack.c.b16 %v1813, %v1809
            %v1874 = vpack.c.b16 %v1814, %v1810
            %v1875 = vpack.c.b16 %v1819, %v1815
            %v1876 = vpack.c.b16 %v1820, %v1816
            %v1877 = vpack.c.b16 %v1821, %v1817
            %v1878 = vpack.c.b16 %v1822, %v1818
            %v1879 = vpack.c.b16 %v1827, %v1823
            %v1880 = vpack.c.b16 %v1828, %v1824
            %v1881 = vpack.c.b16 %v1829, %v1825
            %v1882 = vpack.c.b16 %v1830, %v1826
            %v1883 = vpack.c.b16 %v1835, %v1831
            %v1884 = vpack.c.b16 %v1836, %v1832
            %v1885 = vpack.c.b16 %v1837, %v1833
            %v1886 = vpack.c.b16 %v1838, %v1834
            %v1887 = vpack.c.b16 %v1843, %v1839
            %v1888 = vpack.c.b16 %v1844, %v1840
            %v1889 = vpack.c.b16 %v1845, %v1841
            %v1890 = vpack.c.b16 %v1846, %v1842
            %v1891 = vpack.c.b16 %v1851, %v1847
            %v1892 = vpack.c.b16 %v1852, %v1848
            %v1893 = vpack.c.b16 %v1853, %v1849
            %v1894 = vpack.c.b16 %v1854, %v1850
            %v1895 = vpack.c.b16 %v1859, %v1855
            %v1896 = vpack.c.b16 %v1860, %v1856
            %v1897 = vpack.c.b16 %v1861, %v1857
            %v1898 = vpack.c.b16 %v1862, %v1858
            %v1899 = vpack.c.b16 %v1867, %v1863
            %v1900 = vpack.c.b16 %v1868, %v1864
            %v1901 = vpack.c.b16 %v1869, %v1865
            %v1902 = vpack.c.b16 %v1870, %v1866
            %1935 = vmatprep.subr.bf16.mxu0 %v1872
            %1936 = vmatpush1.bf16.msra.mxu0 %v1871
            %1937 = vmatprep.subr.bf16.mxu0 %v1876
            %1938 = vmatpush1.bf16.msra.mxu0 %v1875
            %1939 = vmatprep.subr.bf16.mxu0 %v1880
            %1940 = vmatpush1.bf16.msra.mxu0 %v1879
            %1941 = vmatprep.subr.bf16.mxu0 %v1884
            %1942 = vmatpush1.bf16.msra.mxu0 %v1883
            %1943 = vmatprep.subr.bf16.mxu0 %v1888
            %1944 = vmatpush1.bf16.msra.mxu0 %v1887
            %1945 = vmatprep.subr.bf16.mxu0 %v1892
            %1946 = vmatpush1.bf16.msra.mxu0 %v1891
            %1947 = vmatprep.subr.bf16.mxu0 %v1896
            %1948 = vmatpush1.bf16.msra.mxu0 %v1895
            %1949 = vmatprep.subr.bf16.mxu0 %v1900
            %1950 = vmatpush1.bf16.msra.mxu0 %v1899
            %1951 = vmatprep.subr.bf16.mxu0 0
            %1952 = vmatpush1.bf16.msra.mxu0 0
            %1953 = vmatprep.subr.bf16.mxu0 0
            %1954 = vmatpush1.bf16.msra.mxu0 0
            %1955 = vmatprep.subr.bf16.mxu0 0
            %1956 = vmatpush1.bf16.msra.mxu0 0
            %1957 = vmatprep.subr.bf16.mxu0 0
            %1958 = vmatpush1.bf16.msra.mxu0 0
            %1959 = vmatprep.subr.bf16.mxu0 0
            %1960 = vmatpush1.bf16.msra.mxu0 0
            %1961 = vmatprep.subr.bf16.mxu0 0
            %1962 = vmatpush1.bf16.msra.mxu0 0
            %1963 = vmatprep.subr.bf16.mxu0 0
            %1964 = vmatpush1.bf16.msra.mxu0 0
            %1965 = vmatprep.subr.bf16.mxu0 0
            %1966 = vmatpush1.bf16.msra.mxu0 0
            %1967 = vmatprep.mubr.bf16.mxu0 0
            %1968 = vmatmul.mubr.bf16.gmra.mrb[0].mxu0 %v1735
            %v1969 = vpop.f32.mrb[0].mxu0
            %v1970 = vadd.f32 0.0, %v1969
            %v1971 = vpop.f32.mrb[0].mxu0
            %v1972 = vadd.f32 0.0, %v1971
            %v1973 = vpop.f32.mrb[0].mxu0
            %v1974 = vadd.f32 0.0, %v1973
            %v1975 = vpop.f32.mrb[0].mxu0
            %v1976 = vadd.f32 0.0, %v1975
            %1977 = vmatprep.mubr.bf16.mxu0 0
            %1978 = vmatmul.mubr.bf16.gmra.mrb[0].mxu0 %v1736
            %v1979 = vpop.f32.mrb[0].mxu0
            %v1980 = vadd.f32 0.0, %v1979
            %v1981 = vpop.f32.mrb[0].mxu0
            %v1982 = vadd.f32 0.0, %v1981
            %v1983 = vpop.f32.mrb[0].mxu0
            %v1984 = vadd.f32 0.0, %v1983
            %v1985 = vpop.f32.mrb[0].mxu0
            %v1986 = vadd.f32 0.0, %v1985
            %1987 = vmatprep.mubr.bf16.mxu0 0
            %1988 = vmatmul.mubr.bf16.gmra.mrb[0].mxu0 %v1737
            %v1989 = vpop.f32.mrb[0].mxu0
            %v1990 = vadd.f32 0.0, %v1989
            %v1991 = vpop.f32.mrb[0].mxu0
            %v1992 = vadd.f32 0.0, %v1991
            %v1993 = vpop.f32.mrb[0].mxu0
            %v1994 = vadd.f32 0.0, %v1993
            %v1995 = vpop.f32.mrb[0].mxu0
            %v1996 = vadd.f32 0.0, %v1995
            %1997 = vmatprep.mubr.bf16.mxu0 0
            %1998 = vmatmul.mubr.bf16.gmra.mrb[0].mxu0 %v1738
            %v1999 = vpop.f32.mrb[0].mxu0
            %v2000 = vadd.f32 0.0, %v1999
            %v2001 = vpop.f32.mrb[0].mxu0
            %v2002 = vadd.f32 0.0, %v2001
            %v2003 = vpop.f32.mrb[0].mxu0
            %v2004 = vadd.f32 0.0, %v2003
            %v2005 = vpop.f32.mrb[0].mxu0
            %v2006 = vadd.f32 0.0, %v2005
            %2007 = vmatprep.mubr.bf16.mxu0 0
            %2008 = vmatmul.mubr.bf16.gmra.mrb[0].mxu0 %v1739
            %v2009 = vpop.f32.mrb[0].mxu0
            %v2010 = vadd.f32 0.0, %v2009
            %v2011 = vpop.f32.mrb[0].mxu0
            %v2012 = vadd.f32 0.0, %v2011
            %v2013 = vpop.f32.mrb[0].mxu0
            %v2014 = vadd.f32 0.0, %v2013
            %v2015 = vpop.f32.mrb[0].mxu0
            %v2016 = vadd.f32 0.0, %v2015
            %2017 = vmatprep.mubr.bf16.mxu0 0
            %2018 = vmatmul.mubr.bf16.gmra.mrb[0].mxu0 %v1740
            %v2019 = vpop.f32.mrb[0].mxu0
            %v2020 = vadd.f32 0.0, %v2019
            %v2021 = vpop.f32.mrb[0].mxu0
            %v2022 = vadd.f32 0.0, %v2021
            %v2023 = vpop.f32.mrb[0].mxu0
            %v2024 = vadd.f32 0.0, %v2023
            %v2025 = vpop.f32.mrb[0].mxu0
            %v2026 = vadd.f32 0.0, %v2025
            %2027 = vmatprep.mubr.bf16.mxu0 0
            %2028 = vmatmul.mubr.bf16.gmra.mrb[0].mxu0 %v1741
            %v2029 = vpop.f32.mrb[0].mxu0
            %v2030 = vadd.f32 0.0, %v2029
            %v2031 = vpop.f32.mrb[0].mxu0
            %v2032 = vadd.f32 0.0, %v2031
            %v2033 = vpop.f32.mrb[0].mxu0
            %v2034 = vadd.f32 0.0, %v2033
            %v2035 = vpop.f32.mrb[0].mxu0
            %v2036 = vadd.f32 0.0, %v2035
            %2037 = vmatprep.mubr.bf16.mxu0 0
            %2038 = vmatmul.mubr.bf16.gmra.mrb[0].mxu0 %v1742
            %v2039 = vpop.f32.mrb[0].mxu0
            %v2040 = vadd.f32 0.0, %v2039
            %v2041 = vpop.f32.mrb[0].mxu0
            %v2042 = vadd.f32 0.0, %v2041
            %v2043 = vpop.f32.mrb[0].mxu0
            %v2044 = vadd.f32 0.0, %v2043
            %v2045 = vpop.f32.mrb[0].mxu0
            %v2046 = vadd.f32 0.0, %v2045
            %2047 = vdwg.mxu0
            %2048 = vmatprep.subr.bf16.mxu0 %v1874
            %2049 = vmatpush1.bf16.msra.mxu0 %v1873
            %2050 = vmatprep.subr.bf16.mxu0 %v1878
            %2051 = vmatpush1.bf16.msra.mxu0 %v1877
            %2052 = vmatprep.subr.bf16.mxu0 %v1882
            %2053 = vmatpush1.bf16.msra.mxu0 %v1881
            %2054 = vmatprep.subr.bf16.mxu0 %v1886
            %2055 = vmatpush1.bf16.msra.mxu0 %v1885
            %2056 = vmatprep.subr.bf16.mxu0 %v1890
            %2057 = vmatpush1.bf16.msra.mxu0 %v1889
            %2058 = vmatprep.subr.bf16.mxu0 %v1894
            %2059 = vmatpush1.bf16.msra.mxu0 %v1893
            %2060 = vmatprep.subr.bf16.mxu0 %v1898
            %2061 = vmatpush1.bf16.msra.mxu0 %v1897
            %2062 = vmatprep.subr.bf16.mxu0 %v1902
            %2063 = vmatpush1.bf16.msra.mxu0 %v1901
            %2064 = vmatprep.subr.bf16.mxu0 0
            %2065 = vmatpush1.bf16.msra.mxu0 0
            %2066 = vmatprep.subr.bf16.mxu0 0
            %2067 = vmatpush1.bf16.msra.mxu0 0
            %2068 = vmatprep.subr.bf16.mxu0 0
            %2069 = vmatpush1.bf16.msra.mxu0 0
            %2070 = vmatprep.subr.bf16.mxu0 0
            %2071 = vmatpush1.bf16.msra.mxu0 0
            %2072 = vmatprep.subr.bf16.mxu0 0
            %2073 = vmatpush1.bf16.msra.mxu0 0
            %2074 = vmatprep.subr.bf16.mxu0 0
            %2075 = vmatpush1.bf16.msra.mxu0 0
            %2076 = vmatprep.subr.bf16.mxu0 0
            %2077 = vmatpush1.bf16.msra.mxu0 0
            %2078 = vmatprep.subr.bf16.mxu0 0
            %2079 = vmatpush1.bf16.msra.mxu0 0
            %2080 = vmatprep.mubr.bf16.mxu0 0
            %2081 = vmatmul.mubr.bf16.gmra.mrb[0].mxu0 %v1735
            %v2082 = vpop.f32.mrb[0].mxu0
            %v2083 = vadd.f32 0.0, %v2082
            %v2084 = vpop.f32.mrb[0].mxu0
            %v2085 = vadd.f32 0.0, %v2084
            %v2086 = vpop.f32.mrb[0].mxu0
            %v2087 = vadd.f32 0.0, %v2086
            %v2088 = vpop.f32.mrb[0].mxu0
            %v2089 = vadd.f32 0.0, %v2088
            %2090 = vmatprep.mubr.bf16.mxu0 0
            %2091 = vmatmul.mubr.bf16.gmra.mrb[0].mxu0 %v1736
            %v2092 = vpop.f32.mrb[0].mxu0
            %v2093 = vadd.f32 0.0, %v2092
            %v2094 = vpop.f32.mrb[0].mxu0
            %v2095 = vadd.f32 0.0, %v2094
            %v2096 = vpop.f32.mrb[0].mxu0
            %v2097 = vadd.f32 0.0, %v2096
            %v2098 = vpop.f32.mrb[0].mxu0
            %v2099 = vadd.f32 0.0, %v2098
            %2100 = vmatprep.mubr.bf16.mxu0 0
            %2101 = vmatmul.mubr.bf16.gmra.mrb[0].mxu0 %v1737
            %v2102 = vpop.f32.mrb[0].mxu0
            %v2103 = vadd.f32 0.0, %v2102
            %v2104 = vpop.f32.mrb[0].mxu0
            %v2105 = vadd.f32 0.0, %v2104
            %v2106 = vpop.f32.mrb[0].mxu0
            %v2107 = vadd.f32 0.0, %v2106
            %v2108 = vpop.f32.mrb[0].mxu0
            %v2109 = vadd.f32 0.0, %v2108
            %2110 = vmatprep.mubr.bf16.mxu0 0
            %2111 = vmatmul.mubr.bf16.gmra.mrb[0].mxu0 %v1738
            %v2112 = vpop.f32.mrb[0].mxu0
            %v2113 = vadd.f32 0.0, %v2112
            %v2114 = vpop.f32.mrb[0].mxu0
            %v2115 = vadd.f32 0.0, %v2114
            %v2116 = vpop.f32.mrb[0].mxu0
            %v2117 = vadd.f32 0.0, %v2116
            %v2118 = vpop.f32.mrb[0].mxu0
            %v2119 = vadd.f32 0.0, %v2118
            %2120 = vmatprep.mubr.bf16.mxu0 0
            %2121 = vmatmul.mubr.bf16.gmra.mrb[0].mxu0 %v1739
            %v2122 = vpop.f32.mrb[0].mxu0
            %v2123 = vadd.f32 0.0, %v2122
            %v2124 = vpop.f32.mrb[0].mxu0
            %v2125 = vadd.f32 0.0, %v2124
            %v2126 = vpop.f32.mrb[0].mxu0
            %v2127 = vadd.f32 0.0, %v2126
            %v2128 = vpop.f32.mrb[0].mxu0
            %v2129 = vadd.f32 0.0, %v2128
            %2130 = vmatprep.mubr.bf16.mxu0 0
            %2131 = vmatmul.mubr.bf16.gmra.mrb[0].mxu0 %v1740
            %v2132 = vpop.f32.mrb[0].mxu0
            %v2133 = vadd.f32 0.0, %v2132
            %v2134 = vpop.f32.mrb[0].mxu0
            %v2135 = vadd.f32 0.0, %v2134
            %v2136 = vpop.f32.mrb[0].mxu0
            %v2137 = vadd.f32 0.0, %v2136
            %v2138 = vpop.f32.mrb[0].mxu0
            %v2139 = vadd.f32 0.0, %v2138
            %2140 = vmatprep.mubr.bf16.mxu0 0
            %2141 = vmatmul.mubr.bf16.gmra.mrb[0].mxu0 %v1741
            %v2142 = vpop.f32.mrb[0].mxu0
            %v2143 = vadd.f32 0.0, %v2142
            %v2144 = vpop.f32.mrb[0].mxu0
            %v2145 = vadd.f32 0.0, %v2144
            %v2146 = vpop.f32.mrb[0].mxu0
            %v2147 = vadd.f32 0.0, %v2146
            %v2148 = vpop.f32.mrb[0].mxu0
            %v2149 = vadd.f32 0.0, %v2148
            %2150 = vmatprep.mubr.bf16.mxu0 0
            %2151 = vmatmul.mubr.bf16.gmra.mrb[0].mxu0 %v1742
            %v2152 = vpop.f32.mrb[0].mxu0
            %v2153 = vadd.f32 0.0, %v2152
            %v2154 = vpop.f32.mrb[0].mxu0
            %v2155 = vadd.f32 0.0, %v2154
            %v2156 = vpop.f32.mrb[0].mxu0
            %v2157 = vadd.f32 0.0, %v2156
            %v2158 = vpop.f32.mrb[0].mxu0
            %v2159 = vadd.f32 0.0, %v2158
            %2160 = vdwg.mxu0
            %vm2161 = vcmp.gt.f32.partialorder %v1970, 0.0
            %vm2162 = vcmp.gt.f32.partialorder %v1972, 0.0
            %vm2163 = vcmp.gt.f32.partialorder %v2083, 0.0
            %vm2164 = vcmp.gt.f32.partialorder %v2085, 0.0
            %vm2165 = vcmp.gt.f32.partialorder %v1974, 0.0
            %vm2166 = vcmp.gt.f32.partialorder %v1976, 0.0
            %vm2167 = vcmp.gt.f32.partialorder %v2087, 0.0
            %vm2168 = vcmp.gt.f32.partialorder %v2089, 0.0
            %vm2169 = vcmp.gt.f32.partialorder %v1980, 0.0
            %vm2170 = vcmp.gt.f32.partialorder %v1982, 0.0
            %vm2171 = vcmp.gt.f32.partialorder %v2093, 0.0
            %vm2172 = vcmp.gt.f32.partialorder %v2095, 0.0
            %vm2173 = vcmp.gt.f32.partialorder %v1984, 0.0
            %vm2174 = vcmp.gt.f32.partialorder %v1986, 0.0
            %vm2175 = vcmp.gt.f32.partialorder %v2097, 0.0
            %vm2176 = vcmp.gt.f32.partialorder %v2099, 0.0
            %vm2177 = vcmp.gt.f32.partialorder %v1990, 0.0
            %vm2178 = vcmp.gt.f32.partialorder %v1992, 0.0
            %vm2179 = vcmp.gt.f32.partialorder %v2103, 0.0
            %vm2180 = vcmp.gt.f32.partialorder %v2105, 0.0
            %vm2181 = vcmp.gt.f32.partialorder %v1994, 0.0
            %vm2182 = vcmp.gt.f32.partialorder %v1996, 0.0
            %vm2183 = vcmp.gt.f32.partialorder %v2107, 0.0
            %vm2184 = vcmp.gt.f32.partialorder %v2109, 0.0
            %vm2185 = vcmp.gt.f32.partialorder %v2000, 0.0
            %vm2186 = vcmp.gt.f32.partialorder %v2002, 0.0
            %vm2187 = vcmp.gt.f32.partialorder %v2113, 0.0
            %vm2188 = vcmp.gt.f32.partialorder %v2115, 0.0
            %vm2189 = vcmp.gt.f32.partialorder %v2004, 0.0
            %vm2190 = vcmp.gt.f32.partialorder %v2006, 0.0
            %vm2191 = vcmp.gt.f32.partialorder %v2117, 0.0
            %vm2192 = vcmp.gt.f32.partialorder %v2119, 0.0
            %vm2193 = vcmp.gt.f32.partialorder %v2010, 0.0
            %vm2194 = vcmp.gt.f32.partialorder %v2012, 0.0
            %vm2195 = vcmp.gt.f32.partialorder %v2123, 0.0
            %vm2196 = vcmp.gt.f32.partialorder %v2125, 0.0
            %vm2197 = vcmp.gt.f32.partialorder %v2014, 0.0
            %vm2198 = vcmp.gt.f32.partialorder %v2016, 0.0
            %vm2199 = vcmp.gt.f32.partialorder %v2127, 0.0
            %vm2200 = vcmp.gt.f32.partialorder %v2129, 0.0
            %vm2201 = vcmp.gt.f32.partialorder %v2020, 0.0
            %vm2202 = vcmp.gt.f32.partialorder %v2022, 0.0
            %vm2203 = vcmp.gt.f32.partialorder %v2133, 0.0
            %vm2204 = vcmp.gt.f32.partialorder %v2135, 0.0
            %vm2205 = vcmp.gt.f32.partialorder %v2024, 0.0
            %vm2206 = vcmp.gt.f32.partialorder %v2026, 0.0
            %vm2207 = vcmp.gt.f32.partialorder %v2137, 0.0
            %vm2208 = vcmp.gt.f32.partialorder %v2139, 0.0
            %vm2209 = vcmp.gt.f32.partialorder %v2030, 0.0
            %vm2210 = vcmp.gt.f32.partialorder %v2032, 0.0
            %vm2211 = vcmp.gt.f32.partialorder %v2143, 0.0
            %vm2212 = vcmp.gt.f32.partialorder %v2145, 0.0
            %vm2213 = vcmp.gt.f32.partialorder %v2034, 0.0
            %vm2214 = vcmp.gt.f32.partialorder %v2036, 0.0
            %vm2215 = vcmp.gt.f32.partialorder %v2147, 0.0
            %vm2216 = vcmp.gt.f32.partialorder %v2149, 0.0
            %vm2217 = vcmp.gt.f32.partialorder %v2040, 0.0
            %vm2218 = vcmp.gt.f32.partialorder %v2042, 0.0
            %vm2219 = vcmp.gt.f32.partialorder %v2153, 0.0
            %vm2220 = vcmp.gt.f32.partialorder %v2155, 0.0
            %vm2221 = vcmp.gt.f32.partialorder %v2044, 0.0
            %vm2222 = vcmp.gt.f32.partialorder %v2046, 0.0
            %vm2223 = vcmp.gt.f32.partialorder %v2157, 0.0
            %vm2224 = vcmp.gt.f32.partialorder %v2159, 0.0
            %v2225 = vmul.f32 %v1970, 0.2
            %v2226 = vmul.f32 %v1972, 0.2
            %v2227 = vmul.f32 %v2083, 0.2
            %v2228 = vmul.f32 %v2085, 0.2
            %v2229 = vmul.f32 %v1974, 0.2
            %v2230 = vmul.f32 %v1976, 0.2
            %v2231 = vmul.f32 %v2087, 0.2
            %v2232 = vmul.f32 %v2089, 0.2
            %v2233 = vmul.f32 %v1980, 0.2
            %v2234 = vmul.f32 %v1982, 0.2
            %v2235 = vmul.f32 %v2093, 0.2
            %v2236 = vmul.f32 %v2095, 0.2
            %v2237 = vmul.f32 %v1984, 0.2
            %v2238 = vmul.f32 %v1986, 0.2
            %v2239 = vmul.f32 %v2097, 0.2
            %v2240 = vmul.f32 %v2099, 0.2
            %v2241 = vmul.f32 %v1990, 0.2
            %v2242 = vmul.f32 %v1992, 0.2
            %v2243 = vmul.f32 %v2103, 0.2
            %v2244 = vmul.f32 %v2105, 0.2
            %v2245 = vmul.f32 %v1994, 0.2
            %v2246 = vmul.f32 %v1996, 0.2
            %v2247 = vmul.f32 %v2107, 0.2
            %v2248 = vmul.f32 %v2109, 0.2
            %v2249 = vmul.f32 %v2000, 0.2
            %v2250 = vmul.f32 %v2002, 0.2
            %v2251 = vmul.f32 %v2113, 0.2
            %v2252 = vmul.f32 %v2115, 0.2
            %v2253 = vmul.f32 %v2004, 0.2
            %v2254 = vmul.f32 %v2006, 0.2
            %v2255 = vmul.f32 %v2117, 0.2
            %v2256 = vmul.f32 %v2119, 0.2
            %v2257 = vmul.f32 %v2010, 0.2
            %v2258 = vmul.f32 %v2012, 0.2
            %v2259 = vmul.f32 %v2123, 0.2
            %v2260 = vmul.f32 %v2125, 0.2
            %v2261 = vmul.f32 %v2014, 0.2
            %v2262 = vmul.f32 %v2016, 0.2
            %v2263 = vmul.f32 %v2127, 0.2
            %v2264 = vmul.f32 %v2129, 0.2
            %v2265 = vmul.f32 %v2020, 0.2
            %v2266 = vmul.f32 %v2022, 0.2
            %v2267 = vmul.f32 %v2133, 0.2
            %v2268 = vmul.f32 %v2135, 0.2
            %v2269 = vmul.f32 %v2024, 0.2
            %v2270 = vmul.f32 %v2026, 0.2
            %v2271 = vmul.f32 %v2137, 0.2
            %v2272 = vmul.f32 %v2139, 0.2
            %v2273 = vmul.f32 %v2030, 0.2
            %v2274 = vmul.f32 %v2032, 0.2
            %v2275 = vmul.f32 %v2143, 0.2
            %v2276 = vmul.f32 %v2145, 0.2
            %v2277 = vmul.f32 %v2034, 0.2
            %v2278 = vmul.f32 %v2036, 0.2
            %v2279 = vmul.f32 %v2147, 0.2
            %v2280 = vmul.f32 %v2149, 0.2
            %v2281 = vmul.f32 %v2040, 0.2
            %v2282 = vmul.f32 %v2042, 0.2
            %v2283 = vmul.f32 %v2153, 0.2
            %v2284 = vmul.f32 %v2155, 0.2
            %v2285 = vmul.f32 %v2044, 0.2
            %v2286 = vmul.f32 %v2046, 0.2
            %v2287 = vmul.f32 %v2157, 0.2
            %v2288 = vmul.f32 %v2159, 0.2
            %v2289 = vsel %vm2161, %v1970, %v2225
            %v2290 = vsel %vm2162, %v1972, %v2226
            %v2291 = vsel %vm2163, %v2083, %v2227
            %v2292 = vsel %vm2164, %v2085, %v2228
            %v2293 = vsel %vm2165, %v1974, %v2229
            %v2294 = vsel %vm2166, %v1976, %v2230
            %v2295 = vsel %vm2167, %v2087, %v2231
            %v2296 = vsel %vm2168, %v2089, %v2232
            %v2297 = vsel %vm2169, %v1980, %v2233
            %v2298 = vsel %vm2170, %v1982, %v2234
            %v2299 = vsel %vm2171, %v2093, %v2235
            %v2300 = vsel %vm2172, %v2095, %v2236
            %v2301 = vsel %vm2173, %v1984, %v2237
            %v2302 = vsel %vm2174, %v1986, %v2238
            %v2303 = vsel %vm2175, %v2097, %v2239
            %v2304 = vsel %vm2176, %v2099, %v2240
            %v2305 = vsel %vm2177, %v1990, %v2241
            %v2306 = vsel %vm2178, %v1992, %v2242
            %v2307 = vsel %vm2179, %v2103, %v2243
            %v2308 = vsel %vm2180, %v2105, %v2244
            %v2309 = vsel %vm2181, %v1994, %v2245
            %v2310 = vsel %vm2182, %v1996, %v2246
            %v2311 = vsel %vm2183, %v2107, %v2247
            %v2312 = vsel %vm2184, %v2109, %v2248
            %v2313 = vsel %vm2185, %v2000, %v2249
            %v2314 = vsel %vm2186, %v2002, %v2250
            %v2315 = vsel %vm2187, %v2113, %v2251
            %v2316 = vsel %vm2188, %v2115, %v2252
            %v2317 = vsel %vm2189, %v2004, %v2253
            %v2318 = vsel %vm2190, %v2006, %v2254
            %v2319 = vsel %vm2191, %v2117, %v2255
            %v2320 = vsel %vm2192, %v2119, %v2256
            %v2321 = vsel %vm2193, %v2010, %v2257
            %v2322 = vsel %vm2194, %v2012, %v2258
            %v2323 = vsel %vm2195, %v2123, %v2259
            %v2324 = vsel %vm2196, %v2125, %v2260
            %v2325 = vsel %vm2197, %v2014, %v2261
            %v2326 = vsel %vm2198, %v2016, %v2262
            %v2327 = vsel %vm2199, %v2127, %v2263
            %v2328 = vsel %vm2200, %v2129, %v2264
            %v2329 = vsel %vm2201, %v2020, %v2265
            %v2330 = vsel %vm2202, %v2022, %v2266
            %v2331 = vsel %vm2203, %v2133, %v2267
            %v2332 = vsel %vm2204, %v2135, %v2268
            %v2333 = vsel %vm2205, %v2024, %v2269
            %v2334 = vsel %vm2206, %v2026, %v2270
            %v2335 = vsel %vm2207, %v2137, %v2271
            %v2336 = vsel %vm2208, %v2139, %v2272
            %v2337 = vsel %vm2209, %v2030, %v2273
            %v2338 = vsel %vm2210, %v2032, %v2274
            %v2339 = vsel %vm2211, %v2143, %v2275
            %v2340 = vsel %vm2212, %v2145, %v2276
            %v2341 = vsel %vm2213, %v2034, %v2277
            %v2342 = vsel %vm2214, %v2036, %v2278
            %v2343 = vsel %vm2215, %v2147, %v2279
            %v2344 = vsel %vm2216, %v2149, %v2280
            %v2345 = vsel %vm2217, %v2040, %v2281
            %v2346 = vsel %vm2218, %v2042, %v2282
            %v2347 = vsel %vm2219, %v2153, %v2283
            %v2348 = vsel %vm2220, %v2155, %v2284
            %v2349 = vsel %vm2221, %v2044, %v2285
            %v2350 = vsel %vm2222, %v2046, %v2286
            %v2351 = vsel %vm2223, %v2157, %v2287
            %v2352 = vsel %vm2224, %v2159, %v2288
            %v2353 = vpack.c.bf16 %v2293, %v2289
            %v2354 = vpack.c.bf16 %v2294, %v2290
            %v2355 = vpack.c.bf16 %v2295, %v2291
            %v2356 = vpack.c.bf16 %v2296, %v2292
            %v2357 = vpack.c.bf16 %v2301, %v2297
            %v2358 = vpack.c.bf16 %v2302, %v2298
            %v2359 = vpack.c.bf16 %v2303, %v2299
            %v2360 = vpack.c.bf16 %v2304, %v2300
            %v2361 = vpack.c.bf16 %v2309, %v2305
            %v2362 = vpack.c.bf16 %v2310, %v2306
            %v2363 = vpack.c.bf16 %v2311, %v2307
            %v2364 = vpack.c.bf16 %v2312, %v2308
            %v2365 = vpack.c.bf16 %v2317, %v2313
            %v2366 = vpack.c.bf16 %v2318, %v2314
            %v2367 = vpack.c.bf16 %v2319, %v2315
            %v2368 = vpack.c.bf16 %v2320, %v2316
            %v2369 = vpack.c.bf16 %v2325, %v2321
            %v2370 = vpack.c.bf16 %v2326, %v2322
            %v2371 = vpack.c.bf16 %v2327, %v2323
            %v2372 = vpack.c.bf16 %v2328, %v2324
            %v2373 = vpack.c.bf16 %v2333, %v2329
            %v2374 = vpack.c.bf16 %v2334, %v2330
            %v2375 = vpack.c.bf16 %v2335, %v2331
            %v2376 = vpack.c.bf16 %v2336, %v2332
            %v2377 = vpack.c.bf16 %v2341, %v2337
            %v2378 = vpack.c.bf16 %v2342, %v2338
            %v2379 = vpack.c.bf16 %v2343, %v2339
            %v2380 = vpack.c.bf16 %v2344, %v2340
            %v2381 = vpack.c.bf16 %v2349, %v2345
            %v2382 = vpack.c.bf16 %v2350, %v2346
            %v2383 = vpack.c.bf16 %v2351, %v2347
            %v2384 = vpack.c.bf16 %v2352, %v2348
            %v2385 = vld [vmem:[#allocation12] sm:$0xf]
            %v2386 = vld [vmem:[#allocation12 + $0x4] sm:$0xf]
            %v2387 = vld [vmem:[#allocation12 + $0x8] sm:$0xf]
            %v2388 = vld [vmem:[#allocation12 + $0xc] sm:$0xf]
            %v2389 = vld [vmem:[#allocation12 + $0x10] sm:$0xf]
            %v2390 = vld [vmem:[#allocation12 + $0x14] sm:$0xf]
            %v2391 = vld [vmem:[#allocation12 + $0x18] sm:$0xf]
            %v2392 = vld [vmem:[#allocation12 + $0x1c] sm:$0xf]
            %v2393 = vld [vmem:[#allocation12 + $0x20] sm:$0xf]
            %v2394 = vld [vmem:[#allocation12 + $0x24] sm:$0xf]
            %v2395 = vld [vmem:[#allocation12 + $0x28] sm:$0xf]
            %v2396 = vld [vmem:[#allocation12 + $0x2c] sm:$0xf]
            %v2397 = vld [vmem:[#allocation12 + $0x30] sm:$0xf]
            %v2398 = vld [vmem:[#allocation12 + $0x34] sm:$0xf]
            %v2399 = vld [vmem:[#allocation12 + $0x38] sm:$0xf]
            %v2400 = vld [vmem:[#allocation12 + $0x3c] sm:$0xf]
            %v2401 = vld [vmem:[#allocation12 + $0x40] sm:$0xf]
            %v2402 = vld [vmem:[#allocation12 + $0x44] sm:$0xf]
            %v2403 = vld [vmem:[#allocation12 + $0x48] sm:$0xf]
            %v2404 = vld [vmem:[#allocation12 + $0x4c] sm:$0xf]
            %v2405 = vld [vmem:[#allocation12 + $0x50] sm:$0xf]
            %v2406 = vld [vmem:[#allocation12 + $0x54] sm:$0xf]
            %v2407 = vld [vmem:[#allocation12 + $0x58] sm:$0xf]
            %v2408 = vld [vmem:[#allocation12 + $0x5c] sm:$0xf]
            %v2409 = vld [vmem:[#allocation12 + $0x60] sm:$0xf]
            %v2410 = vld [vmem:[#allocation12 + $0x64] sm:$0xf]
            %v2411 = vld [vmem:[#allocation12 + $0x68] sm:$0xf]
            %v2412 = vld [vmem:[#allocation12 + $0x6c] sm:$0xf]
            %v2413 = vld [vmem:[#allocation12 + $0x70] sm:$0xf]
            %v2414 = vld [vmem:[#allocation12 + $0x74] sm:$0xf]
            %v2415 = vld [vmem:[#allocation12 + $0x78] sm:$0xf]
            %v2416 = vld [vmem:[#allocation12 + $0x7c] sm:$0xf]
            %v2417 = vld [vmem:[#allocation12 + $0x80] sm:$0xf]
            %v2418 = vld [vmem:[#allocation12 + $0x84] sm:$0xf]
            %v2419 = vld [vmem:[#allocation12 + $0x88] sm:$0xf]
            %v2420 = vld [vmem:[#allocation12 + $0x8c] sm:$0xf]
            %v2421 = vld [vmem:[#allocation12 + $0x90] sm:$0xf]
            %v2422 = vld [vmem:[#allocation12 + $0x94] sm:$0xf]
            %v2423 = vld [vmem:[#allocation12 + $0x98] sm:$0xf]
            %v2424 = vld [vmem:[#allocation12 + $0x9c] sm:$0xf]
            %v2425 = vld [vmem:[#allocation12 + $0xa0] sm:$0xf]
            %v2426 = vld [vmem:[#allocation12 + $0xa4] sm:$0xf]
            %v2427 = vld [vmem:[#allocation12 + $0xa8] sm:$0xf]
            %v2428 = vld [vmem:[#allocation12 + $0xac] sm:$0xf]
            %v2429 = vld [vmem:[#allocation12 + $0xb0] sm:$0xf]
            %v2430 = vld [vmem:[#allocation12 + $0xb4] sm:$0xf]
            %v2431 = vld [vmem:[#allocation12 + $0xb8] sm:$0xf]
            %v2432 = vld [vmem:[#allocation12 + $0xbc] sm:$0xf]
            %v2433 = vld [vmem:[#allocation12 + $0xc0] sm:$0xf]
            %v2434 = vld [vmem:[#allocation12 + $0xc4] sm:$0xf]
            %v2435 = vld [vmem:[#allocation12 + $0xc8] sm:$0xf]
            %v2436 = vld [vmem:[#allocation12 + $0xcc] sm:$0xf]
            %v2437 = vld [vmem:[#allocation12 + $0xd0] sm:$0xf]
            %v2438 = vld [vmem:[#allocation12 + $0xd4] sm:$0xf]
            %v2439 = vld [vmem:[#allocation12 + $0xd8] sm:$0xf]
            %v2440 = vld [vmem:[#allocation12 + $0xdc] sm:$0xf]
            %v2441 = vld [vmem:[#allocation12 + $0xe0] sm:$0xf]
            %v2442 = vld [vmem:[#allocation12 + $0xe4] sm:$0xf]
            %v2443 = vld [vmem:[#allocation12 + $0xe8] sm:$0xf]
            %v2444 = vld [vmem:[#allocation12 + $0xec] sm:$0xf]
            %v2445 = vld [vmem:[#allocation12 + $0xf0] sm:$0xf]
            %v2446 = vld [vmem:[#allocation12 + $0xf4] sm:$0xf]
            %v2447 = vld [vmem:[#allocation12 + $0xf8] sm:$0xf]
            %v2448 = vld [vmem:[#allocation12 + $0xfc] sm:$0xf]
            %v2513 = vunpack.c.l.b16 %v2385
            %v2514 = vunpack.c.l.b16 %v2386
            %v2515 = vunpack.c.l.b16 %v2387
            %v2516 = vunpack.c.l.b16 %v2388
            %v2517 = vunpack.c.l.b16 %v2389
            %v2518 = vunpack.c.l.b16 %v2390
            %v2519 = vunpack.c.l.b16 %v2391
            %v2520 = vunpack.c.l.b16 %v2392
            %v2521 = vunpack.c.l.b16 %v2393
            %v2522 = vunpack.c.l.b16 %v2394
            %v2523 = vunpack.c.l.b16 %v2395
            %v2524 = vunpack.c.l.b16 %v2396
            %v2525 = vunpack.c.l.b16 %v2397
            %v2526 = vunpack.c.l.b16 %v2398
            %v2527 = vunpack.c.l.b16 %v2399
            %v2528 = vunpack.c.l.b16 %v2400
            %v2529 = vunpack.c.l.b16 %v2401
            %v2530 = vunpack.c.l.b16 %v2402
            %v2531 = vunpack.c.l.b16 %v2403
            %v2532 = vunpack.c.l.b16 %v2404
            %v2533 = vunpack.c.l.b16 %v2405
            %v2534 = vunpack.c.l.b16 %v2406
            %v2535 = vunpack.c.l.b16 %v2407
            %v2536 = vunpack.c.l.b16 %v2408
            %v2537 = vunpack.c.l.b16 %v2409
            %v2538 = vunpack.c.l.b16 %v2410
            %v2539 = vunpack.c.l.b16 %v2411
            %v2540 = vunpack.c.l.b16 %v2412
            %v2541 = vunpack.c.l.b16 %v2413
            %v2542 = vunpack.c.l.b16 %v2414
            %v2543 = vunpack.c.l.b16 %v2415
            %v2544 = vunpack.c.l.b16 %v2416
            %v2545 = vunpack.c.l.b16 %v2417
            %v2546 = vunpack.c.l.b16 %v2418
            %v2547 = vunpack.c.l.b16 %v2419
            %v2548 = vunpack.c.l.b16 %v2420
            %v2549 = vunpack.c.l.b16 %v2421
            %v2550 = vunpack.c.l.b16 %v2422
            %v2551 = vunpack.c.l.b16 %v2423
            %v2552 = vunpack.c.l.b16 %v2424
            %v2553 = vunpack.c.l.b16 %v2425
            %v2554 = vunpack.c.l.b16 %v2426
            %v2555 = vunpack.c.l.b16 %v2427
            %v2556 = vunpack.c.l.b16 %v2428
            %v2557 = vunpack.c.l.b16 %v2429
            %v2558 = vunpack.c.l.b16 %v2430
            %v2559 = vunpack.c.l.b16 %v2431
            %v2560 = vunpack.c.l.b16 %v2432
            %v2561 = vunpack.c.l.b16 %v2433
            %v2562 = vunpack.c.l.b16 %v2434
            %v2563 = vunpack.c.l.b16 %v2435
            %v2564 = vunpack.c.l.b16 %v2436
            %v2565 = vunpack.c.l.b16 %v2437
            %v2566 = vunpack.c.l.b16 %v2438
            %v2567 = vunpack.c.l.b16 %v2439
            %v2568 = vunpack.c.l.b16 %v2440
            %v2569 = vunpack.c.l.b16 %v2441
            %v2570 = vunpack.c.l.b16 %v2442
            %v2571 = vunpack.c.l.b16 %v2443
            %v2572 = vunpack.c.l.b16 %v2444
            %v2573 = vunpack.c.l.b16 %v2445
            %v2574 = vunpack.c.l.b16 %v2446
            %v2575 = vunpack.c.l.b16 %v2447
            %v2576 = vunpack.c.l.b16 %v2448
            %v2577 = vpack.c.b16 %v2514, %v2513
            %v2578 = vpack.c.b16 %v2516, %v2515
            %v2579 = vpack.c.b16 %v2518, %v2517
            %v2580 = vpack.c.b16 %v2520, %v2519
            %v2581 = vpack.c.b16 %v2522, %v2521
            %v2582 = vpack.c.b16 %v2524, %v2523
            %v2583 = vpack.c.b16 %v2526, %v2525
            %v2584 = vpack.c.b16 %v2528, %v2527
            %v2585 = vpack.c.b16 %v2530, %v2529
            %v2586 = vpack.c.b16 %v2532, %v2531
            %v2587 = vpack.c.b16 %v2534, %v2533
            %v2588 = vpack.c.b16 %v2536, %v2535
            %v2589 = vpack.c.b16 %v2538, %v2537
            %v2590 = vpack.c.b16 %v2540, %v2539
            %v2591 = vpack.c.b16 %v2542, %v2541
            %v2592 = vpack.c.b16 %v2544, %v2543
            %v2593 = vpack.c.b16 %v2546, %v2545
            %v2594 = vpack.c.b16 %v2548, %v2547
            %v2595 = vpack.c.b16 %v2550, %v2549
            %v2596 = vpack.c.b16 %v2552, %v2551
            %v2597 = vpack.c.b16 %v2554, %v2553
            %v2598 = vpack.c.b16 %v2556, %v2555
            %v2599 = vpack.c.b16 %v2558, %v2557
            %v2600 = vpack.c.b16 %v2560, %v2559
            %v2601 = vpack.c.b16 %v2562, %v2561
            %v2602 = vpack.c.b16 %v2564, %v2563
            %v2603 = vpack.c.b16 %v2566, %v2565
            %v2604 = vpack.c.b16 %v2568, %v2567
            %v2605 = vpack.c.b16 %v2570, %v2569
            %v2606 = vpack.c.b16 %v2572, %v2571
            %v2607 = vpack.c.b16 %v2574, %v2573
            %v2608 = vpack.c.b16 %v2576, %v2575
            %2641 = vmatprep.subr.bf16.mxu0 0
            %2642 = vmatpush1.bf16.msra.mxu0 %v2577
            %2643 = vmatprep.subr.bf16.mxu0 0
            %2644 = vmatpush1.bf16.msra.mxu0 %v2578
            %2645 = vmatprep.subr.bf16.mxu0 0
            %2646 = vmatpush1.bf16.msra.mxu0 %v2579
            %2647 = vmatprep.subr.bf16.mxu0 0
            %2648 = vmatpush1.bf16.msra.mxu0 %v2580
            %2649 = vmatprep.subr.bf16.mxu0 0
            %2650 = vmatpush1.bf16.msra.mxu0 %v2581
            %2651 = vmatprep.subr.bf16.mxu0 0
            %2652 = vmatpush1.bf16.msra.mxu0 %v2582
            %2653 = vmatprep.subr.bf16.mxu0 0
            %2654 = vmatpush1.bf16.msra.mxu0 %v2583
            %2655 = vmatprep.subr.bf16.mxu0 0
            %2656 = vmatpush1.bf16.msra.mxu0 %v2584
            %2657 = vmatprep.subr.bf16.mxu0 0
            %2658 = vmatpush1.bf16.msra.mxu0 %v2585
            %2659 = vmatprep.subr.bf16.mxu0 0
            %2660 = vmatpush1.bf16.msra.mxu0 %v2586
            %2661 = vmatprep.subr.bf16.mxu0 0
            %2662 = vmatpush1.bf16.msra.mxu0 %v2587
            %2663 = vmatprep.subr.bf16.mxu0 0
            %2664 = vmatpush1.bf16.msra.mxu0 %v2588
            %2665 = vmatprep.subr.bf16.mxu0 0
            %2666 = vmatpush1.bf16.msra.mxu0 %v2589
            %2667 = vmatprep.subr.bf16.mxu0 0
            %2668 = vmatpush1.bf16.msra.mxu0 %v2590
            %2669 = vmatprep.subr.bf16.mxu0 0
            %2670 = vmatpush1.bf16.msra.mxu0 %v2591
            %2671 = vmatprep.subr.bf16.mxu0 0
            %2672 = vmatpush1.bf16.msra.mxu0 %v2592
            %2673 = vmatprep.mubr.bf16.mxu0 %v2354
            %2674 = vmatmul.mubr.bf16.gmra.mrb[0].mxu0 %v2353
            %v2675 = vpop.f32.mrb[0].mxu0
            %v2676 = vadd.f32 %v1719, %v2675
            %v2677 = vpop.f32.mrb[0].mxu0
            %v2678 = vpop.f32.mrb[0].mxu0
            %v2679 = vadd.f32 %v1720, %v2678
            %v2680 = vpop.f32.mrb[0].mxu0
            %2681 = vmatprep.mubr.bf16.mxu0 %v2358
            %2682 = vmatmul.mubr.bf16.gmra.mrb[0].mxu0 %v2357
            %v2683 = vpop.f32.mrb[0].mxu0
            %v2684 = vadd.f32 %v1721, %v2683
            %v2685 = vpop.f32.mrb[0].mxu0
            %v2686 = vpop.f32.mrb[0].mxu0
            %v2687 = vadd.f32 %v1722, %v2686
            %v2688 = vpop.f32.mrb[0].mxu0
            %2689 = vmatprep.mubr.bf16.mxu0 %v2362
            %2690 = vmatmul.mubr.bf16.gmra.mrb[0].mxu0 %v2361
            %v2691 = vpop.f32.mrb[0].mxu0
            %v2692 = vadd.f32 %v1723, %v2691
            %v2693 = vpop.f32.mrb[0].mxu0
            %v2694 = vpop.f32.mrb[0].mxu0
            %v2695 = vadd.f32 %v1724, %v2694
            %v2696 = vpop.f32.mrb[0].mxu0
            %2697 = vmatprep.mubr.bf16.mxu0 %v2366
            %2698 = vmatmul.mubr.bf16.gmra.mrb[0].mxu0 %v2365
            %v2699 = vpop.f32.mrb[0].mxu0
            %v2700 = vadd.f32 %v1725, %v2699
            %v2701 = vpop.f32.mrb[0].mxu0
            %v2702 = vpop.f32.mrb[0].mxu0
            %v2703 = vadd.f32 %v1726, %v2702
            %v2704 = vpop.f32.mrb[0].mxu0
            %2705 = vmatprep.mubr.bf16.mxu0 %v2370
            %2706 = vmatmul.mubr.bf16.gmra.mrb[0].mxu0 %v2369
            %v2707 = vpop.f32.mrb[0].mxu0
            %v2708 = vadd.f32 %v1727, %v2707
            %v2709 = vpop.f32.mrb[0].mxu0
            %v2710 = vpop.f32.mrb[0].mxu0
            %v2711 = vadd.f32 %v1728, %v2710
            %v2712 = vpop.f32.mrb[0].mxu0
            %2713 = vmatprep.mubr.bf16.mxu0 %v2374
            %2714 = vmatmul.mubr.bf16.gmra.mrb[0].mxu0 %v2373
            %v2715 = vpop.f32.mrb[0].mxu0
            %v2716 = vadd.f32 %v1729, %v2715
            %v2717 = vpop.f32.mrb[0].mxu0
            %v2718 = vpop.f32.mrb[0].mxu0
            %v2719 = vadd.f32 %v1730, %v2718
            %v2720 = vpop.f32.mrb[0].mxu0
            %2721 = vmatprep.mubr.bf16.mxu0 %v2378
            %2722 = vmatmul.mubr.bf16.gmra.mrb[0].mxu0 %v2377
            %v2723 = vpop.f32.mrb[0].mxu0
            %v2724 = vadd.f32 %v1731, %v2723
            %v2725 = vpop.f32.mrb[0].mxu0
            %v2726 = vpop.f32.mrb[0].mxu0
            %v2727 = vadd.f32 %v1732, %v2726
            %v2728 = vpop.f32.mrb[0].mxu0
            %2729 = vmatprep.mubr.bf16.mxu0 %v2382
            %2730 = vmatmul.mubr.bf16.gmra.mrb[0].mxu0 %v2381
            %v2731 = vpop.f32.mrb[0].mxu0
            %v2732 = vadd.f32 %v1733, %v2731
            %v2733 = vpop.f32.mrb[0].mxu0
            %v2734 = vpop.f32.mrb[0].mxu0
            %v2735 = vadd.f32 %v1734, %v2734
            %v2736 = vpop.f32.mrb[0].mxu0
            %2737 = vdwg.mxu0
            %2738 = vmatprep.subr.bf16.mxu0 0
            %2739 = vmatpush1.bf16.msra.mxu0 %v2593
            %2740 = vmatprep.subr.bf16.mxu0 0
            %2741 = vmatpush1.bf16.msra.mxu0 %v2594
            %2742 = vmatprep.subr.bf16.mxu0 0
            %2743 = vmatpush1.bf16.msra.mxu0 %v2595
            %2744 = vmatprep.subr.bf16.mxu0 0
            %2745 = vmatpush1.bf16.msra.mxu0 %v2596
            %2746 = vmatprep.subr.bf16.mxu0 0
            %2747 = vmatpush1.bf16.msra.mxu0 %v2597
            %2748 = vmatprep.subr.bf16.mxu0 0
            %2749 = vmatpush1.bf16.msra.mxu0 %v2598
            %2750 = vmatprep.subr.bf16.mxu0 0
            %2751 = vmatpush1.bf16.msra.mxu0 %v2599
            %2752 = vmatprep.subr.bf16.mxu0 0
            %2753 = vmatpush1.bf16.msra.mxu0 %v2600
            %2754 = vmatprep.subr.bf16.mxu0 0
            %2755 = vmatpush1.bf16.msra.mxu0 %v2601
            %2756 = vmatprep.subr.bf16.mxu0 0
            %2757 = vmatpush1.bf16.msra.mxu0 %v2602
            %2758 = vmatprep.subr.bf16.mxu0 0
            %2759 = vmatpush1.bf16.msra.mxu0 %v2603
            %2760 = vmatprep.subr.bf16.mxu0 0
            %2761 = vmatpush1.bf16.msra.mxu0 %v2604
            %2762 = vmatprep.subr.bf16.mxu0 0
            %2763 = vmatpush1.bf16.msra.mxu0 %v2605
            %2764 = vmatprep.subr.bf16.mxu0 0
            %2765 = vmatpush1.bf16.msra.mxu0 %v2606
            %2766 = vmatprep.subr.bf16.mxu0 0
            %2767 = vmatpush1.bf16.msra.mxu0 %v2607
            %2768 = vmatprep.subr.bf16.mxu0 0
            %2769 = vmatpush1.bf16.msra.mxu0 %v2608
            %2770 = vmatprep.mubr.bf16.mxu0 %v2356
            %2771 = vmatmul.mubr.bf16.gmra.mrb[0].mxu0 %v2355
            %v2772 = vpop.f32.mrb[0].mxu0
            %v2773 = vadd.f32 %v2676, %v2772
            %v2774 = vpop.f32.mrb[0].mxu0
            %v2775 = vpop.f32.mrb[0].mxu0
            %v2776 = vadd.f32 %v2679, %v2775
            %v2777 = vpop.f32.mrb[0].mxu0
            %2778 = vmatprep.mubr.bf16.mxu0 %v2360
            %2779 = vmatmul.mubr.bf16.gmra.mrb[0].mxu0 %v2359
            %v2780 = vpop.f32.mrb[0].mxu0
            %v2781 = vadd.f32 %v2684, %v2780
            %v2782 = vpop.f32.mrb[0].mxu0
            %v2783 = vpop.f32.mrb[0].mxu0
            %v2784 = vadd.f32 %v2687, %v2783
            %v2785 = vpop.f32.mrb[0].mxu0
            %2786 = vmatprep.mubr.bf16.mxu0 %v2364
            %2787 = vmatmul.mubr.bf16.gmra.mrb[0].mxu0 %v2363
            %v2788 = vpop.f32.mrb[0].mxu0
            %v2789 = vadd.f32 %v2692, %v2788
            %v2790 = vpop.f32.mrb[0].mxu0
            %v2791 = vpop.f32.mrb[0].mxu0
            %v2792 = vadd.f32 %v2695, %v2791
            %v2793 = vpop.f32.mrb[0].mxu0
            %2794 = vmatprep.mubr.bf16.mxu0 %v2368
            %2795 = vmatmul.mubr.bf16.gmra.mrb[0].mxu0 %v2367
            %v2796 = vpop.f32.mrb[0].mxu0
            %v2797 = vadd.f32 %v2700, %v2796
            %v2798 = vpop.f32.mrb[0].mxu0
            %v2799 = vpop.f32.mrb[0].mxu0
            %v2800 = vadd.f32 %v2703, %v2799
            %v2801 = vpop.f32.mrb[0].mxu0
            %2802 = vmatprep.mubr.bf16.mxu0 %v2372
            %2803 = vmatmul.mubr.bf16.gmra.mrb[0].mxu0 %v2371
            %v2804 = vpop.f32.mrb[0].mxu0
            %v2805 = vadd.f32 %v2708, %v2804
            %v2806 = vpop.f32.mrb[0].mxu0
            %v2807 = vpop.f32.mrb[0].mxu0
            %v2808 = vadd.f32 %v2711, %v2807
            %v2809 = vpop.f32.mrb[0].mxu0
            %2810 = vmatprep.mubr.bf16.mxu0 %v2376
            %2811 = vmatmul.mubr.bf16.gmra.mrb[0].mxu0 %v2375
            %v2812 = vpop.f32.mrb[0].mxu0
            %v2813 = vadd.f32 %v2716, %v2812
            %v2814 = vpop.f32.mrb[0].mxu0
            %v2815 = vpop.f32.mrb[0].mxu0
            %v2816 = vadd.f32 %v2719, %v2815
            %v2817 = vpop.f32.mrb[0].mxu0
            %2818 = vmatprep.mubr.bf16.mxu0 %v2380
            %2819 = vmatmul.mubr.bf16.gmra.mrb[0].mxu0 %v2379
            %v2820 = vpop.f32.mrb[0].mxu0
            %v2821 = vadd.f32 %v2724, %v2820
            %v2822 = vpop.f32.mrb[0].mxu0
            %v2823 = vpop.f32.mrb[0].mxu0
            %v2824 = vadd.f32 %v2727, %v2823
            %v2825 = vpop.f32.mrb[0].mxu0
            %2826 = vmatprep.mubr.bf16.mxu0 %v2384
            %2827 = vmatmul.mubr.bf16.gmra.mrb[0].mxu0 %v2383
            %v2828 = vpop.f32.mrb[0].mxu0
            %v2829 = vadd.f32 %v2732, %v2828
            %v2830 = vpop.f32.mrb[0].mxu0
            %v2831 = vpop.f32.mrb[0].mxu0
            %v2832 = vadd.f32 %v2735, %v2831
            %v2833 = vpop.f32.mrb[0].mxu0
            %2834 = vdwg.mxu0
            %v2835 = vld [vmem:[%s8] sm:$0x1]
            %v2837 = vlaneseq
            %v2838 = vshrl.u32 %v2837, 7
            %v2839 = vsub.s32 0, %v2838
            %v2840 = vrot.slane %v2835, %v2839
            %v2842 = vmul.f32 %v2773, %v2840
            %v2843 = vmul.f32 %v2776, %v2840
            %v2844 = vmul.f32 %v2781, %v2840
            %v2845 = vmul.f32 %v2784, %v2840
            %v2846 = vmul.f32 %v2789, %v2840
            %v2847 = vmul.f32 %v2792, %v2840
            %v2848 = vmul.f32 %v2797, %v2840
            %v2849 = vmul.f32 %v2800, %v2840
            %v2850 = vmul.f32 %v2805, %v2840
            %v2851 = vmul.f32 %v2808, %v2840
            %v2852 = vmul.f32 %v2813, %v2840
            %v2853 = vmul.f32 %v2816, %v2840
            %v2854 = vmul.f32 %v2821, %v2840
            %v2855 = vmul.f32 %v2824, %v2840
            %v2856 = vmul.f32 %v2829, %v2840
            %v2857 = vmul.f32 %v2832, %v2840
            %v2858 = vld [vmem:[%s9] sm:$0x1]
            %v2860 = vlaneseq
            %v2861 = vshrl.u32 %v2860, 7
            %v2862 = vsub.s32 0, %v2861
            %v2863 = vrot.slane %v2858, %v2862
            %v2865 = vadd.f32 %v2842, %v2863
            %v2866 = vadd.f32 %v2843, %v2863
            %v2867 = vadd.f32 %v2844, %v2863
            %v2868 = vadd.f32 %v2845, %v2863
            %v2869 = vadd.f32 %v2846, %v2863
            %v2870 = vadd.f32 %v2847, %v2863
            %v2871 = vadd.f32 %v2848, %v2863
            %v2872 = vadd.f32 %v2849, %v2863
            %v2873 = vadd.f32 %v2850, %v2863
            %v2874 = vadd.f32 %v2851, %v2863
            %v2875 = vadd.f32 %v2852, %v2863
            %v2876 = vadd.f32 %v2853, %v2863
            %v2877 = vadd.f32 %v2854, %v2863
            %v2878 = vadd.f32 %v2855, %v2863
            %v2879 = vadd.f32 %v2856, %v2863
            %v2880 = vadd.f32 %v2857, %v2863
            %2881 = vst [vmem:[%s1672] sm:$0xff] %v2865
            %2882 = vst [vmem:[%s1672 + $0x8] sm:$0xff] %v2866
            %2883 = vst [vmem:[%s1672 + $0x10] sm:$0xff] %v2867
            %2884 = vst [vmem:[%s1672 + $0x18] sm:$0xff] %v2868
            %2885 = vst [vmem:[%s1672 + $0x20] sm:$0xff] %v2869
            %2886 = vst [vmem:[%s1672 + $0x28] sm:$0xff] %v2870
            %2887 = vst [vmem:[%s1672 + $0x30] sm:$0xff] %v2871
            %2888 = vst [vmem:[%s1672 + $0x38] sm:$0xff] %v2872
            %2889 = vst [vmem:[%s1672 + $0x40] sm:$0xff] %v2873
            %2890 = vst [vmem:[%s1672 + $0x48] sm:$0xff] %v2874
            %2891 = vst [vmem:[%s1672 + $0x50] sm:$0xff] %v2875
            %2892 = vst [vmem:[%s1672 + $0x58] sm:$0xff] %v2876
            %2893 = vst [vmem:[%s1672 + $0x60] sm:$0xff] %v2877
            %2894 = vst [vmem:[%s1672 + $0x68] sm:$0xff] %v2878
            %2895 = vst [vmem:[%s1672 + $0x70] sm:$0xff] %v2879
            %2896 = vst [vmem:[%s1672 + $0x78] sm:$0xff] %v2880
          $region100: #{tpu_custom_call.1} parent=94 // loop_footer
            %s1670 = sadd.s32 1, %s1666
          $region101: #{tpu_custom_call.1} parent=94 // loop_footer_branch
            %1665 = sbr.rel target = $region97
          $region102: #{tpu_custom_call.1} parent=94 // loop_exit
            _
        $region95: #{tpu_custom_call.1} parent=59 // pred_fallthru
          _
        %s2897 = sand.u32 %s264, 1
        %s2898 = scalar_lea.sflag [#allocation6], %s2897
        %s2899 = sand.u32 %s264, 1
        %s2900 = smul.addr %s2899, 256
        %s2901 = scalar_lea.vmem [#allocation13], %s2900
        // Predicated region
        $region103: #{tpu_custom_call.1} parent=59 // pred_check
          %p2902 = pneg %p274
        $region104: #{tpu_custom_call.1} parent=59 // pred_check_branch
          %2904 = sbr.rel (%p2902) target = $region106
        $region105: #{tpu_custom_call.1} parent=59 // pred_region
          %s2906 = ssub.s32 4096, 4096
          %2907 = vsyncadd %s2898, %s2906
          %s2908 = smul.addr %s33, 32
          %s2909 = smul.addr %s2908, 128
          %s2910 = scalar_lea.hbm %s10, %s2909
          %s2911 = sshll.u32 %s2901, 4
          %s2912 = int_to_ptr.vmem [resolvable:$true] %s2911
          %2917 = dma.vmem_to_hbm [thread:$0]  %s2912, 4096, %s2910, %s2898, 128, 128, 8
        $region106: #{tpu_custom_call.1} parent=59 // pred_fallthru
          _
      $region60: #{tpu_custom_call.1} parent=5 // pred_fallthru
        _
      %p2918 = scmp.le.s32.totalorder 2, %s24
      // Predicated region
      $region107: #{tpu_custom_call.1} parent=5 // pred_check
        %p2919 = pneg %p2918
      $region108: #{tpu_custom_call.1} parent=5 // pred_check_branch
        %2921 = sbr.rel (%p2919) target = $region110
      $region109: #{tpu_custom_call.1} parent=5 // pred_region
        %s2922 = ssub.s32 %s24, 2
        // Predicated region
        $region111: #{tpu_custom_call.1} parent=109 // pred_check
          %p2923 = pneg %p280
        $region112: #{tpu_custom_call.1} parent=109 // pred_check_branch
          %2925 = sbr.rel (%p2923) target = $region114
        $region113: #{tpu_custom_call.1} parent=109 // pred_region
          %s2926 = sand.u32 %s265, 1
          %s2927 = scalar_lea.sflag [#allocation6], %s2926
          %s2928 = sand.u32 %s265, 1
          %s2929 = smul.addr %s2928, 256
          %s2930 = scalar_lea.vmem [#allocation13], %s2929
          %2931 = dma.done %s2927, 4096
        $region114: #{tpu_custom_call.1} parent=109 // pred_fallthru
          _
      $region110: #{tpu_custom_call.1} parent=5 // pred_fallthru
        _
    $region6: #{tpu_custom_call.1} parent=1 // loop_footer
      %s28 = sadd.s32 1, %s24
    $region7: #{tpu_custom_call.1} parent=1 // loop_footer_branch
      %23 = sbr.rel target = $region3
    $region8: #{tpu_custom_call.1} parent=1 // loop_exit
      _
    %2932 = vsyncpa [#allocation5], 1
    %s2933 = scalar_lea.sflag [#allocation5], 1
    %2934 = vsyncpa %s2933, 1
    %2935 = vsyncpa [#allocation8], 1
    %2936 = vsyncpa [#allocation11], 1
    %2937 = vsyncpa [#allocation6], 1
    %s2938 = scalar_lea.sflag [#allocation6], 1
    %2939 = vsyncpa %s2938, 1

</llo_original>
